<compile_context>
chip_gen: v7x
topology: tpu7x:2x2x1
jax: 0.10.0
libtpu: 0.0.40
codegen_flags: <defaults>
</compile_context>

<pallas_src>
import functools

import numpy as np
import jax
import jax.numpy as jnp
from jax.experimental import pallas as pl
from jax.experimental.pallas import tpu as pltpu

LANES = 128                      # final GEMM N dims padded to the lane width
COMPUTE_DTYPE = jnp.bfloat16     # MXU input dtype (accumulation stays float32)
BLOCK_B = 8                      # images per grid step (multiple of 8 sublanes)


# ----------------------------------------------------------------------------
# Fused kernel body: conv1+pool1, conv2+pool2, conv3, fc1, fc2 for one block.
# ----------------------------------------------------------------------------
def _lenet_kernel(x_ref,
                  w1_ref, b1_ref, w2_ref, b2_ref, w3_ref, b3_ref,
                  wf1_ref, bf1_ref, wf2_ref, bf2_ref,
                  out_ref):
    f32 = jnp.float32
    cdt = w1_ref.dtype                      # bf16 compute dtype

    h, b, _ = x_ref.shape                   # (32, BLOCK_B, W*cin)
    kh = 5
    ho1 = h - (kh - 1)                       # 28
    hp1 = ho1 // 2                           # 14
    ho2 = hp1 - (kh - 1)                     # 10
    hp2 = ho2 // 2                           # 5
    n1 = w1_ref.shape[2]                     # 28*6  = 168
    n2 = w2_ref.shape[2]                     # 10*16 = 160
    c1, c2 = 6, 16

    xb = x_ref[...].astype(cdt)              # (H, B, W*cin)

    # ---- conv1 + bias + ReLU: sum over the 5 row offsets of a row-Toeplitz GEMM
    acc1 = jnp.dot(xb[0:ho1].reshape(ho1 * b, xb.shape[2]), w1_ref[0],
                   preferred_element_type=f32)
    for i in range(1, kh):
        acc1 = acc1 + jnp.dot(xb[i:i + ho1].reshape(ho1 * b, xb.shape[2]),
                              w1_ref[i], preferred_element_type=f32)
    a1 = jnp.maximum(acc1 + b1_ref[...], 0.0)                 # (28*B, 168) f32

    # ---- maxpool1 (2x2): row pairs on the outer axis, column pairs on lanes
    a1 = a1.reshape(hp1, 2, b, n1)
    a1 = jnp.maximum(a1[:, 0], a1[:, 1])                      # (14, B, 168)
    p1 = jnp.maximum(a1[..., :n1 - c1], a1[..., c1:]).astype(cdt)   # (14, B, 162)
    # valid pooled entry (q', c) lives at lane 2*q'*6 + c; other lanes are
    # harmless garbage zeroed out by W2's structure.

    # ---- conv2 + bias + ReLU
    acc2 = jnp.dot(p1[0:ho2].reshape(ho2 * b, n1 - c1), w2_ref[0],
                   preferred_element_type=f32)
    for i in range(1, kh):
        acc2 = acc2 + jnp.dot(p1[i:i + ho2].reshape(ho2 * b, n1 - c1),
                              w2_ref[i], preferred_element_type=f32)
    a2 = jnp.maximum(acc2 + b2_ref[...], 0.0)                 # (10*B, 160) f32

    # ---- maxpool2 (2x2)
    a2 = a2.reshape(hp2, 2, b, n2)
    a2 = jnp.maximum(a2[:, 0], a2[:, 1])                      # (5, B, 160)
    p2 = jnp.maximum(a2[..., :n2 - c2], a2[..., c2:]).astype(cdt)   # (5, B, 144)

    # ---- conv3 (1x1 spatial output == dense over the 5x5x16 receptive field)
    acc3 = jnp.dot(p2[0], w3_ref[0], preferred_element_type=f32)
    for i in range(1, kh):
        acc3 = acc3 + jnp.dot(p2[i], w3_ref[i], preferred_element_type=f32)
    a3 = jnp.maximum(acc3 + b3_ref[...], 0.0).astype(cdt)     # (B, 128), pad lanes == 0

    # ---- fc1 + ReLU, fc2 (M = B GEMMs, 128-lane padded)
    hvec = jnp.dot(a3, wf1_ref[...], preferred_element_type=f32) + bf1_ref[...]
    hvec = jnp.maximum(hvec, 0.0).astype(cdt)
    out_ref[...] = jnp.dot(hvec, wf2_ref[...],
                           preferred_element_type=f32) + bf2_ref[...]


# ----------------------------------------------------------------------------
# Host-side wrapper: one pallas_call, grid over batch blocks.
# ----------------------------------------------------------------------------
def lenet_forward(kernel_params, x, *, num_classes):
    """x: (N, C, H, W) float32 (NCHW as in the PyTorch module) -> (N, num_classes)."""
    n, cin, h, w = x.shape
    assert num_classes <= LANES
    # Classic LeNet geometry: 32 -> 28 -> 14 -> 10 -> 5 -> 1 on both axes.
    assert (h - 4) % 2 == 0 and (w - 4) % 2 == 0
    assert ((h - 4) // 2 - 4) % 2 == 0 and ((w - 4) // 2 - 4) % 2 == 0
    assert ((h - 4) // 2 - 4) // 2 == 5 and ((w - 4) // 2 - 4) // 2 == 5
    kp = kernel_params
    assert kp["w1"].shape[1] == w * cin, "packed weights built for a different width"

    # Relayout once: (N, C, H, W) -> (H, N, W*C) so spatial rows are the outer
    # (untiled) axis, the batch block sits on sublanes, and W*C is the lane axis.
    xr = jnp.transpose(x, (2, 0, 3, 1)).reshape(h, n, w * cin)
    n_pad = ((n + BLOCK_B - 1) // BLOCK_B) * BLOCK_B
    if n_pad != n:
        xr = jnp.pad(xr, ((0, 0), (0, n_pad - n), (0, 0)))

    weight_args = (kp["w1"], kp["b1"], kp["w2"], kp["b2"], kp["w3"], kp["b3"],
                   kp["wf1"], kp["bf1"], kp["wf2"], kp["bf2"])
    in_specs = [pl.BlockSpec((h, BLOCK_B, w * cin), lambda g: (0, g, 0))]
    in_specs += [pl.BlockSpec(a.shape, lambda g, nd=a.ndim: (0,) * nd)
                 for a in weight_args]

    out = pl.pallas_call(
        _lenet_kernel,
        out_shape=jax.ShapeDtypeStruct((n_pad, LANES), jnp.float32),
        grid=(n_pad // BLOCK_B,),
        in_specs=in_specs,
        out_specs=pl.BlockSpec((BLOCK_B, LANES), lambda g: (g, 0)),
        compiler_params=pltpu.CompilerParams(
            dimension_semantics=("parallel",),
        ),
    )(xr, *weight_args)
    return out[:n, :num_classes]


# ----------------------------------------------------------------------------
# Parameters: PyTorch-style init + one-time host-side repack for the kernel.
# ----------------------------------------------------------------------------
def init_lenet_params(key, in_channel, num_classes):
    keys = jax.random.split(key, 5)

    def conv_init(k, out_c, in_c, kh, kw):
        fan_in = in_c * kh * kw
        bound = 1.0 / jnp.sqrt(fan_in)
        kw_, kb_ = jax.random.split(k)
        wgt = jax.random.uniform(kw_, (out_c, in_c, kh, kw), jnp.float32, -bound, bound)
        bias = jax.random.uniform(kb_, (out_c,), jnp.float32, -bound, bound)
        return wgt, bias

    def fc_init(k, out_f, in_f):
        bound = 1.0 / jnp.sqrt(in_f)
        kw_, kb_ = jax.random.split(k)
        wgt = jax.random.uniform(kw_, (out_f, in_f), jnp.float32, -bound, bound)
        bias = jax.random.uniform(kb_, (out_f,), jnp.float32, -bound, bound)
        return wgt, bias

    return {
        "conv1": conv_init(keys[0], 6, in_channel, 5, 5),
        "conv2": conv_init(keys[1], 16, 6, 5, 5),
        "conv3": conv_init(keys[2], 120, 16, 5, 5),
        "fc1": fc_init(keys[3], 84, 120),
        "fc2": fc_init(keys[4], num_classes, 84),
    }


def pack_kernel_params(params, *, in_width, compute_dtype=COMPUTE_DTYPE):
    """Build the block-Toeplitz conv matrices / padded fc matrices used by the
    kernel.  All gathers (width windows, channel ordering, post-pool column
    decimation) and zero padding live in these host-side constants; padded /
    garbage lanes always see exactly-zero weights so they cannot contribute."""
    w1, b1 = [np.asarray(a, np.float32) for a in params["conv1"]]
    w2, b2 = [np.asarray(a, np.float32) for a in params["conv2"]]
    w3, b3 = [np.asarray(a, np.float32) for a in params["conv3"]]
    wf1, bf1 = [np.asarray(a, np.float32) for a in params["fc1"]]
    wf2, bf2 = [np.asarray(a, np.float32) for a in params["fc2"]]

    cin = w1.shape[1]
    wd = in_width
    wo1 = wd - 4                 # 28
    wp1 = wo1 // 2               # 14
    wo2 = wp1 - 4                # 10
    assert wo2 // 2 == 5, "LeNet fc1(120) requires a 32x32 input"

    # conv1: input row lanes l = w*cin + c; output lanes m = q*6 + oc.
    k1, n1 = wd * cin, wo1 * 6
    w1m = np.zeros((5, k1, n1), np.float32)
    for i in range(5):
        for j in range(5):
            for q in range(wo1):
                for c in range(cin):
                    w1m[i, (q + j) * cin + c, q * 6:(q + 1) * 6] = w1[:, c, i, j]
    b1r = np.tile(b1, wo1).reshape(1, n1)

    # conv2: pooled input lanes l = 12*q' + c; output lanes m = q*16 + oc.
    k2, n2 = n1 - 6, wo2 * 16
    w2m = np.zeros((5, k2, n2), np.float32)
    for i in range(5):
        for j in range(5):
            for q in range(wo2):
                for c in range(6):
                    w2m[i, 2 * (q + j) * 6 + c, q * 16:(q + 1) * 16] = w2[:, c, i, j]
    b2r = np.tile(b2, wo2).reshape(1, n2)

    # conv3 (== dense over 5x5x16): pooled input lanes l = 32*j + c.
    k3 = n2 - 16
    w3m = np.zeros((5, k3, LANES), np.float32)
    for i in range(5):
        for j in range(5):
            for c in range(16):
                w3m[i, 2 * j * 16 + c, :120] = w3[:, c, i, j]
    b3r = np.zeros((1, LANES), np.float32)
    b3r[0, :120] = b3

    wf1m = np.zeros((LANES, LANES), np.float32)
    wf1m[:120, :84] = wf1.T
    bf1r = np.zeros((1, LANES), np.float32)
    bf1r[0, :84] = bf1

    nc = wf2.shape[0]
    wf2m = np.zeros((LANES, LANES), np.float32)
    wf2m[:84, :nc] = wf2.T
    bf2r = np.zeros((1, LANES), np.float32)
    bf2r[0, :nc] = bf2

    cd = compute_dtype
    return {
        "w1": jnp.asarray(w1m, cd), "b1": jnp.asarray(b1r, jnp.float32),
        "w2": jnp.asarray(w2m, cd), "b2": jnp.asarray(b2r, jnp.float32),
        "w3": jnp.asarray(w3m, cd), "b3": jnp.asarray(b3r, jnp.float32),
        "wf1": jnp.asarray(wf1m, cd), "bf1": jnp.asarray(bf1r, jnp.float32),
        "wf2": jnp.asarray(wf2m, cd), "bf2": jnp.asarray(bf2r, jnp.float32),
    }


# ----------------------------------------------------------------------------
# Pure-JAX (XLA) reference at matched precision (bf16 matmul inputs, f32 accum).
# ----------------------------------------------------------------------------
def lenet_reference(params, x, compute_dtype=COMPUTE_DTYPE):
    cd = compute_dtype

    def conv(z, wgt, bias):
        y = jax.lax.conv_general_dilated(
            z.astype(cd), wgt.astype(cd), window_strides=(1, 1), padding="VALID",
            dimension_numbers=("NCHW", "OIHW", "NCHW"),
            preferred_element_type=jnp.float32)
        return y + bias.reshape(1, -1, 1, 1)

    def pool(z):
        return jax.lax.reduce_window(z, -jnp.inf, jax.lax.max,
                                     (1, 1, 2, 2), (1, 1, 2, 2), "VALID")

    (w1, b1), (w2, b2), (w3, b3) = params["conv1"], params["conv2"], params["conv3"]
    (wf1, bf1), (wf2, bf2) = params["fc1"], params["fc2"]
    z = pool(jax.nn.relu(conv(x, w1, b1)))
    z = pool(jax.nn.relu(conv(z, w2, b2)))
    z = jax.nn.relu(conv(z, w3, b3))
    z = z.reshape(z.shape[0], -1)
    z = jax.nn.relu(jnp.dot(z.astype(cd), wf1.T.astype(cd),
                            preferred_element_type=jnp.float32) + bf1)
    z = jnp.dot(z.astype(cd), wf2.T.astype(cd),
                preferred_element_type=jnp.float32) + bf2
    return z


if __name__ == "__main__":
    in_channel = 1
    num_classes = 10
    batch = 2

    key = jax.random.PRNGKey(0)
    k_param, k_x = jax.random.split(key)
    params = init_lenet_params(k_param, in_channel, num_classes)
    kparams = pack_kernel_params(params, in_width=32)

    # LeNet geometry requires 32x32 spatial input (conv3 reduces 5x5 -> 1x1).
    x = jax.random.normal(k_x, (batch, in_channel, 32, 32), dtype=jnp.float32)

    fwd = jax.jit(functools.partial(lenet_forward, num_classes=num_classes))
    out = fwd(kparams, x)
    jax.block_until_ready(out)
    assert out.shape == (batch, num_classes), out.shape

    # Numerical check against an XLA reference at the same matmul precision.
    ref = jax.jit(functools.partial(lenet_reference, params))(x)
    err = float(jnp.max(jnp.abs(out - ref)))
    assert err < 3e-2, f"max abs error vs reference: {err}"
    print("KERNEL_OK")
</pallas_src>

<mosaic_0001>
module attributes {stable_mosaic.version = 11 : i64} {
  func.func @_lenet_kernel(%arg0: i32, %arg1: memref<32x8x32xf32, #tpu.memory_space<vmem>>, %arg2: memref<5x32x168xbf16, #tpu.memory_space<vmem>>, %arg3: memref<1x168xf32, #tpu.memory_space<vmem>>, %arg4: memref<5x162x160xbf16, #tpu.memory_space<vmem>>, %arg5: memref<1x160xf32, #tpu.memory_space<vmem>>, %arg6: memref<5x144x128xbf16, #tpu.memory_space<vmem>>, %arg7: memref<1x128xf32, #tpu.memory_space<vmem>>, %arg8: memref<128x128xbf16, #tpu.memory_space<vmem>>, %arg9: memref<1x128xf32, #tpu.memory_space<vmem>>, %arg10: memref<128x128xbf16, #tpu.memory_space<vmem>>, %arg11: memref<1x128xf32, #tpu.memory_space<vmem>>, %arg12: memref<8x128xf32, #tpu.memory_space<vmem>>) attributes {dimension_semantics = [#tpu.dimension_semantics<parallel>], iteration_bounds = array<i64: 1>, scalar_prefetch = 0 : i64, scratch_operands = 0 : i64, tpu.core_type = #tpu.core_type<tc>, window_params = [{transform_indices = @transform_0, window_bounds = array<i64: 32, 8, 32>}, {pipeline_mode = #tpu.pipeline_mode<synchronous>, transform_indices = @transform_1, window_bounds = array<i64: 5, 32, 168>}, {pipeline_mode = #tpu.pipeline_mode<synchronous>, transform_indices = @transform_2, window_bounds = array<i64: 1, 168>}, {pipeline_mode = #tpu.pipeline_mode<synchronous>, transform_indices = @transform_3, window_bounds = array<i64: 5, 162, 160>}, {pipeline_mode = #tpu.pipeline_mode<synchronous>, transform_indices = @transform_4, window_bounds = array<i64: 1, 160>}, {pipeline_mode = #tpu.pipeline_mode<synchronous>, transform_indices = @transform_5, window_bounds = array<i64: 5, 144, 128>}, {pipeline_mode = #tpu.pipeline_mode<synchronous>, transform_indices = @transform_6, window_bounds = array<i64: 1, 128>}, {pipeline_mode = #tpu.pipeline_mode<synchronous>, transform_indices = @transform_7, window_bounds = array<i64: 128, 128>}, {pipeline_mode = #tpu.pipeline_mode<synchronous>, transform_indices = @transform_8, window_bounds = array<i64: 1, 128>}, {pipeline_mode = #tpu.pipeline_mode<synchronous>, transform_indices = @transform_9, window_bounds = array<i64: 128, 128>}, {pipeline_mode = #tpu.pipeline_mode<synchronous>, transform_indices = @transform_10, window_bounds = array<i64: 1, 128>}, {transform_indices = @transform_11, window_bounds = array<i64: 8, 128>}]} {
    %c0 = arith.constant 0 : index
    %c0_0 = arith.constant 0 : index
    %c0_1 = arith.constant 0 : index
    %0 = vector.load %arg1[%c0, %c0_0, %c0_1] : memref<32x8x32xf32, #tpu.memory_space<vmem>>, vector<32x8x32xf32>
    %1 = arith.truncf %0 : vector<32x8x32xf32> to vector<32x8x32xbf16>
    %2 = vector.extract_strided_slice %1 {offsets = [0, 0, 0], sizes = [28, 8, 32], strides = [1, 1, 1]} : vector<32x8x32xbf16> to vector<28x8x32xbf16>
    %3 = vector.shape_cast %2 : vector<28x8x32xbf16> to vector<224x32xbf16>
    %c0_2 = arith.constant 0 : index
    %c0_3 = arith.constant 0 : index
    %c0_4 = arith.constant 0 : index
    %4 = vector.load %arg2[%c0_2, %c0_3, %c0_4] : memref<5x32x168xbf16, #tpu.memory_space<vmem>>, vector<1x32x168xbf16>
    %5 = vector.shape_cast %4 : vector<1x32x168xbf16> to vector<32x168xbf16>
    %cst = arith.constant dense<0.000000e+00> : vector<224x168xf32>
    %6 = tpu.matmul %3, %5, %cst {dimension_numbers = #tpu.dot_dimension_numbers<[1], [0], [0], [1], [0, 0, 1, 1], [], []>} : vector<224x32xbf16>, vector<32x168xbf16>, vector<224x168xf32> -> vector<224x168xf32>
    %7 = vector.extract_strided_slice %1 {offsets = [1, 0, 0], sizes = [28, 8, 32], strides = [1, 1, 1]} : vector<32x8x32xbf16> to vector<28x8x32xbf16>
    %8 = vector.shape_cast %7 : vector<28x8x32xbf16> to vector<224x32xbf16>
    %c1 = arith.constant 1 : index
    %c0_5 = arith.constant 0 : index
    %c0_6 = arith.constant 0 : index
    %9 = vector.load %arg2[%c1, %c0_5, %c0_6] : memref<5x32x168xbf16, #tpu.memory_space<vmem>>, vector<1x32x168xbf16>
    %10 = vector.shape_cast %9 : vector<1x32x168xbf16> to vector<32x168xbf16>
    %cst_7 = arith.constant dense<0.000000e+00> : vector<224x168xf32>
    %11 = tpu.matmul %8, %10, %cst_7 {dimension_numbers = #tpu.dot_dimension_numbers<[1], [0], [0], [1], [0, 0, 1, 1], [], []>} : vector<224x32xbf16>, vector<32x168xbf16>, vector<224x168xf32> -> vector<224x168xf32>
    %12 = arith.addf %6, %11 : vector<224x168xf32>
    %13 = vector.extract_strided_slice %1 {offsets = [2, 0, 0], sizes = [28, 8, 32], strides = [1, 1, 1]} : vector<32x8x32xbf16> to vector<28x8x32xbf16>
    %14 = vector.shape_cast %13 : vector<28x8x32xbf16> to vector<224x32xbf16>
    %c2 = arith.constant 2 : index
    %c0_8 = arith.constant 0 : index
    %c0_9 = arith.constant 0 : index
    %15 = vector.load %arg2[%c2, %c0_8, %c0_9] : memref<5x32x168xbf16, #tpu.memory_space<vmem>>, vector<1x32x168xbf16>
    %16 = vector.shape_cast %15 : vector<1x32x168xbf16> to vector<32x168xbf16>
    %cst_10 = arith.constant dense<0.000000e+00> : vector<224x168xf32>
    %17 = tpu.matmul %14, %16, %cst_10 {dimension_numbers = #tpu.dot_dimension_numbers<[1], [0], [0], [1], [0, 0, 1, 1], [], []>} : vector<224x32xbf16>, vector<32x168xbf16>, vector<224x168xf32> -> vector<224x168xf32>
    %18 = arith.addf %12, %17 : vector<224x168xf32>
    %19 = vector.extract_strided_slice %1 {offsets = [3, 0, 0], sizes = [28, 8, 32], strides = [1, 1, 1]} : vector<32x8x32xbf16> to vector<28x8x32xbf16>
    %20 = vector.shape_cast %19 : vector<28x8x32xbf16> to vector<224x32xbf16>
    %c3 = arith.constant 3 : index
    %c0_11 = arith.constant 0 : index
    %c0_12 = arith.constant 0 : index
    %21 = vector.load %arg2[%c3, %c0_11, %c0_12] : memref<5x32x168xbf16, #tpu.memory_space<vmem>>, vector<1x32x168xbf16>
    %22 = vector.shape_cast %21 : vector<1x32x168xbf16> to vector<32x168xbf16>
    %cst_13 = arith.constant dense<0.000000e+00> : vector<224x168xf32>
    %23 = tpu.matmul %20, %22, %cst_13 {dimension_numbers = #tpu.dot_dimension_numbers<[1], [0], [0], [1], [0, 0, 1, 1], [], []>} : vector<224x32xbf16>, vector<32x168xbf16>, vector<224x168xf32> -> vector<224x168xf32>
    %24 = arith.addf %18, %23 : vector<224x168xf32>
    %25 = vector.extract_strided_slice %1 {offsets = [4, 0, 0], sizes = [28, 8, 32], strides = [1, 1, 1]} : vector<32x8x32xbf16> to vector<28x8x32xbf16>
    %26 = vector.shape_cast %25 : vector<28x8x32xbf16> to vector<224x32xbf16>
    %c4 = arith.constant 4 : index
    %c0_14 = arith.constant 0 : index
    %c0_15 = arith.constant 0 : index
    %27 = vector.load %arg2[%c4, %c0_14, %c0_15] : memref<5x32x168xbf16, #tpu.memory_space<vmem>>, vector<1x32x168xbf16>
    %28 = vector.shape_cast %27 : vector<1x32x168xbf16> to vector<32x168xbf16>
    %cst_16 = arith.constant dense<0.000000e+00> : vector<224x168xf32>
    %29 = tpu.matmul %26, %28, %cst_16 {dimension_numbers = #tpu.dot_dimension_numbers<[1], [0], [0], [1], [0, 0, 1, 1], [], []>} : vector<224x32xbf16>, vector<32x168xbf16>, vector<224x168xf32> -> vector<224x168xf32>
    %30 = arith.addf %24, %29 : vector<224x168xf32>
    %c0_17 = arith.constant 0 : index
    %c0_18 = arith.constant 0 : index
    %31 = vector.load %arg3[%c0_17, %c0_18] : memref<1x168xf32, #tpu.memory_space<vmem>>, vector<1x168xf32>
    %32 = vector.broadcast %31 : vector<1x168xf32> to vector<224x168xf32>
    %33 = arith.addf %30, %32 : vector<224x168xf32>
    %cst_19 = arith.constant 0.000000e+00 : f32
    %34 = vector.broadcast %cst_19 : f32 to vector<224x168xf32>
    %35 = arith.maximumf %33, %34 : vector<224x168xf32>
    %36 = vector.shape_cast %35 : vector<224x168xf32> to vector<14x2x8x168xf32>
    %37 = vector.extract_strided_slice %36 {offsets = [0, 0, 0, 0], sizes = [14, 1, 8, 168], strides = [1, 1, 1, 1]} : vector<14x2x8x168xf32> to vector<14x1x8x168xf32>
    %38 = vector.shape_cast %37 : vector<14x1x8x168xf32> to vector<14x8x168xf32>
    %39 = vector.extract_strided_slice %36 {offsets = [0, 1, 0, 0], sizes = [14, 1, 8, 168], strides = [1, 1, 1, 1]} : vector<14x2x8x168xf32> to vector<14x1x8x168xf32>
    %40 = vector.shape_cast %39 : vector<14x1x8x168xf32> to vector<14x8x168xf32>
    %41 = arith.maximumf %38, %40 : vector<14x8x168xf32>
    %42 = vector.extract_strided_slice %41 {offsets = [0, 0, 0], sizes = [14, 8, 162], strides = [1, 1, 1]} : vector<14x8x168xf32> to vector<14x8x162xf32>
    %43 = vector.extract_strided_slice %41 {offsets = [0, 0, 6], sizes = [14, 8, 162], strides = [1, 1, 1]} : vector<14x8x168xf32> to vector<14x8x162xf32>
    %44 = arith.maximumf %42, %43 : vector<14x8x162xf32>
    %45 = arith.truncf %44 : vector<14x8x162xf32> to vector<14x8x162xbf16>
    %46 = vector.extract_strided_slice %45 {offsets = [0, 0, 0], sizes = [10, 8, 162], strides = [1, 1, 1]} : vector<14x8x162xbf16> to vector<10x8x162xbf16>
    %47 = vector.shape_cast %46 : vector<10x8x162xbf16> to vector<80x162xbf16>
    %c0_20 = arith.constant 0 : index
    %c0_21 = arith.constant 0 : index
    %c0_22 = arith.constant 0 : index
    %48 = vector.load %arg4[%c0_20, %c0_21, %c0_22] : memref<5x162x160xbf16, #tpu.memory_space<vmem>>, vector<1x162x160xbf16>
    %49 = vector.shape_cast %48 : vector<1x162x160xbf16> to vector<162x160xbf16>
    %cst_23 = arith.constant dense<0.000000e+00> : vector<80x160xf32>
    %50 = tpu.matmul %47, %49, %cst_23 {dimension_numbers = #tpu.dot_dimension_numbers<[1], [0], [0], [1], [0, 0, 1, 1], [], []>} : vector<80x162xbf16>, vector<162x160xbf16>, vector<80x160xf32> -> vector<80x160xf32>
    %51 = vector.extract_strided_slice %45 {offsets = [1, 0, 0], sizes = [10, 8, 162], strides = [1, 1, 1]} : vector<14x8x162xbf16> to vector<10x8x162xbf16>
    %52 = vector.shape_cast %51 : vector<10x8x162xbf16> to vector<80x162xbf16>
    %c1_24 = arith.constant 1 : index
    %c0_25 = arith.constant 0 : index
    %c0_26 = arith.constant 0 : index
    %53 = vector.load %arg4[%c1_24, %c0_25, %c0_26] : memref<5x162x160xbf16, #tpu.memory_space<vmem>>, vector<1x162x160xbf16>
    %54 = vector.shape_cast %53 : vector<1x162x160xbf16> to vector<162x160xbf16>
    %cst_27 = arith.constant dense<0.000000e+00> : vector<80x160xf32>
    %55 = tpu.matmul %52, %54, %cst_27 {dimension_numbers = #tpu.dot_dimension_numbers<[1], [0], [0], [1], [0, 0, 1, 1], [], []>} : vector<80x162xbf16>, vector<162x160xbf16>, vector<80x160xf32> -> vector<80x160xf32>
    %56 = arith.addf %50, %55 : vector<80x160xf32>
    %57 = vector.extract_strided_slice %45 {offsets = [2, 0, 0], sizes = [10, 8, 162], strides = [1, 1, 1]} : vector<14x8x162xbf16> to vector<10x8x162xbf16>
    %58 = vector.shape_cast %57 : vector<10x8x162xbf16> to vector<80x162xbf16>
    %c2_28 = arith.constant 2 : index
    %c0_29 = arith.constant 0 : index
    %c0_30 = arith.constant 0 : index
    %59 = vector.load %arg4[%c2_28, %c0_29, %c0_30] : memref<5x162x160xbf16, #tpu.memory_space<vmem>>, vector<1x162x160xbf16>
    %60 = vector.shape_cast %59 : vector<1x162x160xbf16> to vector<162x160xbf16>
    %cst_31 = arith.constant dense<0.000000e+00> : vector<80x160xf32>
    %61 = tpu.matmul %58, %60, %cst_31 {dimension_numbers = #tpu.dot_dimension_numbers<[1], [0], [0], [1], [0, 0, 1, 1], [], []>} : vector<80x162xbf16>, vector<162x160xbf16>, vector<80x160xf32> -> vector<80x160xf32>
    %62 = arith.addf %56, %61 : vector<80x160xf32>
    %63 = vector.extract_strided_slice %45 {offsets = [3, 0, 0], sizes = [10, 8, 162], strides = [1, 1, 1]} : vector<14x8x162xbf16> to vector<10x8x162xbf16>
    %64 = vector.shape_cast %63 : vector<10x8x162xbf16> to vector<80x162xbf16>
    %c3_32 = arith.constant 3 : index
    %c0_33 = arith.constant 0 : index
    %c0_34 = arith.constant 0 : index
    %65 = vector.load %arg4[%c3_32, %c0_33, %c0_34] : memref<5x162x160xbf16, #tpu.memory_space<vmem>>, vector<1x162x160xbf16>
    %66 = vector.shape_cast %65 : vector<1x162x160xbf16> to vector<162x160xbf16>
    %cst_35 = arith.constant dense<0.000000e+00> : vector<80x160xf32>
    %67 = tpu.matmul %64, %66, %cst_35 {dimension_numbers = #tpu.dot_dimension_numbers<[1], [0], [0], [1], [0, 0, 1, 1], [], []>} : vector<80x162xbf16>, vector<162x160xbf16>, vector<80x160xf32> -> vector<80x160xf32>
    %68 = arith.addf %62, %67 : vector<80x160xf32>
    %69 = vector.extract_strided_slice %45 {offsets = [4, 0, 0], sizes = [10, 8, 162], strides = [1, 1, 1]} : vector<14x8x162xbf16> to vector<10x8x162xbf16>
    %70 = vector.shape_cast %69 : vector<10x8x162xbf16> to vector<80x162xbf16>
    %c4_36 = arith.constant 4 : index
    %c0_37 = arith.constant 0 : index
    %c0_38 = arith.constant 0 : index
    %71 = vector.load %arg4[%c4_36, %c0_37, %c0_38] : memref<5x162x160xbf16, #tpu.memory_space<vmem>>, vector<1x162x160xbf16>
    %72 = vector.shape_cast %71 : vector<1x162x160xbf16> to vector<162x160xbf16>
    %cst_39 = arith.constant dense<0.000000e+00> : vector<80x160xf32>
    %73 = tpu.matmul %70, %72, %cst_39 {dimension_numbers = #tpu.dot_dimension_numbers<[1], [0], [0], [1], [0, 0, 1, 1], [], []>} : vector<80x162xbf16>, vector<162x160xbf16>, vector<80x160xf32> -> vector<80x160xf32>
    %74 = arith.addf %68, %73 : vector<80x160xf32>
    %c0_40 = arith.constant 0 : index
    %c0_41 = arith.constant 0 : index
    %75 = vector.load %arg5[%c0_40, %c0_41] : memref<1x160xf32, #tpu.memory_space<vmem>>, vector<1x160xf32>
    %76 = vector.broadcast %75 : vector<1x160xf32> to vector<80x160xf32>
    %77 = arith.addf %74, %76 : vector<80x160xf32>
    %cst_42 = arith.constant 0.000000e+00 : f32
    %78 = vector.broadcast %cst_42 : f32 to vector<80x160xf32>
    %79 = arith.maximumf %77, %78 : vector<80x160xf32>
    %80 = vector.shape_cast %79 : vector<80x160xf32> to vector<5x2x8x160xf32>
    %81 = vector.extract_strided_slice %80 {offsets = [0, 0, 0, 0], sizes = [5, 1, 8, 160], strides = [1, 1, 1, 1]} : vector<5x2x8x160xf32> to vector<5x1x8x160xf32>
    %82 = vector.shape_cast %81 : vector<5x1x8x160xf32> to vector<5x8x160xf32>
    %83 = vector.extract_strided_slice %80 {offsets = [0, 1, 0, 0], sizes = [5, 1, 8, 160], strides = [1, 1, 1, 1]} : vector<5x2x8x160xf32> to vector<5x1x8x160xf32>
    %84 = vector.shape_cast %83 : vector<5x1x8x160xf32> to vector<5x8x160xf32>
    %85 = arith.maximumf %82, %84 : vector<5x8x160xf32>
    %86 = vector.extract_strided_slice %85 {offsets = [0, 0, 0], sizes = [5, 8, 144], strides = [1, 1, 1]} : vector<5x8x160xf32> to vector<5x8x144xf32>
    %87 = vector.extract_strided_slice %85 {offsets = [0, 0, 16], sizes = [5, 8, 144], strides = [1, 1, 1]} : vector<5x8x160xf32> to vector<5x8x144xf32>
    %88 = arith.maximumf %86, %87 : vector<5x8x144xf32>
    %89 = arith.truncf %88 : vector<5x8x144xf32> to vector<5x8x144xbf16>
    %90 = vector.extract_strided_slice %89 {offsets = [0, 0, 0], sizes = [1, 8, 144], strides = [1, 1, 1]} : vector<5x8x144xbf16> to vector<1x8x144xbf16>
    %91 = vector.shape_cast %90 : vector<1x8x144xbf16> to vector<8x144xbf16>
    %c0_43 = arith.constant 0 : index
    %c0_44 = arith.constant 0 : index
    %c0_45 = arith.constant 0 : index
    %92 = vector.load %arg6[%c0_43, %c0_44, %c0_45] : memref<5x144x128xbf16, #tpu.memory_space<vmem>>, vector<1x144x128xbf16>
    %93 = vector.shape_cast %92 : vector<1x144x128xbf16> to vector<144x128xbf16>
    %cst_46 = arith.constant dense<0.000000e+00> : vector<8x128xf32>
    %94 = tpu.matmul %91, %93, %cst_46 {dimension_numbers = #tpu.dot_dimension_numbers<[1], [0], [0], [1], [0, 0, 1, 1], [], []>} : vector<8x144xbf16>, vector<144x128xbf16>, vector<8x128xf32> -> vector<8x128xf32>
    %95 = vector.extract_strided_slice %89 {offsets = [1, 0, 0], sizes = [1, 8, 144], strides = [1, 1, 1]} : vector<5x8x144xbf16> to vector<1x8x144xbf16>
    %96 = vector.shape_cast %95 : vector<1x8x144xbf16> to vector<8x144xbf16>
    %c1_47 = arith.constant 1 : index
    %c0_48 = arith.constant 0 : index
    %c0_49 = arith.constant 0 : index
    %97 = vector.load %arg6[%c1_47, %c0_48, %c0_49] : memref<5x144x128xbf16, #tpu.memory_space<vmem>>, vector<1x144x128xbf16>
    %98 = vector.shape_cast %97 : vector<1x144x128xbf16> to vector<144x128xbf16>
    %cst_50 = arith.constant dense<0.000000e+00> : vector<8x128xf32>
    %99 = tpu.matmul %96, %98, %cst_50 {dimension_numbers = #tpu.dot_dimension_numbers<[1], [0], [0], [1], [0, 0, 1, 1], [], []>} : vector<8x144xbf16>, vector<144x128xbf16>, vector<8x128xf32> -> vector<8x128xf32>
    %100 = arith.addf %94, %99 : vector<8x128xf32>
    %101 = vector.extract_strided_slice %89 {offsets = [2, 0, 0], sizes = [1, 8, 144], strides = [1, 1, 1]} : vector<5x8x144xbf16> to vector<1x8x144xbf16>
    %102 = vector.shape_cast %101 : vector<1x8x144xbf16> to vector<8x144xbf16>
    %c2_51 = arith.constant 2 : index
    %c0_52 = arith.constant 0 : index
    %c0_53 = arith.constant 0 : index
    %103 = vector.load %arg6[%c2_51, %c0_52, %c0_53] : memref<5x144x128xbf16, #tpu.memory_space<vmem>>, vector<1x144x128xbf16>
    %104 = vector.shape_cast %103 : vector<1x144x128xbf16> to vector<144x128xbf16>
    %cst_54 = arith.constant dense<0.000000e+00> : vector<8x128xf32>
    %105 = tpu.matmul %102, %104, %cst_54 {dimension_numbers = #tpu.dot_dimension_numbers<[1], [0], [0], [1], [0, 0, 1, 1], [], []>} : vector<8x144xbf16>, vector<144x128xbf16>, vector<8x128xf32> -> vector<8x128xf32>
    %106 = arith.addf %100, %105 : vector<8x128xf32>
    %107 = vector.extract_strided_slice %89 {offsets = [3, 0, 0], sizes = [1, 8, 144], strides = [1, 1, 1]} : vector<5x8x144xbf16> to vector<1x8x144xbf16>
    %108 = vector.shape_cast %107 : vector<1x8x144xbf16> to vector<8x144xbf16>
    %c3_55 = arith.constant 3 : index
    %c0_56 = arith.constant 0 : index
    %c0_57 = arith.constant 0 : index
    %109 = vector.load %arg6[%c3_55, %c0_56, %c0_57] : memref<5x144x128xbf16, #tpu.memory_space<vmem>>, vector<1x144x128xbf16>
    %110 = vector.shape_cast %109 : vector<1x144x128xbf16> to vector<144x128xbf16>
    %cst_58 = arith.constant dense<0.000000e+00> : vector<8x128xf32>
    %111 = tpu.matmul %108, %110, %cst_58 {dimension_numbers = #tpu.dot_dimension_numbers<[1], [0], [0], [1], [0, 0, 1, 1], [], []>} : vector<8x144xbf16>, vector<144x128xbf16>, vector<8x128xf32> -> vector<8x128xf32>
    %112 = arith.addf %106, %111 : vector<8x128xf32>
    %113 = vector.extract_strided_slice %89 {offsets = [4, 0, 0], sizes = [1, 8, 144], strides = [1, 1, 1]} : vector<5x8x144xbf16> to vector<1x8x144xbf16>
    %114 = vector.shape_cast %113 : vector<1x8x144xbf16> to vector<8x144xbf16>
    %c4_59 = arith.constant 4 : index
    %c0_60 = arith.constant 0 : index
    %c0_61 = arith.constant 0 : index
    %115 = vector.load %arg6[%c4_59, %c0_60, %c0_61] : memref<5x144x128xbf16, #tpu.memory_space<vmem>>, vector<1x144x128xbf16>
    %116 = vector.shape_cast %115 : vector<1x144x128xbf16> to vector<144x128xbf16>
    %cst_62 = arith.constant dense<0.000000e+00> : vector<8x128xf32>
    %117 = tpu.matmul %114, %116, %cst_62 {dimension_numbers = #tpu.dot_dimension_numbers<[1], [0], [0], [1], [0, 0, 1, 1], [], []>} : vector<8x144xbf16>, vector<144x128xbf16>, vector<8x128xf32> -> vector<8x128xf32>
    %118 = arith.addf %112, %117 : vector<8x128xf32>
    %c0_63 = arith.constant 0 : index
    %c0_64 = arith.constant 0 : index
    %119 = vector.load %arg7[%c0_63, %c0_64] : memref<1x128xf32, #tpu.memory_space<vmem>>, vector<1x128xf32>
    %120 = vector.broadcast %119 : vector<1x128xf32> to vector<8x128xf32>
    %121 = arith.addf %118, %120 : vector<8x128xf32>
    %cst_65 = arith.constant 0.000000e+00 : f32
    %122 = vector.broadcast %cst_65 : f32 to vector<8x128xf32>
    %123 = arith.maximumf %121, %122 : vector<8x128xf32>
    %124 = arith.truncf %123 : vector<8x128xf32> to vector<8x128xbf16>
    %c0_66 = arith.constant 0 : index
    %c0_67 = arith.constant 0 : index
    %125 = vector.load %arg8[%c0_66, %c0_67] : memref<128x128xbf16, #tpu.memory_space<vmem>>, vector<128x128xbf16>
    %cst_68 = arith.constant dense<0.000000e+00> : vector<8x128xf32>
    %126 = tpu.matmul %124, %125, %cst_68 {dimension_numbers = #tpu.dot_dimension_numbers<[1], [0], [0], [1], [0, 0, 1, 1], [], []>} : vector<8x128xbf16>, vector<128x128xbf16>, vector<8x128xf32> -> vector<8x128xf32>
    %c0_69 = arith.constant 0 : index
    %c0_70 = arith.constant 0 : index
    %127 = vector.load %arg9[%c0_69, %c0_70] : memref<1x128xf32, #tpu.memory_space<vmem>>, vector<1x128xf32>
    %128 = vector.broadcast %127 : vector<1x128xf32> to vector<8x128xf32>
    %129 = arith.addf %126, %128 : vector<8x128xf32>
    %cst_71 = arith.constant 0.000000e+00 : f32
    %130 = vector.broadcast %cst_71 : f32 to vector<8x128xf32>
    %131 = arith.maximumf %129, %130 : vector<8x128xf32>
    %132 = arith.truncf %131 : vector<8x128xf32> to vector<8x128xbf16>
    %c0_72 = arith.constant 0 : index
    %c0_73 = arith.constant 0 : index
    %133 = vector.load %arg10[%c0_72, %c0_73] : memref<128x128xbf16, #tpu.memory_space<vmem>>, vector<128x128xbf16>
    %cst_74 = arith.constant dense<0.000000e+00> : vector<8x128xf32>
    %134 = tpu.matmul %132, %133, %cst_74 {dimension_numbers = #tpu.dot_dimension_numbers<[1], [0], [0], [1], [0, 0, 1, 1], [], []>} : vector<8x128xbf16>, vector<128x128xbf16>, vector<8x128xf32> -> vector<8x128xf32>
    %c0_75 = arith.constant 0 : index
    %c0_76 = arith.constant 0 : index
    %135 = vector.load %arg11[%c0_75, %c0_76] : memref<1x128xf32, #tpu.memory_space<vmem>>, vector<1x128xf32>
    %136 = vector.broadcast %135 : vector<1x128xf32> to vector<8x128xf32>
    %137 = arith.addf %134, %136 : vector<8x128xf32>
    %c0_77 = arith.constant 0 : index
    %c0_78 = arith.constant 0 : index
    %138 = vector.load %arg12[%c0_77, %c0_78] : memref<8x128xf32, #tpu.memory_space<vmem>>, vector<8x128xf32>
    tpu.vector_store %arg12[%c0_77, %c0_78], %137 {strides = array<i32>} : memref<8x128xf32, #tpu.memory_space<vmem>>, vector<8x128xf32>,
    return
  }
  func.func @transform_0(%arg0: i32) -> (i32, i32, i32) {
    %c0_i32 = arith.constant 0 : i32
    %c0_i32_0 = arith.constant 0 : i32
    %c0_i32_1 = arith.constant 0 : i32
    return %c0_i32, %arg0, %c0_i32_0 : i32, i32, i32
  }
  func.func @transform_1(%arg0: i32) -> (i32, i32, i32) {
    %c0_i32 = arith.constant 0 : i32
    %c0_i32_0 = arith.constant 0 : i32
    %c0_i32_1 = arith.constant 0 : i32
    %c0_i32_2 = arith.constant 0 : i32
    return %c0_i32, %c0_i32_0, %c0_i32_1 : i32, i32, i32
  }
  func.func @transform_2(%arg0: i32) -> (i32, i32) {
    %c0_i32 = arith.constant 0 : i32
    %c0_i32_0 = arith.constant 0 : i32
    %c0_i32_1 = arith.constant 0 : i32
    return %c0_i32, %c0_i32_0 : i32, i32
  }
  func.func @transform_3(%arg0: i32) -> (i32, i32, i32) {
    %c0_i32 = arith.constant 0 : i32
    %c0_i32_0 = arith.constant 0 : i32
    %c0_i32_1 = arith.constant 0 : i32
    %c0_i32_2 = arith.constant 0 : i32
    return %c0_i32, %c0_i32_0, %c0_i32_1 : i32, i32, i32
  }
  func.func @transform_4(%arg0: i32) -> (i32, i32) {
    %c0_i32 = arith.constant 0 : i32
    %c0_i32_0 = arith.constant 0 : i32
    %c0_i32_1 = arith.constant 0 : i32
    return %c0_i32, %c0_i32_0 : i32, i32
  }
  func.func @transform_5(%arg0: i32) -> (i32, i32, i32) {
    %c0_i32 = arith.constant 0 : i32
    %c0_i32_0 = arith.constant 0 : i32
    %c0_i32_1 = arith.constant 0 : i32
    %c0_i32_2 = arith.constant 0 : i32
    return %c0_i32, %c0_i32_0, %c0_i32_1 : i32, i32, i32
  }
  func.func @transform_6(%arg0: i32) -> (i32, i32) {
    %c0_i32 = arith.constant 0 : i32
    %c0_i32_0 = arith.constant 0 : i32
    %c0_i32_1 = arith.constant 0 : i32
    return %c0_i32, %c0_i32_0 : i32, i32
  }
  func.func @transform_7(%arg0: i32) -> (i32, i32) {
    %c0_i32 = arith.constant 0 : i32
    %c0_i32_0 = arith.constant 0 : i32
    %c0_i32_1 = arith.constant 0 : i32
    return %c0_i32, %c0_i32_0 : i32, i32
  }
  func.func @transform_8(%arg0: i32) -> (i32, i32) {
    %c0_i32 = arith.constant 0 : i32
    %c0_i32_0 = arith.constant 0 : i32
    %c0_i32_1 = arith.constant 0 : i32
    return %c0_i32, %c0_i32_0 : i32, i32
  }
  func.func @transform_9(%arg0: i32) -> (i32, i32) {
    %c0_i32 = arith.constant 0 : i32
    %c0_i32_0 = arith.constant 0 : i32
    %c0_i32_1 = arith.constant 0 : i32
    return %c0_i32, %c0_i32_0 : i32, i32
  }
  func.func @transform_10(%arg0: i32) -> (i32, i32) {
    %c0_i32 = arith.constant 0 : i32
    %c0_i32_0 = arith.constant 0 : i32
    %c0_i32_1 = arith.constant 0 : i32
    return %c0_i32, %c0_i32_0 : i32, i32
  }
  func.func @transform_11(%arg0: i32) -> (i32, i32) {
    %c0_i32 = arith.constant 0 : i32
    %c0_i32_0 = arith.constant 0 : i32
    return %arg0, %c0_i32 : i32, i32
  }
}

</mosaic_0001>

<llo_original>
// kernel: lenet_forward.1
$region0: #{lenet_forward.1}
  #allocation0 [shape = 'u32[]', space=smem, size = 0x4, offset = 0x4, fixed_abs, tag = 'smem constant byte address 0x4 - core index']
  #allocation1 [shape = 'u32[144,128]{1,0:T(1,128)}', space=vmem, size = 0x12000, scoped, tag = 'internal scratch']
  %s0 = inlined_call_operand.vmem [shape: f32[32,8,32], index: 0, kind: input, shape index: {}]
  %s1 = inlined_call_operand.vmem [shape: bf16[5,32,168], index: 1, kind: input, shape index: {}]
  %s2 = inlined_call_operand.vmem [shape: f32[1,168], index: 2, kind: input, shape index: {}]
  %s3 = inlined_call_operand.vmem [shape: bf16[5,162,160], index: 3, kind: input, shape index: {}]
  %s4 = inlined_call_operand.vmem [shape: f32[1,160], index: 4, kind: input, shape index: {}]
  %s5 = inlined_call_operand.vmem [shape: bf16[5,144,128], index: 5, kind: input, shape index: {}]
  %s6 = inlined_call_operand.vmem [shape: f32[1,128], index: 6, kind: input, shape index: {}]
  %s7 = inlined_call_operand.vmem [shape: bf16[128,128], index: 7, kind: input, shape index: {}]
  %s8 = inlined_call_operand.vmem [shape: f32[1,128], index: 8, kind: input, shape index: {}]
  %s9 = inlined_call_operand.vmem [shape: bf16[128,128], index: 9, kind: input, shape index: {}]
  %s10 = inlined_call_operand.vmem [shape: f32[1,128], index: 10, kind: input, shape index: {}]
  %s11 = inlined_call_operand.vmem [shape: f32[8,128], index: 11, kind: output, shape index: {}]
  %s12 = sld [smem:[#allocation0]]
  $region54: #{lenet_forward.1} parent=0
    _
  %s14 = ssub.s32 1, %s12
  %s15 = scalar_select 0, %s14, %s12
  // Predicated region
  $region2: #{lenet_forward.1} parent=0 // pred_check
    _
  $region3: #{lenet_forward.1} parent=0 // pred_check_branch
    %17 = sbr.rel (0) target = $region5
  $region4: #{lenet_forward.1} parent=0 // pred_region
    _
  $region5: #{lenet_forward.1} parent=0 // pred_fallthru
    _
  // Predicated region
  $region6: #{lenet_forward.1} parent=0 // pred_check
    _
  $region7: #{lenet_forward.1} parent=0 // pred_check_branch
    %19 = sbr.rel (0) target = $region9
  $region8: #{lenet_forward.1} parent=0 // pred_region
    _
  $region9: #{lenet_forward.1} parent=0 // pred_fallthru
    _
  // Predicated region
  $region10: #{lenet_forward.1} parent=0 // pred_check
    _
  $region11: #{lenet_forward.1} parent=0 // pred_check_branch
    %21 = sbr.rel (0) target = $region13
  $region12: #{lenet_forward.1} parent=0 // pred_region
    _
  $region13: #{lenet_forward.1} parent=0 // pred_fallthru
    _
  // Predicated region
  $region14: #{lenet_forward.1} parent=0 // pred_check
    _
  $region15: #{lenet_forward.1} parent=0 // pred_check_branch
    %23 = sbr.rel (0) target = $region17
  $region16: #{lenet_forward.1} parent=0 // pred_region
    _
  $region17: #{lenet_forward.1} parent=0 // pred_fallthru
    _
  // Predicated region
  $region18: #{lenet_forward.1} parent=0 // pred_check
    _
  $region19: #{lenet_forward.1} parent=0 // pred_check_branch
    %25 = sbr.rel (0) target = $region21
  $region20: #{lenet_forward.1} parent=0 // pred_region
    _
  $region21: #{lenet_forward.1} parent=0 // pred_fallthru
    _
  // Predicated region
  $region22: #{lenet_forward.1} parent=0 // pred_check
    _
  $region23: #{lenet_forward.1} parent=0 // pred_check_branch
    %27 = sbr.rel (0) target = $region25
  $region24: #{lenet_forward.1} parent=0 // pred_region
    _
  $region25: #{lenet_forward.1} parent=0 // pred_fallthru
    _
  // Predicated region
  $region26: #{lenet_forward.1} parent=0 // pred_check
    _
  $region27: #{lenet_forward.1} parent=0 // pred_check_branch
    %29 = sbr.rel (0) target = $region29
  $region28: #{lenet_forward.1} parent=0 // pred_region
    _
  $region29: #{lenet_forward.1} parent=0 // pred_fallthru
    _
  // Predicated region
  $region30: #{lenet_forward.1} parent=0 // pred_check
    _
  $region31: #{lenet_forward.1} parent=0 // pred_check_branch
    %31 = sbr.rel (0) target = $region33
  $region32: #{lenet_forward.1} parent=0 // pred_region
    _
  $region33: #{lenet_forward.1} parent=0 // pred_fallthru
    _
  // Predicated region
  $region34: #{lenet_forward.1} parent=0 // pred_check
    _
  $region35: #{lenet_forward.1} parent=0 // pred_check_branch
    %33 = sbr.rel (0) target = $region37
  $region36: #{lenet_forward.1} parent=0 // pred_region
    _
  $region37: #{lenet_forward.1} parent=0 // pred_fallthru
    _
  // Predicated region
  $region38: #{lenet_forward.1} parent=0 // pred_check
    _
  $region39: #{lenet_forward.1} parent=0 // pred_check_branch
    %35 = sbr.rel (0) target = $region41
  $region40: #{lenet_forward.1} parent=0 // pred_region
    _
  $region41: #{lenet_forward.1} parent=0 // pred_fallthru
    _
  // Predicated region
  $region42: #{lenet_forward.1} parent=0 // pred_check
    _
  $region43: #{lenet_forward.1} parent=0 // pred_check_branch
    %37 = sbr.rel (0) target = $region45
  $region44: #{lenet_forward.1} parent=0 // pred_region
    _
  $region45: #{lenet_forward.1} parent=0 // pred_fallthru
    _
  %v39 = vld [vmem:[%s0] sm:$0xff]
  %v40 = vld [vmem:[%s0 + $0x8] sm:$0xff]
  %v41 = vld [vmem:[%s0 + $0x10] sm:$0xff]
  %v42 = vld [vmem:[%s0 + $0x18] sm:$0xff]
  %v43 = vld [vmem:[%s0 + $0x20] sm:$0xff]
  %v44 = vld [vmem:[%s0 + $0x28] sm:$0xff]
  %v45 = vld [vmem:[%s0 + $0x30] sm:$0xff]
  %v46 = vld [vmem:[%s0 + $0x38] sm:$0xff]
  %v47 = vld [vmem:[%s0 + $0x40] sm:$0xff]
  %v48 = vld [vmem:[%s0 + $0x48] sm:$0xff]
  %v49 = vld [vmem:[%s0 + $0x50] sm:$0xff]
  %v50 = vld [vmem:[%s0 + $0x58] sm:$0xff]
  %v51 = vld [vmem:[%s0 + $0x60] sm:$0xff]
  %v52 = vld [vmem:[%s0 + $0x68] sm:$0xff]
  %v53 = vld [vmem:[%s0 + $0x70] sm:$0xff]
  %v54 = vld [vmem:[%s0 + $0x78] sm:$0xff]
  %v55 = vld [vmem:[%s0 + $0x80] sm:$0xff]
  %v56 = vld [vmem:[%s0 + $0x88] sm:$0xff]
  %v57 = vld [vmem:[%s0 + $0x90] sm:$0xff]
  %v58 = vld [vmem:[%s0 + $0x98] sm:$0xff]
  %v59 = vld [vmem:[%s0 + $0xa0] sm:$0xff]
  %v60 = vld [vmem:[%s0 + $0xa8] sm:$0xff]
  %v61 = vld [vmem:[%s0 + $0xb0] sm:$0xff]
  %v62 = vld [vmem:[%s0 + $0xb8] sm:$0xff]
  %v63 = vld [vmem:[%s0 + $0xc0] sm:$0xff]
  %v64 = vld [vmem:[%s0 + $0xc8] sm:$0xff]
  %v65 = vld [vmem:[%s0 + $0xd0] sm:$0xff]
  %v66 = vld [vmem:[%s0 + $0xd8] sm:$0xff]
  %v67 = vld [vmem:[%s0 + $0xe0] sm:$0xff]
  %v68 = vld [vmem:[%s0 + $0xe8] sm:$0xff]
  %v69 = vld [vmem:[%s0 + $0xf0] sm:$0xff]
  %v70 = vld [vmem:[%s0 + $0xf8] sm:$0xff]
  %v71 = vpack.c.bf16 %v39, %v39
  %v72 = vpack.c.bf16 %v40, %v40
  %v73 = vpack.c.bf16 %v41, %v41
  %v74 = vpack.c.bf16 %v42, %v42
  %v75 = vpack.c.bf16 %v43, %v43
  %v76 = vpack.c.bf16 %v44, %v44
  %v77 = vpack.c.bf16 %v45, %v45
  %v78 = vpack.c.bf16 %v46, %v46
  %v79 = vpack.c.bf16 %v47, %v47
  %v80 = vpack.c.bf16 %v48, %v48
  %v81 = vpack.c.bf16 %v49, %v49
  %v82 = vpack.c.bf16 %v50, %v50
  %v83 = vpack.c.bf16 %v51, %v51
  %v84 = vpack.c.bf16 %v52, %v52
  %v85 = vpack.c.bf16 %v53, %v53
  %v86 = vpack.c.bf16 %v54, %v54
  %v87 = vpack.c.bf16 %v55, %v55
  %v88 = vpack.c.bf16 %v56, %v56
  %v89 = vpack.c.bf16 %v57, %v57
  %v90 = vpack.c.bf16 %v58, %v58
  %v91 = vpack.c.bf16 %v59, %v59
  %v92 = vpack.c.bf16 %v60, %v60
  %v93 = vpack.c.bf16 %v61, %v61
  %v94 = vpack.c.bf16 %v62, %v62
  %v95 = vpack.c.bf16 %v63, %v63
  %v96 = vpack.c.bf16 %v64, %v64
  %v97 = vpack.c.bf16 %v65, %v65
  %v98 = vpack.c.bf16 %v66, %v66
  %v99 = vpack.c.bf16 %v67, %v67
  %v100 = vpack.c.bf16 %v68, %v68
  %v101 = vpack.c.bf16 %v69, %v69
  %v102 = vpack.c.bf16 %v70, %v70
  %v103 = vld [vmem:[%s1] sm:$0xff]
  %v104 = vld [vmem:[%s1 + $0x8] sm:$0xff]
  %v105 = vld [vmem:[%s1 + $0x10] sm:$0xff]
  %v106 = vld [vmem:[%s1 + $0x18] sm:$0xff]
  %s107 = scalar_lea.vmem %s1, 32
  %v108 = vld [vmem:[%s107] sm:$0xff]
  %v109 = vld [vmem:[%s107 + $0x8] sm:$0xff]
  %v110 = vld [vmem:[%s107 + $0x10] sm:$0xff]
  %v111 = vld [vmem:[%s107 + $0x18] sm:$0xff]
  %v140 = vunpack.c.l.b16 %v72
  %v141 = vunpack.c.l.b16 %v73
  %v142 = vunpack.c.l.b16 %v74
  %v143 = vunpack.c.l.b16 %v75
  %v144 = vunpack.c.l.b16 %v76
  %v145 = vunpack.c.l.b16 %v77
  %v146 = vunpack.c.l.b16 %v78
  %v147 = vunpack.c.l.b16 %v79
  %v148 = vunpack.c.l.b16 %v80
  %v149 = vunpack.c.l.b16 %v81
  %v150 = vunpack.c.l.b16 %v82
  %v151 = vunpack.c.l.b16 %v83
  %v152 = vunpack.c.l.b16 %v84
  %v153 = vunpack.c.l.b16 %v85
  %v154 = vunpack.c.l.b16 %v86
  %v155 = vunpack.c.l.b16 %v87
  %v156 = vunpack.c.l.b16 %v88
  %v157 = vunpack.c.l.b16 %v89
  %v158 = vunpack.c.l.b16 %v90
  %v159 = vunpack.c.l.b16 %v91
  %v160 = vunpack.c.l.b16 %v92
  %v161 = vunpack.c.l.b16 %v93
  %v162 = vunpack.c.l.b16 %v94
  %v163 = vunpack.c.l.b16 %v95
  %v164 = vunpack.c.l.b16 %v96
  %v165 = vunpack.c.l.b16 %v97
  %v166 = vunpack.c.l.b16 %v98
  %v167 = vunpack.c.l.b16 %v99
  %v168 = vpack.c.b16 %v141, %v140
  %v169 = vpack.c.b16 %v143, %v142
  %v170 = vpack.c.b16 %v145, %v144
  %v171 = vpack.c.b16 %v147, %v146
  %v172 = vpack.c.b16 %v149, %v148
  %v173 = vpack.c.b16 %v151, %v150
  %v174 = vpack.c.b16 %v153, %v152
  %v175 = vpack.c.b16 %v155, %v154
  %v176 = vpack.c.b16 %v157, %v156
  %v177 = vpack.c.b16 %v159, %v158
  %v178 = vpack.c.b16 %v161, %v160
  %v179 = vpack.c.b16 %v163, %v162
  %v180 = vpack.c.b16 %v165, %v164
  %v181 = vpack.c.b16 %v167, %v166
  %v186 = vunpack.c.l.b16 %v108
  %v187 = vunpack.c.h.b16 %v108
  %v188 = vunpack.c.l.b16 %v109
  %v189 = vunpack.c.h.b16 %v109
  %v190 = vunpack.c.l.b16 %v110
  %v191 = vunpack.c.h.b16 %v110
  %v192 = vunpack.c.l.b16 %v111
  %v193 = vunpack.c.h.b16 %v111
  %v194 = vpack.c.b16 %v188, %v186
  %v195 = vpack.c.b16 %v189, %v187
  %v196 = vpack.c.b16 %v192, %v190
  %v197 = vpack.c.b16 %v193, %v191
  %vm202 = vcmask 261120
  %v204 = vsel %vm202, %v168, 0
  %v207 = vsel %vm202, %v169, 0
  %v210 = vsel %vm202, %v170, 0
  %v213 = vsel %vm202, %v171, 0
  %v216 = vsel %vm202, %v172, 0
  %v219 = vsel %vm202, %v173, 0
  %v222 = vsel %vm202, %v174, 0
  %v225 = vsel %vm202, %v175, 0
  %v228 = vsel %vm202, %v176, 0
  %v231 = vsel %vm202, %v177, 0
  %v234 = vsel %vm202, %v178, 0
  %v237 = vsel %vm202, %v179, 0
  %v240 = vsel %vm202, %v180, 0
  %v243 = vsel %vm202, %v181, 0
  %245 = vmatprep.subr.bf16.mxu0 %v195
  %246 = vmatpush1.bf16.msra.mxu0 %v194
  %247 = vmatprep.subr.bf16.mxu0 %v197
  %248 = vmatpush1.bf16.msra.mxu0 %v196
  %249 = vmatprep.subr.bf16.mxu0 0
  %250 = vmatpush1.bf16.msra.mxu0 0
  %251 = vmatprep.subr.bf16.mxu0 0
  %252 = vmatpush1.bf16.msra.mxu0 0
  %253 = vmatprep.subr.bf16.mxu0 0
  %254 = vmatpush1.bf16.msra.mxu0 0
  %255 = vmatprep.subr.bf16.mxu0 0
  %256 = vmatpush1.bf16.msra.mxu0 0
  %257 = vmatprep.subr.bf16.mxu0 0
  %258 = vmatpush1.bf16.msra.mxu0 0
  %259 = vmatprep.subr.bf16.mxu0 0
  %260 = vmatpush1.bf16.msra.mxu0 0
  %261 = vmatprep.subr.bf16.mxu0 0
  %262 = vmatpush1.bf16.msra.mxu0 0
  %263 = vmatprep.subr.bf16.mxu0 0
  %264 = vmatpush1.bf16.msra.mxu0 0
  %265 = vmatprep.subr.bf16.mxu0 0
  %266 = vmatpush1.bf16.msra.mxu0 0
  %267 = vmatprep.subr.bf16.mxu0 0
  %268 = vmatpush1.bf16.msra.mxu0 0
  %269 = vmatprep.subr.bf16.mxu0 0
  %270 = vmatpush1.bf16.msra.mxu0 0
  %271 = vmatprep.subr.bf16.mxu0 0
  %272 = vmatpush1.bf16.msra.mxu0 0
  %273 = vmatprep.subr.bf16.mxu0 0
  %274 = vmatpush1.bf16.msra.mxu0 0
  %275 = vmatprep.subr.bf16.mxu0 0
  %276 = vmatpush1.bf16.msra.mxu0 0
  %277 = vmatprep.mubr.bf16.mxu0 0
  %278 = vmatmul.mubr.bf16.gmra.mrb[0].mxu0 %v204
  %v279 = vpop.f32.mrb[0].mxu0
  %v280 = vadd.f32 0.0, %v279
  %v281 = vpop.f32.mrb[0].mxu0
  %v282 = vadd.f32 0.0, %v281
  %v283 = vpop.f32.mrb[0].mxu0
  %v284 = vadd.f32 0.0, %v283
  %v285 = vpop.f32.mrb[0].mxu0
  %v286 = vadd.f32 0.0, %v285
  %287 = vmatprep.mubr.bf16.mxu0 0
  %288 = vmatmul.mubr.bf16.gmra.mrb[0].mxu0 %v207
  %v289 = vpop.f32.mrb[0].mxu0
  %v290 = vadd.f32 0.0, %v289
  %v291 = vpop.f32.mrb[0].mxu0
  %v292 = vadd.f32 0.0, %v291
  %v293 = vpop.f32.mrb[0].mxu0
  %v294 = vadd.f32 0.0, %v293
  %v295 = vpop.f32.mrb[0].mxu0
  %v296 = vadd.f32 0.0, %v295
  %297 = vmatprep.mubr.bf16.mxu0 0
  %298 = vmatmul.mubr.bf16.gmra.mrb[0].mxu0 %v210
  %v299 = vpop.f32.mrb[0].mxu0
  %v300 = vadd.f32 0.0, %v299
  %v301 = vpop.f32.mrb[0].mxu0
  %v302 = vadd.f32 0.0, %v301
  %v303 = vpop.f32.mrb[0].mxu0
  %v304 = vadd.f32 0.0, %v303
  %v305 = vpop.f32.mrb[0].mxu0
  %v306 = vadd.f32 0.0, %v305
  %307 = vmatprep.mubr.bf16.mxu0 0
  %308 = vmatmul.mubr.bf16.gmra.mrb[0].mxu0 %v213
  %v309 = vpop.f32.mrb[0].mxu0
  %v310 = vadd.f32 0.0, %v309
  %v311 = vpop.f32.mrb[0].mxu0
  %v312 = vadd.f32 0.0, %v311
  %v313 = vpop.f32.mrb[0].mxu0
  %v314 = vadd.f32 0.0, %v313
  %v315 = vpop.f32.mrb[0].mxu0
  %v316 = vadd.f32 0.0, %v315
  %317 = vmatprep.mubr.bf16.mxu0 0
  %318 = vmatmul.mubr.bf16.gmra.mrb[0].mxu0 %v216
  %v319 = vpop.f32.mrb[0].mxu0
  %v320 = vadd.f32 0.0, %v319
  %v321 = vpop.f32.mrb[0].mxu0
  %v322 = vadd.f32 0.0, %v321
  %v323 = vpop.f32.mrb[0].mxu0
  %v324 = vadd.f32 0.0, %v323
  %v325 = vpop.f32.mrb[0].mxu0
  %v326 = vadd.f32 0.0, %v325
  %327 = vmatprep.mubr.bf16.mxu0 0
  %328 = vmatmul.mubr.bf16.gmra.mrb[0].mxu0 %v219
  %v329 = vpop.f32.mrb[0].mxu0
  %v330 = vadd.f32 0.0, %v329
  %v331 = vpop.f32.mrb[0].mxu0
  %v332 = vadd.f32 0.0, %v331
  %v333 = vpop.f32.mrb[0].mxu0
  %v334 = vadd.f32 0.0, %v333
  %v335 = vpop.f32.mrb[0].mxu0
  %v336 = vadd.f32 0.0, %v335
  %337 = vmatprep.mubr.bf16.mxu0 0
  %338 = vmatmul.mubr.bf16.gmra.mrb[0].mxu0 %v222
  %v339 = vpop.f32.mrb[0].mxu0
  %v340 = vadd.f32 0.0, %v339
  %v341 = vpop.f32.mrb[0].mxu0
  %v342 = vadd.f32 0.0, %v341
  %v343 = vpop.f32.mrb[0].mxu0
  %v344 = vadd.f32 0.0, %v343
  %v345 = vpop.f32.mrb[0].mxu0
  %v346 = vadd.f32 0.0, %v345
  %347 = vmatprep.mubr.bf16.mxu0 0
  %348 = vmatmul.mubr.bf16.gmra.mrb[0].mxu0 %v225
  %v349 = vpop.f32.mrb[0].mxu0
  %v350 = vadd.f32 0.0, %v349
  %v351 = vpop.f32.mrb[0].mxu0
  %v352 = vadd.f32 0.0, %v351
  %v353 = vpop.f32.mrb[0].mxu0
  %v354 = vadd.f32 0.0, %v353
  %v355 = vpop.f32.mrb[0].mxu0
  %v356 = vadd.f32 0.0, %v355
  %357 = vmatprep.mubr.bf16.mxu0 0
  %358 = vmatmul.mubr.bf16.gmra.mrb[0].mxu0 %v228
  %v359 = vpop.f32.mrb[0].mxu0
  %v360 = vadd.f32 0.0, %v359
  %v361 = vpop.f32.mrb[0].mxu0
  %v362 = vadd.f32 0.0, %v361
  %v363 = vpop.f32.mrb[0].mxu0
  %v364 = vadd.f32 0.0, %v363
  %v365 = vpop.f32.mrb[0].mxu0
  %v366 = vadd.f32 0.0, %v365
  %367 = vmatprep.mubr.bf16.mxu0 0
  %368 = vmatmul.mubr.bf16.gmra.mrb[0].mxu0 %v231
  %v369 = vpop.f32.mrb[0].mxu0
  %v370 = vadd.f32 0.0, %v369
  %v371 = vpop.f32.mrb[0].mxu0
  %v372 = vadd.f32 0.0, %v371
  %v373 = vpop.f32.mrb[0].mxu0
  %v374 = vadd.f32 0.0, %v373
  %v375 = vpop.f32.mrb[0].mxu0
  %v376 = vadd.f32 0.0, %v375
  %377 = vmatprep.mubr.bf16.mxu0 0
  %378 = vmatmul.mubr.bf16.gmra.mrb[0].mxu0 %v234
  %v379 = vpop.f32.mrb[0].mxu0
  %v380 = vadd.f32 0.0, %v379
  %v381 = vpop.f32.mrb[0].mxu0
  %v382 = vadd.f32 0.0, %v381
  %v383 = vpop.f32.mrb[0].mxu0
  %v384 = vadd.f32 0.0, %v383
  %v385 = vpop.f32.mrb[0].mxu0
  %v386 = vadd.f32 0.0, %v385
  %387 = vmatprep.mubr.bf16.mxu0 0
  %388 = vmatmul.mubr.bf16.gmra.mrb[0].mxu0 %v237
  %v389 = vpop.f32.mrb[0].mxu0
  %v390 = vadd.f32 0.0, %v389
  %v391 = vpop.f32.mrb[0].mxu0
  %v392 = vadd.f32 0.0, %v391
  %v393 = vpop.f32.mrb[0].mxu0
  %v394 = vadd.f32 0.0, %v393
  %v395 = vpop.f32.mrb[0].mxu0
  %v396 = vadd.f32 0.0, %v395
  %397 = vmatprep.mubr.bf16.mxu0 0
  %398 = vmatmul.mubr.bf16.gmra.mrb[0].mxu0 %v240
  %v399 = vpop.f32.mrb[0].mxu0
  %v400 = vadd.f32 0.0, %v399
  %v401 = vpop.f32.mrb[0].mxu0
  %v402 = vadd.f32 0.0, %v401
  %v403 = vpop.f32.mrb[0].mxu0
  %v404 = vadd.f32 0.0, %v403
  %v405 = vpop.f32.mrb[0].mxu0
  %v406 = vadd.f32 0.0, %v405
  %407 = vmatprep.mubr.bf16.mxu0 0
  %408 = vmatmul.mubr.bf16.gmra.mrb[0].mxu0 %v243
  %v409 = vpop.f32.mrb[0].mxu0
  %v410 = vadd.f32 0.0, %v409
  %v411 = vpop.f32.mrb[0].mxu0
  %v412 = vadd.f32 0.0, %v411
  %v413 = vpop.f32.mrb[0].mxu0
  %v414 = vadd.f32 0.0, %v413
  %v415 = vpop.f32.mrb[0].mxu0
  %v416 = vadd.f32 0.0, %v415
  %417 = vdwg.mxu0
  %v419 = vunpack.c.l.b16 %v71
  %v420 = vpack.c.b16 %v140, %v419
  %v421 = vpack.c.b16 %v142, %v141
  %v422 = vpack.c.b16 %v144, %v143
  %v423 = vpack.c.b16 %v146, %v145
  %v424 = vpack.c.b16 %v148, %v147
  %v425 = vpack.c.b16 %v150, %v149
  %v426 = vpack.c.b16 %v152, %v151
  %v427 = vpack.c.b16 %v154, %v153
  %v428 = vpack.c.b16 %v156, %v155
  %v429 = vpack.c.b16 %v158, %v157
  %v430 = vpack.c.b16 %v160, %v159
  %v431 = vpack.c.b16 %v162, %v161
  %v432 = vpack.c.b16 %v164, %v163
  %v433 = vpack.c.b16 %v166, %v165
  %v438 = vunpack.c.l.b16 %v103
  %v439 = vunpack.c.h.b16 %v103
  %v440 = vunpack.c.l.b16 %v104
  %v441 = vunpack.c.h.b16 %v104
  %v442 = vunpack.c.l.b16 %v105
  %v443 = vunpack.c.h.b16 %v105
  %v444 = vunpack.c.l.b16 %v106
  %v445 = vunpack.c.h.b16 %v106
  %v446 = vpack.c.b16 %v440, %v438
  %v447 = vpack.c.b16 %v441, %v439
  %v448 = vpack.c.b16 %v444, %v442
  %v449 = vpack.c.b16 %v445, %v443
  %v455 = vsel %vm202, %v420, 0
  %v458 = vsel %vm202, %v421, 0
  %v461 = vsel %vm202, %v422, 0
  %v464 = vsel %vm202, %v423, 0
  %v467 = vsel %vm202, %v424, 0
  %v470 = vsel %vm202, %v425, 0
  %v473 = vsel %vm202, %v426, 0
  %v476 = vsel %vm202, %v427, 0
  %v479 = vsel %vm202, %v428, 0
  %v482 = vsel %vm202, %v429, 0
  %v485 = vsel %vm202, %v430, 0
  %v488 = vsel %vm202, %v431, 0
  %v491 = vsel %vm202, %v432, 0
  %v494 = vsel %vm202, %v433, 0
  %496 = vmatprep.subr.bf16.mxu0 %v447
  %497 = vmatpush1.bf16.msra.mxu0 %v446
  %498 = vmatprep.subr.bf16.mxu0 %v449
  %499 = vmatpush1.bf16.msra.mxu0 %v448
  %500 = vmatprep.subr.bf16.mxu0 0
  %501 = vmatpush1.bf16.msra.mxu0 0
  %502 = vmatprep.subr.bf16.mxu0 0
  %503 = vmatpush1.bf16.msra.mxu0 0
  %504 = vmatprep.subr.bf16.mxu0 0
  %505 = vmatpush1.bf16.msra.mxu0 0
  %506 = vmatprep.subr.bf16.mxu0 0
  %507 = vmatpush1.bf16.msra.mxu0 0
  %508 = vmatprep.subr.bf16.mxu0 0
  %509 = vmatpush1.bf16.msra.mxu0 0
  %510 = vmatprep.subr.bf16.mxu0 0
  %511 = vmatpush1.bf16.msra.mxu0 0
  %512 = vmatprep.subr.bf16.mxu0 0
  %513 = vmatpush1.bf16.msra.mxu0 0
  %514 = vmatprep.subr.bf16.mxu0 0
  %515 = vmatpush1.bf16.msra.mxu0 0
  %516 = vmatprep.subr.bf16.mxu0 0
  %517 = vmatpush1.bf16.msra.mxu0 0
  %518 = vmatprep.subr.bf16.mxu0 0
  %519 = vmatpush1.bf16.msra.mxu0 0
  %520 = vmatprep.subr.bf16.mxu0 0
  %521 = vmatpush1.bf16.msra.mxu0 0
  %522 = vmatprep.subr.bf16.mxu0 0
  %523 = vmatpush1.bf16.msra.mxu0 0
  %524 = vmatprep.subr.bf16.mxu0 0
  %525 = vmatpush1.bf16.msra.mxu0 0
  %526 = vmatprep.subr.bf16.mxu0 0
  %527 = vmatpush1.bf16.msra.mxu0 0
  %528 = vmatprep.mubr.bf16.mxu0 0
  %529 = vmatmul.mubr.bf16.gmra.mrb[0].mxu0 %v455
  %v530 = vpop.f32.mrb[0].mxu0
  %v531 = vadd.f32 %v280, %v530
  %v532 = vpop.f32.mrb[0].mxu0
  %v533 = vadd.f32 %v282, %v532
  %v534 = vpop.f32.mrb[0].mxu0
  %v535 = vadd.f32 %v284, %v534
  %v536 = vpop.f32.mrb[0].mxu0
  %v537 = vadd.f32 %v286, %v536
  %538 = vmatprep.mubr.bf16.mxu0 0
  %539 = vmatmul.mubr.bf16.gmra.mrb[0].mxu0 %v458
  %v540 = vpop.f32.mrb[0].mxu0
  %v541 = vadd.f32 %v290, %v540
  %v542 = vpop.f32.mrb[0].mxu0
  %v543 = vadd.f32 %v292, %v542
  %v544 = vpop.f32.mrb[0].mxu0
  %v545 = vadd.f32 %v294, %v544
  %v546 = vpop.f32.mrb[0].mxu0
  %v547 = vadd.f32 %v296, %v546
  %548 = vmatprep.mubr.bf16.mxu0 0
  %549 = vmatmul.mubr.bf16.gmra.mrb[0].mxu0 %v461
  %v550 = vpop.f32.mrb[0].mxu0
  %v551 = vadd.f32 %v300, %v550
  %v552 = vpop.f32.mrb[0].mxu0
  %v553 = vadd.f32 %v302, %v552
  %v554 = vpop.f32.mrb[0].mxu0
  %v555 = vadd.f32 %v304, %v554
  %v556 = vpop.f32.mrb[0].mxu0
  %v557 = vadd.f32 %v306, %v556
  %558 = vmatprep.mubr.bf16.mxu0 0
  %559 = vmatmul.mubr.bf16.gmra.mrb[0].mxu0 %v464
  %v560 = vpop.f32.mrb[0].mxu0
  %v561 = vadd.f32 %v310, %v560
  %v562 = vpop.f32.mrb[0].mxu0
  %v563 = vadd.f32 %v312, %v562
  %v564 = vpop.f32.mrb[0].mxu0
  %v565 = vadd.f32 %v314, %v564
  %v566 = vpop.f32.mrb[0].mxu0
  %v567 = vadd.f32 %v316, %v566
  %568 = vmatprep.mubr.bf16.mxu0 0
  %569 = vmatmul.mubr.bf16.gmra.mrb[0].mxu0 %v467
  %v570 = vpop.f32.mrb[0].mxu0
  %v571 = vadd.f32 %v320, %v570
  %v572 = vpop.f32.mrb[0].mxu0
  %v573 = vadd.f32 %v322, %v572
  %v574 = vpop.f32.mrb[0].mxu0
  %v575 = vadd.f32 %v324, %v574
  %v576 = vpop.f32.mrb[0].mxu0
  %v577 = vadd.f32 %v326, %v576
  %578 = vmatprep.mubr.bf16.mxu0 0
  %579 = vmatmul.mubr.bf16.gmra.mrb[0].mxu0 %v470
  %v580 = vpop.f32.mrb[0].mxu0
  %v581 = vadd.f32 %v330, %v580
  %v582 = vpop.f32.mrb[0].mxu0
  %v583 = vadd.f32 %v332, %v582
  %v584 = vpop.f32.mrb[0].mxu0
  %v585 = vadd.f32 %v334, %v584
  %v586 = vpop.f32.mrb[0].mxu0
  %v587 = vadd.f32 %v336, %v586
  %588 = vmatprep.mubr.bf16.mxu0 0
  %589 = vmatmul.mubr.bf16.gmra.mrb[0].mxu0 %v473
  %v590 = vpop.f32.mrb[0].mxu0
  %v591 = vadd.f32 %v340, %v590
  %v592 = vpop.f32.mrb[0].mxu0
  %v593 = vadd.f32 %v342, %v592
  %v594 = vpop.f32.mrb[0].mxu0
  %v595 = vadd.f32 %v344, %v594
  %v596 = vpop.f32.mrb[0].mxu0
  %v597 = vadd.f32 %v346, %v596
  %598 = vmatprep.mubr.bf16.mxu0 0
  %599 = vmatmul.mubr.bf16.gmra.mrb[0].mxu0 %v476
  %v600 = vpop.f32.mrb[0].mxu0
  %v601 = vadd.f32 %v350, %v600
  %v602 = vpop.f32.mrb[0].mxu0
  %v603 = vadd.f32 %v352, %v602
  %v604 = vpop.f32.mrb[0].mxu0
  %v605 = vadd.f32 %v354, %v604
  %v606 = vpop.f32.mrb[0].mxu0
  %v607 = vadd.f32 %v356, %v606
  %608 = vmatprep.mubr.bf16.mxu0 0
  %609 = vmatmul.mubr.bf16.gmra.mrb[0].mxu0 %v479
  %v610 = vpop.f32.mrb[0].mxu0
  %v611 = vadd.f32 %v360, %v610
  %v612 = vpop.f32.mrb[0].mxu0
  %v613 = vadd.f32 %v362, %v612
  %v614 = vpop.f32.mrb[0].mxu0
  %v615 = vadd.f32 %v364, %v614
  %v616 = vpop.f32.mrb[0].mxu0
  %v617 = vadd.f32 %v366, %v616
  %618 = vmatprep.mubr.bf16.mxu0 0
  %619 = vmatmul.mubr.bf16.gmra.mrb[0].mxu0 %v482
  %v620 = vpop.f32.mrb[0].mxu0
  %v621 = vadd.f32 %v370, %v620
  %v622 = vpop.f32.mrb[0].mxu0
  %v623 = vadd.f32 %v372, %v622
  %v624 = vpop.f32.mrb[0].mxu0
  %v625 = vadd.f32 %v374, %v624
  %v626 = vpop.f32.mrb[0].mxu0
  %v627 = vadd.f32 %v376, %v626
  %628 = vmatprep.mubr.bf16.mxu0 0
  %629 = vmatmul.mubr.bf16.gmra.mrb[0].mxu0 %v485
  %v630 = vpop.f32.mrb[0].mxu0
  %v631 = vadd.f32 %v380, %v630
  %v632 = vpop.f32.mrb[0].mxu0
  %v633 = vadd.f32 %v382, %v632
  %v634 = vpop.f32.mrb[0].mxu0
  %v635 = vadd.f32 %v384, %v634
  %v636 = vpop.f32.mrb[0].mxu0
  %v637 = vadd.f32 %v386, %v636
  %638 = vmatprep.mubr.bf16.mxu0 0
  %639 = vmatmul.mubr.bf16.gmra.mrb[0].mxu0 %v488
  %v640 = vpop.f32.mrb[0].mxu0
  %v641 = vadd.f32 %v390, %v640
  %v642 = vpop.f32.mrb[0].mxu0
  %v643 = vadd.f32 %v392, %v642
  %v644 = vpop.f32.mrb[0].mxu0
  %v645 = vadd.f32 %v394, %v644
  %v646 = vpop.f32.mrb[0].mxu0
  %v647 = vadd.f32 %v396, %v646
  %648 = vmatprep.mubr.bf16.mxu0 0
  %649 = vmatmul.mubr.bf16.gmra.mrb[0].mxu0 %v491
  %v650 = vpop.f32.mrb[0].mxu0
  %v651 = vadd.f32 %v400, %v650
  %v652 = vpop.f32.mrb[0].mxu0
  %v653 = vadd.f32 %v402, %v652
  %v654 = vpop.f32.mrb[0].mxu0
  %v655 = vadd.f32 %v404, %v654
  %v656 = vpop.f32.mrb[0].mxu0
  %v657 = vadd.f32 %v406, %v656
  %658 = vmatprep.mubr.bf16.mxu0 0
  %659 = vmatmul.mubr.bf16.gmra.mrb[0].mxu0 %v494
  %v660 = vpop.f32.mrb[0].mxu0
  %v661 = vadd.f32 %v410, %v660
  %v662 = vpop.f32.mrb[0].mxu0
  %v663 = vadd.f32 %v412, %v662
  %v664 = vpop.f32.mrb[0].mxu0
  %v665 = vadd.f32 %v414, %v664
  %v666 = vpop.f32.mrb[0].mxu0
  %v667 = vadd.f32 %v416, %v666
  %668 = vdwg.mxu0
  %s669 = scalar_lea.vmem %s1, 64
  %v670 = vld [vmem:[%s669] sm:$0xff]
  %v671 = vld [vmem:[%s669 + $0x8] sm:$0xff]
  %v672 = vld [vmem:[%s669 + $0x10] sm:$0xff]
  %v673 = vld [vmem:[%s669 + $0x18] sm:$0xff]
  %v675 = vunpack.c.l.b16 %v100
  %v676 = vpack.c.b16 %v675, %v167
  %v681 = vunpack.c.l.b16 %v670
  %v682 = vunpack.c.h.b16 %v670
  %v683 = vunpack.c.l.b16 %v671
  %v684 = vunpack.c.h.b16 %v671
  %v685 = vunpack.c.l.b16 %v672
  %v686 = vunpack.c.h.b16 %v672
  %v687 = vunpack.c.l.b16 %v673
  %v688 = vunpack.c.h.b16 %v673
  %v689 = vpack.c.b16 %v683, %v681
  %v690 = vpack.c.b16 %v684, %v682
  %v691 = vpack.c.b16 %v687, %v685
  %v692 = vpack.c.b16 %v688, %v686
  %v698 = vsel %vm202, %v676, 0
  %700 = vmatprep.subr.bf16.mxu0 %v690
  %701 = vmatpush1.bf16.msra.mxu0 %v689
  %702 = vmatprep.subr.bf16.mxu0 %v692
  %703 = vmatpush1.bf16.msra.mxu0 %v691
  %704 = vmatprep.subr.bf16.mxu0 0
  %705 = vmatpush1.bf16.msra.mxu0 0
  %706 = vmatprep.subr.bf16.mxu0 0
  %707 = vmatpush1.bf16.msra.mxu0 0
  %708 = vmatprep.subr.bf16.mxu0 0
  %709 = vmatpush1.bf16.msra.mxu0 0
  %710 = vmatprep.subr.bf16.mxu0 0
  %711 = vmatpush1.bf16.msra.mxu0 0
  %712 = vmatprep.subr.bf16.mxu0 0
  %713 = vmatpush1.bf16.msra.mxu0 0
  %714 = vmatprep.subr.bf16.mxu0 0
  %715 = vmatpush1.bf16.msra.mxu0 0
  %716 = vmatprep.subr.bf16.mxu0 0
  %717 = vmatpush1.bf16.msra.mxu0 0
  %718 = vmatprep.subr.bf16.mxu0 0
  %719 = vmatpush1.bf16.msra.mxu0 0
  %720 = vmatprep.subr.bf16.mxu0 0
  %721 = vmatpush1.bf16.msra.mxu0 0
  %722 = vmatprep.subr.bf16.mxu0 0
  %723 = vmatpush1.bf16.msra.mxu0 0
  %724 = vmatprep.subr.bf16.mxu0 0
  %725 = vmatpush1.bf16.msra.mxu0 0
  %726 = vmatprep.subr.bf16.mxu0 0
  %727 = vmatpush1.bf16.msra.mxu0 0
  %728 = vmatprep.subr.bf16.mxu0 0
  %729 = vmatpush1.bf16.msra.mxu0 0
  %730 = vmatprep.subr.bf16.mxu0 0
  %731 = vmatpush1.bf16.msra.mxu0 0
  %732 = vmatprep.mubr.bf16.mxu0 0
  %733 = vmatmul.mubr.bf16.gmra.mrb[0].mxu0 %v458
  %v734 = vpop.f32.mrb[0].mxu0
  %v735 = vadd.f32 0.0, %v734
  %v736 = vpop.f32.mrb[0].mxu0
  %v737 = vadd.f32 0.0, %v736
  %v738 = vpop.f32.mrb[0].mxu0
  %v739 = vadd.f32 0.0, %v738
  %v740 = vpop.f32.mrb[0].mxu0
  %v741 = vadd.f32 0.0, %v740
  %742 = vmatprep.mubr.bf16.mxu0 0
  %743 = vmatmul.mubr.bf16.gmra.mrb[0].mxu0 %v461
  %v744 = vpop.f32.mrb[0].mxu0
  %v745 = vadd.f32 0.0, %v744
  %v746 = vpop.f32.mrb[0].mxu0
  %v747 = vadd.f32 0.0, %v746
  %v748 = vpop.f32.mrb[0].mxu0
  %v749 = vadd.f32 0.0, %v748
  %v750 = vpop.f32.mrb[0].mxu0
  %v751 = vadd.f32 0.0, %v750
  %752 = vmatprep.mubr.bf16.mxu0 0
  %753 = vmatmul.mubr.bf16.gmra.mrb[0].mxu0 %v464
  %v754 = vpop.f32.mrb[0].mxu0
  %v755 = vadd.f32 0.0, %v754
  %v756 = vpop.f32.mrb[0].mxu0
  %v757 = vadd.f32 0.0, %v756
  %v758 = vpop.f32.mrb[0].mxu0
  %v759 = vadd.f32 0.0, %v758
  %v760 = vpop.f32.mrb[0].mxu0
  %v761 = vadd.f32 0.0, %v760
  %762 = vmatprep.mubr.bf16.mxu0 0
  %763 = vmatmul.mubr.bf16.gmra.mrb[0].mxu0 %v467
  %v764 = vpop.f32.mrb[0].mxu0
  %v765 = vadd.f32 0.0, %v764
  %v766 = vpop.f32.mrb[0].mxu0
  %v767 = vadd.f32 0.0, %v766
  %v768 = vpop.f32.mrb[0].mxu0
  %v769 = vadd.f32 0.0, %v768
  %v770 = vpop.f32.mrb[0].mxu0
  %v771 = vadd.f32 0.0, %v770
  %772 = vmatprep.mubr.bf16.mxu0 0
  %773 = vmatmul.mubr.bf16.gmra.mrb[0].mxu0 %v470
  %v774 = vpop.f32.mrb[0].mxu0
  %v775 = vadd.f32 0.0, %v774
  %v776 = vpop.f32.mrb[0].mxu0
  %v777 = vadd.f32 0.0, %v776
  %v778 = vpop.f32.mrb[0].mxu0
  %v779 = vadd.f32 0.0, %v778
  %v780 = vpop.f32.mrb[0].mxu0
  %v781 = vadd.f32 0.0, %v780
  %782 = vmatprep.mubr.bf16.mxu0 0
  %783 = vmatmul.mubr.bf16.gmra.mrb[0].mxu0 %v473
  %v784 = vpop.f32.mrb[0].mxu0
  %v785 = vadd.f32 0.0, %v784
  %v786 = vpop.f32.mrb[0].mxu0
  %v787 = vadd.f32 0.0, %v786
  %v788 = vpop.f32.mrb[0].mxu0
  %v789 = vadd.f32 0.0, %v788
  %v790 = vpop.f32.mrb[0].mxu0
  %v791 = vadd.f32 0.0, %v790
  %792 = vmatprep.mubr.bf16.mxu0 0
  %793 = vmatmul.mubr.bf16.gmra.mrb[0].mxu0 %v476
  %v794 = vpop.f32.mrb[0].mxu0
  %v795 = vadd.f32 0.0, %v794
  %v796 = vpop.f32.mrb[0].mxu0
  %v797 = vadd.f32 0.0, %v796
  %v798 = vpop.f32.mrb[0].mxu0
  %v799 = vadd.f32 0.0, %v798
  %v800 = vpop.f32.mrb[0].mxu0
  %v801 = vadd.f32 0.0, %v800
  %802 = vmatprep.mubr.bf16.mxu0 0
  %803 = vmatmul.mubr.bf16.gmra.mrb[0].mxu0 %v479
  %v804 = vpop.f32.mrb[0].mxu0
  %v805 = vadd.f32 0.0, %v804
  %v806 = vpop.f32.mrb[0].mxu0
  %v807 = vadd.f32 0.0, %v806
  %v808 = vpop.f32.mrb[0].mxu0
  %v809 = vadd.f32 0.0, %v808
  %v810 = vpop.f32.mrb[0].mxu0
  %v811 = vadd.f32 0.0, %v810
  %812 = vmatprep.mubr.bf16.mxu0 0
  %813 = vmatmul.mubr.bf16.gmra.mrb[0].mxu0 %v482
  %v814 = vpop.f32.mrb[0].mxu0
  %v815 = vadd.f32 0.0, %v814
  %v816 = vpop.f32.mrb[0].mxu0
  %v817 = vadd.f32 0.0, %v816
  %v818 = vpop.f32.mrb[0].mxu0
  %v819 = vadd.f32 0.0, %v818
  %v820 = vpop.f32.mrb[0].mxu0
  %v821 = vadd.f32 0.0, %v820
  %822 = vmatprep.mubr.bf16.mxu0 0
  %823 = vmatmul.mubr.bf16.gmra.mrb[0].mxu0 %v485
  %v824 = vpop.f32.mrb[0].mxu0
  %v825 = vadd.f32 0.0, %v824
  %v826 = vpop.f32.mrb[0].mxu0
  %v827 = vadd.f32 0.0, %v826
  %v828 = vpop.f32.mrb[0].mxu0
  %v829 = vadd.f32 0.0, %v828
  %v830 = vpop.f32.mrb[0].mxu0
  %v831 = vadd.f32 0.0, %v830
  %832 = vmatprep.mubr.bf16.mxu0 0
  %833 = vmatmul.mubr.bf16.gmra.mrb[0].mxu0 %v488
  %v834 = vpop.f32.mrb[0].mxu0
  %v835 = vadd.f32 0.0, %v834
  %v836 = vpop.f32.mrb[0].mxu0
  %v837 = vadd.f32 0.0, %v836
  %v838 = vpop.f32.mrb[0].mxu0
  %v839 = vadd.f32 0.0, %v838
  %v840 = vpop.f32.mrb[0].mxu0
  %v841 = vadd.f32 0.0, %v840
  %842 = vmatprep.mubr.bf16.mxu0 0
  %843 = vmatmul.mubr.bf16.gmra.mrb[0].mxu0 %v491
  %v844 = vpop.f32.mrb[0].mxu0
  %v845 = vadd.f32 0.0, %v844
  %v846 = vpop.f32.mrb[0].mxu0
  %v847 = vadd.f32 0.0, %v846
  %v848 = vpop.f32.mrb[0].mxu0
  %v849 = vadd.f32 0.0, %v848
  %v850 = vpop.f32.mrb[0].mxu0
  %v851 = vadd.f32 0.0, %v850
  %852 = vmatprep.mubr.bf16.mxu0 0
  %853 = vmatmul.mubr.bf16.gmra.mrb[0].mxu0 %v494
  %v854 = vpop.f32.mrb[0].mxu0
  %v855 = vadd.f32 0.0, %v854
  %v856 = vpop.f32.mrb[0].mxu0
  %v857 = vadd.f32 0.0, %v856
  %v858 = vpop.f32.mrb[0].mxu0
  %v859 = vadd.f32 0.0, %v858
  %v860 = vpop.f32.mrb[0].mxu0
  %v861 = vadd.f32 0.0, %v860
  %862 = vmatprep.mubr.bf16.mxu0 0
  %863 = vmatmul.mubr.bf16.gmra.mrb[0].mxu0 %v698
  %v864 = vpop.f32.mrb[0].mxu0
  %v865 = vadd.f32 0.0, %v864
  %v866 = vpop.f32.mrb[0].mxu0
  %v867 = vadd.f32 0.0, %v866
  %v868 = vpop.f32.mrb[0].mxu0
  %v869 = vadd.f32 0.0, %v868
  %v870 = vpop.f32.mrb[0].mxu0
  %v871 = vadd.f32 0.0, %v870
  %872 = vdwg.mxu0
  %v873 = vadd.f32 %v531, %v735
  %v874 = vadd.f32 %v533, %v737
  %v875 = vadd.f32 %v535, %v739
  %v876 = vadd.f32 %v537, %v741
  %v877 = vadd.f32 %v541, %v745
  %v878 = vadd.f32 %v543, %v747
  %v879 = vadd.f32 %v545, %v749
  %v880 = vadd.f32 %v547, %v751
  %v881 = vadd.f32 %v551, %v755
  %v882 = vadd.f32 %v553, %v757
  %v883 = vadd.f32 %v555, %v759
  %v884 = vadd.f32 %v557, %v761
  %v885 = vadd.f32 %v561, %v765
  %v886 = vadd.f32 %v563, %v767
  %v887 = vadd.f32 %v565, %v769
  %v888 = vadd.f32 %v567, %v771
  %v889 = vadd.f32 %v571, %v775
  %v890 = vadd.f32 %v573, %v777
  %v891 = vadd.f32 %v575, %v779
  %v892 = vadd.f32 %v577, %v781
  %v893 = vadd.f32 %v581, %v785
  %v894 = vadd.f32 %v583, %v787
  %v895 = vadd.f32 %v585, %v789
  %v896 = vadd.f32 %v587, %v791
  %v897 = vadd.f32 %v591, %v795
  %v898 = vadd.f32 %v593, %v797
  %v899 = vadd.f32 %v595, %v799
  %v900 = vadd.f32 %v597, %v801
  %v901 = vadd.f32 %v601, %v805
  %v902 = vadd.f32 %v603, %v807
  %v903 = vadd.f32 %v605, %v809
  %v904 = vadd.f32 %v607, %v811
  %v905 = vadd.f32 %v611, %v815
  %v906 = vadd.f32 %v613, %v817
  %v907 = vadd.f32 %v615, %v819
  %v908 = vadd.f32 %v617, %v821
  %v909 = vadd.f32 %v621, %v825
  %v910 = vadd.f32 %v623, %v827
  %v911 = vadd.f32 %v625, %v829
  %v912 = vadd.f32 %v627, %v831
  %v913 = vadd.f32 %v631, %v835
  %v914 = vadd.f32 %v633, %v837
  %v915 = vadd.f32 %v635, %v839
  %v916 = vadd.f32 %v637, %v841
  %v917 = vadd.f32 %v641, %v845
  %v918 = vadd.f32 %v643, %v847
  %v919 = vadd.f32 %v645, %v849
  %v920 = vadd.f32 %v647, %v851
  %v921 = vadd.f32 %v651, %v855
  %v922 = vadd.f32 %v653, %v857
  %v923 = vadd.f32 %v655, %v859
  %v924 = vadd.f32 %v657, %v861
  %v925 = vadd.f32 %v661, %v865
  %v926 = vadd.f32 %v663, %v867
  %v927 = vadd.f32 %v665, %v869
  %v928 = vadd.f32 %v667, %v871
  %s929 = scalar_lea.vmem %s1, 96
  %v930 = vld [vmem:[%s929] sm:$0xff]
  %v931 = vld [vmem:[%s929 + $0x8] sm:$0xff]
  %v932 = vld [vmem:[%s929 + $0x10] sm:$0xff]
  %v933 = vld [vmem:[%s929 + $0x18] sm:$0xff]
  %v935 = vunpack.c.l.b16 %v101
  %v936 = vpack.c.b16 %v935, %v675
  %v941 = vunpack.c.l.b16 %v930
  %v942 = vunpack.c.h.b16 %v930
  %v943 = vunpack.c.l.b16 %v931
  %v944 = vunpack.c.h.b16 %v931
  %v945 = vunpack.c.l.b16 %v932
  %v946 = vunpack.c.h.b16 %v932
  %v947 = vunpack.c.l.b16 %v933
  %v948 = vunpack.c.h.b16 %v933
  %v949 = vpack.c.b16 %v943, %v941
  %v950 = vpack.c.b16 %v944, %v942
  %v951 = vpack.c.b16 %v947, %v945
  %v952 = vpack.c.b16 %v948, %v946
  %v958 = vsel %vm202, %v936, 0
  %960 = vmatprep.subr.bf16.mxu0 %v950
  %961 = vmatpush1.bf16.msra.mxu0 %v949
  %962 = vmatprep.subr.bf16.mxu0 %v952
  %963 = vmatpush1.bf16.msra.mxu0 %v951
  %964 = vmatprep.subr.bf16.mxu0 0
  %965 = vmatpush1.bf16.msra.mxu0 0
  %966 = vmatprep.subr.bf16.mxu0 0
  %967 = vmatpush1.bf16.msra.mxu0 0
  %968 = vmatprep.subr.bf16.mxu0 0
  %969 = vmatpush1.bf16.msra.mxu0 0
  %970 = vmatprep.subr.bf16.mxu0 0
  %971 = vmatpush1.bf16.msra.mxu0 0
  %972 = vmatprep.subr.bf16.mxu0 0
  %973 = vmatpush1.bf16.msra.mxu0 0
  %974 = vmatprep.subr.bf16.mxu0 0
  %975 = vmatpush1.bf16.msra.mxu0 0
  %976 = vmatprep.subr.bf16.mxu0 0
  %977 = vmatpush1.bf16.msra.mxu0 0
  %978 = vmatprep.subr.bf16.mxu0 0
  %979 = vmatpush1.bf16.msra.mxu0 0
  %980 = vmatprep.subr.bf16.mxu0 0
  %981 = vmatpush1.bf16.msra.mxu0 0
  %982 = vmatprep.subr.bf16.mxu0 0
  %983 = vmatpush1.bf16.msra.mxu0 0
  %984 = vmatprep.subr.bf16.mxu0 0
  %985 = vmatpush1.bf16.msra.mxu0 0
  %986 = vmatprep.subr.bf16.mxu0 0
  %987 = vmatpush1.bf16.msra.mxu0 0
  %988 = vmatprep.subr.bf16.mxu0 0
  %989 = vmatpush1.bf16.msra.mxu0 0
  %990 = vmatprep.subr.bf16.mxu0 0
  %991 = vmatpush1.bf16.msra.mxu0 0
  %992 = vmatprep.mubr.bf16.mxu0 0
  %993 = vmatmul.mubr.bf16.gmra.mrb[0].mxu0 %v207
  %v994 = vpop.f32.mrb[0].mxu0
  %v995 = vadd.f32 0.0, %v994
  %v996 = vpop.f32.mrb[0].mxu0
  %v997 = vadd.f32 0.0, %v996
  %v998 = vpop.f32.mrb[0].mxu0
  %v999 = vadd.f32 0.0, %v998
  %v1000 = vpop.f32.mrb[0].mxu0
  %v1001 = vadd.f32 0.0, %v1000
  %1002 = vmatprep.mubr.bf16.mxu0 0
  %1003 = vmatmul.mubr.bf16.gmra.mrb[0].mxu0 %v210
  %v1004 = vpop.f32.mrb[0].mxu0
  %v1005 = vadd.f32 0.0, %v1004
  %v1006 = vpop.f32.mrb[0].mxu0
  %v1007 = vadd.f32 0.0, %v1006
  %v1008 = vpop.f32.mrb[0].mxu0
  %v1009 = vadd.f32 0.0, %v1008
  %v1010 = vpop.f32.mrb[0].mxu0
  %v1011 = vadd.f32 0.0, %v1010
  %1012 = vmatprep.mubr.bf16.mxu0 0
  %1013 = vmatmul.mubr.bf16.gmra.mrb[0].mxu0 %v213
  %v1014 = vpop.f32.mrb[0].mxu0
  %v1015 = vadd.f32 0.0, %v1014
  %v1016 = vpop.f32.mrb[0].mxu0
  %v1017 = vadd.f32 0.0, %v1016
  %v1018 = vpop.f32.mrb[0].mxu0
  %v1019 = vadd.f32 0.0, %v1018
  %v1020 = vpop.f32.mrb[0].mxu0
  %v1021 = vadd.f32 0.0, %v1020
  %1022 = vmatprep.mubr.bf16.mxu0 0
  %1023 = vmatmul.mubr.bf16.gmra.mrb[0].mxu0 %v216
  %v1024 = vpop.f32.mrb[0].mxu0
  %v1025 = vadd.f32 0.0, %v1024
  %v1026 = vpop.f32.mrb[0].mxu0
  %v1027 = vadd.f32 0.0, %v1026
  %v1028 = vpop.f32.mrb[0].mxu0
  %v1029 = vadd.f32 0.0, %v1028
  %v1030 = vpop.f32.mrb[0].mxu0
  %v1031 = vadd.f32 0.0, %v1030
  %1032 = vmatprep.mubr.bf16.mxu0 0
  %1033 = vmatmul.mubr.bf16.gmra.mrb[0].mxu0 %v219
  %v1034 = vpop.f32.mrb[0].mxu0
  %v1035 = vadd.f32 0.0, %v1034
  %v1036 = vpop.f32.mrb[0].mxu0
  %v1037 = vadd.f32 0.0, %v1036
  %v1038 = vpop.f32.mrb[0].mxu0
  %v1039 = vadd.f32 0.0, %v1038
  %v1040 = vpop.f32.mrb[0].mxu0
  %v1041 = vadd.f32 0.0, %v1040
  %1042 = vmatprep.mubr.bf16.mxu0 0
  %1043 = vmatmul.mubr.bf16.gmra.mrb[0].mxu0 %v222
  %v1044 = vpop.f32.mrb[0].mxu0
  %v1045 = vadd.f32 0.0, %v1044
  %v1046 = vpop.f32.mrb[0].mxu0
  %v1047 = vadd.f32 0.0, %v1046
  %v1048 = vpop.f32.mrb[0].mxu0
  %v1049 = vadd.f32 0.0, %v1048
  %v1050 = vpop.f32.mrb[0].mxu0
  %v1051 = vadd.f32 0.0, %v1050
  %1052 = vmatprep.mubr.bf16.mxu0 0
  %1053 = vmatmul.mubr.bf16.gmra.mrb[0].mxu0 %v225
  %v1054 = vpop.f32.mrb[0].mxu0
  %v1055 = vadd.f32 0.0, %v1054
  %v1056 = vpop.f32.mrb[0].mxu0
  %v1057 = vadd.f32 0.0, %v1056
  %v1058 = vpop.f32.mrb[0].mxu0
  %v1059 = vadd.f32 0.0, %v1058
  %v1060 = vpop.f32.mrb[0].mxu0
  %v1061 = vadd.f32 0.0, %v1060
  %1062 = vmatprep.mubr.bf16.mxu0 0
  %1063 = vmatmul.mubr.bf16.gmra.mrb[0].mxu0 %v228
  %v1064 = vpop.f32.mrb[0].mxu0
  %v1065 = vadd.f32 0.0, %v1064
  %v1066 = vpop.f32.mrb[0].mxu0
  %v1067 = vadd.f32 0.0, %v1066
  %v1068 = vpop.f32.mrb[0].mxu0
  %v1069 = vadd.f32 0.0, %v1068
  %v1070 = vpop.f32.mrb[0].mxu0
  %v1071 = vadd.f32 0.0, %v1070
  %1072 = vmatprep.mubr.bf16.mxu0 0
  %1073 = vmatmul.mubr.bf16.gmra.mrb[0].mxu0 %v231
  %v1074 = vpop.f32.mrb[0].mxu0
  %v1075 = vadd.f32 0.0, %v1074
  %v1076 = vpop.f32.mrb[0].mxu0
  %v1077 = vadd.f32 0.0, %v1076
  %v1078 = vpop.f32.mrb[0].mxu0
  %v1079 = vadd.f32 0.0, %v1078
  %v1080 = vpop.f32.mrb[0].mxu0
  %v1081 = vadd.f32 0.0, %v1080
  %1082 = vmatprep.mubr.bf16.mxu0 0
  %1083 = vmatmul.mubr.bf16.gmra.mrb[0].mxu0 %v234
  %v1084 = vpop.f32.mrb[0].mxu0
  %v1085 = vadd.f32 0.0, %v1084
  %v1086 = vpop.f32.mrb[0].mxu0
  %v1087 = vadd.f32 0.0, %v1086
  %v1088 = vpop.f32.mrb[0].mxu0
  %v1089 = vadd.f32 0.0, %v1088
  %v1090 = vpop.f32.mrb[0].mxu0
  %v1091 = vadd.f32 0.0, %v1090
  %1092 = vmatprep.mubr.bf16.mxu0 0
  %1093 = vmatmul.mubr.bf16.gmra.mrb[0].mxu0 %v237
  %v1094 = vpop.f32.mrb[0].mxu0
  %v1095 = vadd.f32 0.0, %v1094
  %v1096 = vpop.f32.mrb[0].mxu0
  %v1097 = vadd.f32 0.0, %v1096
  %v1098 = vpop.f32.mrb[0].mxu0
  %v1099 = vadd.f32 0.0, %v1098
  %v1100 = vpop.f32.mrb[0].mxu0
  %v1101 = vadd.f32 0.0, %v1100
  %1102 = vmatprep.mubr.bf16.mxu0 0
  %1103 = vmatmul.mubr.bf16.gmra.mrb[0].mxu0 %v240
  %v1104 = vpop.f32.mrb[0].mxu0
  %v1105 = vadd.f32 0.0, %v1104
  %v1106 = vpop.f32.mrb[0].mxu0
  %v1107 = vadd.f32 0.0, %v1106
  %v1108 = vpop.f32.mrb[0].mxu0
  %v1109 = vadd.f32 0.0, %v1108
  %v1110 = vpop.f32.mrb[0].mxu0
  %v1111 = vadd.f32 0.0, %v1110
  %1112 = vmatprep.mubr.bf16.mxu0 0
  %1113 = vmatmul.mubr.bf16.gmra.mrb[0].mxu0 %v243
  %v1114 = vpop.f32.mrb[0].mxu0
  %v1115 = vadd.f32 0.0, %v1114
  %v1116 = vpop.f32.mrb[0].mxu0
  %v1117 = vadd.f32 0.0, %v1116
  %v1118 = vpop.f32.mrb[0].mxu0
  %v1119 = vadd.f32 0.0, %v1118
  %v1120 = vpop.f32.mrb[0].mxu0
  %v1121 = vadd.f32 0.0, %v1120
  %1122 = vmatprep.mubr.bf16.mxu0 0
  %1123 = vmatmul.mubr.bf16.gmra.mrb[0].mxu0 %v958
  %v1124 = vpop.f32.mrb[0].mxu0
  %v1125 = vadd.f32 0.0, %v1124
  %v1126 = vpop.f32.mrb[0].mxu0
  %v1127 = vadd.f32 0.0, %v1126
  %v1128 = vpop.f32.mrb[0].mxu0
  %v1129 = vadd.f32 0.0, %v1128
  %v1130 = vpop.f32.mrb[0].mxu0
  %v1131 = vadd.f32 0.0, %v1130
  %1132 = vdwg.mxu0
  %v1133 = vadd.f32 %v873, %v995
  %v1134 = vadd.f32 %v874, %v997
  %v1135 = vadd.f32 %v875, %v999
  %v1136 = vadd.f32 %v876, %v1001
  %v1137 = vadd.f32 %v877, %v1005
  %v1138 = vadd.f32 %v878, %v1007
  %v1139 = vadd.f32 %v879, %v1009
  %v1140 = vadd.f32 %v880, %v1011
  %v1141 = vadd.f32 %v881, %v1015
  %v1142 = vadd.f32 %v882, %v1017
  %v1143 = vadd.f32 %v883, %v1019
  %v1144 = vadd.f32 %v884, %v1021
  %v1145 = vadd.f32 %v885, %v1025
  %v1146 = vadd.f32 %v886, %v1027
  %v1147 = vadd.f32 %v887, %v1029
  %v1148 = vadd.f32 %v888, %v1031
  %v1149 = vadd.f32 %v889, %v1035
  %v1150 = vadd.f32 %v890, %v1037
  %v1151 = vadd.f32 %v891, %v1039
  %v1152 = vadd.f32 %v892, %v1041
  %v1153 = vadd.f32 %v893, %v1045
  %v1154 = vadd.f32 %v894, %v1047
  %v1155 = vadd.f32 %v895, %v1049
  %v1156 = vadd.f32 %v896, %v1051
  %v1157 = vadd.f32 %v897, %v1055
  %v1158 = vadd.f32 %v898, %v1057
  %v1159 = vadd.f32 %v899, %v1059
  %v1160 = vadd.f32 %v900, %v1061
  %v1161 = vadd.f32 %v901, %v1065
  %v1162 = vadd.f32 %v902, %v1067
  %v1163 = vadd.f32 %v903, %v1069
  %v1164 = vadd.f32 %v904, %v1071
  %v1165 = vadd.f32 %v905, %v1075
  %v1166 = vadd.f32 %v906, %v1077
  %v1167 = vadd.f32 %v907, %v1079
  %v1168 = vadd.f32 %v908, %v1081
  %v1169 = vadd.f32 %v909, %v1085
  %v1170 = vadd.f32 %v910, %v1087
  %v1171 = vadd.f32 %v911, %v1089
  %v1172 = vadd.f32 %v912, %v1091
  %v1173 = vadd.f32 %v913, %v1095
  %v1174 = vadd.f32 %v914, %v1097
  %v1175 = vadd.f32 %v915, %v1099
  %v1176 = vadd.f32 %v916, %v1101
  %v1177 = vadd.f32 %v917, %v1105
  %v1178 = vadd.f32 %v918, %v1107
  %v1179 = vadd.f32 %v919, %v1109
  %v1180 = vadd.f32 %v920, %v1111
  %v1181 = vadd.f32 %v921, %v1115
  %v1182 = vadd.f32 %v922, %v1117
  %v1183 = vadd.f32 %v923, %v1119
  %v1184 = vadd.f32 %v924, %v1121
  %v1185 = vadd.f32 %v925, %v1125
  %v1186 = vadd.f32 %v926, %v1127
  %v1187 = vadd.f32 %v927, %v1129
  %v1188 = vadd.f32 %v928, %v1131
  %s1189 = scalar_lea.vmem %s1, 128
  %v1190 = vld [vmem:[%s1189] sm:$0xff]
  %v1191 = vld [vmem:[%s1189 + $0x8] sm:$0xff]
  %v1192 = vld [vmem:[%s1189 + $0x10] sm:$0xff]
  %v1193 = vld [vmem:[%s1189 + $0x18] sm:$0xff]
  %v1195 = vunpack.c.l.b16 %v102
  %v1196 = vpack.c.b16 %v1195, %v935
  %v1201 = vunpack.c.l.b16 %v1190
  %v1202 = vunpack.c.h.b16 %v1190
  %v1203 = vunpack.c.l.b16 %v1191
  %v1204 = vunpack.c.h.b16 %v1191
  %v1205 = vunpack.c.l.b16 %v1192
  %v1206 = vunpack.c.h.b16 %v1192
  %v1207 = vunpack.c.l.b16 %v1193
  %v1208 = vunpack.c.h.b16 %v1193
  %v1209 = vpack.c.b16 %v1203, %v1201
  %v1210 = vpack.c.b16 %v1204, %v1202
  %v1211 = vpack.c.b16 %v1207, %v1205
  %v1212 = vpack.c.b16 %v1208, %v1206
  %v1218 = vsel %vm202, %v1196, 0
  %1220 = vmatprep.subr.bf16.mxu0 %v1210
  %1221 = vmatpush1.bf16.msra.mxu0 %v1209
  %1222 = vmatprep.subr.bf16.mxu0 %v1212
  %1223 = vmatpush1.bf16.msra.mxu0 %v1211
  %1224 = vmatprep.subr.bf16.mxu0 0
  %1225 = vmatpush1.bf16.msra.mxu0 0
  %1226 = vmatprep.subr.bf16.mxu0 0
  %1227 = vmatpush1.bf16.msra.mxu0 0
  %1228 = vmatprep.subr.bf16.mxu0 0
  %1229 = vmatpush1.bf16.msra.mxu0 0
  %1230 = vmatprep.subr.bf16.mxu0 0
  %1231 = vmatpush1.bf16.msra.mxu0 0
  %1232 = vmatprep.subr.bf16.mxu0 0
  %1233 = vmatpush1.bf16.msra.mxu0 0
  %1234 = vmatprep.subr.bf16.mxu0 0
  %1235 = vmatpush1.bf16.msra.mxu0 0
  %1236 = vmatprep.subr.bf16.mxu0 0
  %1237 = vmatpush1.bf16.msra.mxu0 0
  %1238 = vmatprep.subr.bf16.mxu0 0
  %1239 = vmatpush1.bf16.msra.mxu0 0
  %1240 = vmatprep.subr.bf16.mxu0 0
  %1241 = vmatpush1.bf16.msra.mxu0 0
  %1242 = vmatprep.subr.bf16.mxu0 0
  %1243 = vmatpush1.bf16.msra.mxu0 0
  %1244 = vmatprep.subr.bf16.mxu0 0
  %1245 = vmatpush1.bf16.msra.mxu0 0
  %1246 = vmatprep.subr.bf16.mxu0 0
  %1247 = vmatpush1.bf16.msra.mxu0 0
  %1248 = vmatprep.subr.bf16.mxu0 0
  %1249 = vmatpush1.bf16.msra.mxu0 0
  %1250 = vmatprep.subr.bf16.mxu0 0
  %1251 = vmatpush1.bf16.msra.mxu0 0
  %1252 = vmatprep.mubr.bf16.mxu0 0
  %1253 = vmatmul.mubr.bf16.gmra.mrb[0].mxu0 %v461
  %v1254 = vpop.f32.mrb[0].mxu0
  %v1255 = vadd.f32 0.0, %v1254
  %v1256 = vpop.f32.mrb[0].mxu0
  %v1257 = vadd.f32 0.0, %v1256
  %v1258 = vpop.f32.mrb[0].mxu0
  %v1259 = vadd.f32 0.0, %v1258
  %v1260 = vpop.f32.mrb[0].mxu0
  %v1261 = vadd.f32 0.0, %v1260
  %1262 = vmatprep.mubr.bf16.mxu0 0
  %1263 = vmatmul.mubr.bf16.gmra.mrb[0].mxu0 %v464
  %v1264 = vpop.f32.mrb[0].mxu0
  %v1265 = vadd.f32 0.0, %v1264
  %v1266 = vpop.f32.mrb[0].mxu0
  %v1267 = vadd.f32 0.0, %v1266
  %v1268 = vpop.f32.mrb[0].mxu0
  %v1269 = vadd.f32 0.0, %v1268
  %v1270 = vpop.f32.mrb[0].mxu0
  %v1271 = vadd.f32 0.0, %v1270
  %1272 = vmatprep.mubr.bf16.mxu0 0
  %1273 = vmatmul.mubr.bf16.gmra.mrb[0].mxu0 %v467
  %v1274 = vpop.f32.mrb[0].mxu0
  %v1275 = vadd.f32 0.0, %v1274
  %v1276 = vpop.f32.mrb[0].mxu0
  %v1277 = vadd.f32 0.0, %v1276
  %v1278 = vpop.f32.mrb[0].mxu0
  %v1279 = vadd.f32 0.0, %v1278
  %v1280 = vpop.f32.mrb[0].mxu0
  %v1281 = vadd.f32 0.0, %v1280
  %1282 = vmatprep.mubr.bf16.mxu0 0
  %1283 = vmatmul.mubr.bf16.gmra.mrb[0].mxu0 %v470
  %v1284 = vpop.f32.mrb[0].mxu0
  %v1285 = vadd.f32 0.0, %v1284
  %v1286 = vpop.f32.mrb[0].mxu0
  %v1287 = vadd.f32 0.0, %v1286
  %v1288 = vpop.f32.mrb[0].mxu0
  %v1289 = vadd.f32 0.0, %v1288
  %v1290 = vpop.f32.mrb[0].mxu0
  %v1291 = vadd.f32 0.0, %v1290
  %1292 = vmatprep.mubr.bf16.mxu0 0
  %1293 = vmatmul.mubr.bf16.gmra.mrb[0].mxu0 %v473
  %v1294 = vpop.f32.mrb[0].mxu0
  %v1295 = vadd.f32 0.0, %v1294
  %v1296 = vpop.f32.mrb[0].mxu0
  %v1297 = vadd.f32 0.0, %v1296
  %v1298 = vpop.f32.mrb[0].mxu0
  %v1299 = vadd.f32 0.0, %v1298
  %v1300 = vpop.f32.mrb[0].mxu0
  %v1301 = vadd.f32 0.0, %v1300
  %1302 = vmatprep.mubr.bf16.mxu0 0
  %1303 = vmatmul.mubr.bf16.gmra.mrb[0].mxu0 %v476
  %v1304 = vpop.f32.mrb[0].mxu0
  %v1305 = vadd.f32 0.0, %v1304
  %v1306 = vpop.f32.mrb[0].mxu0
  %v1307 = vadd.f32 0.0, %v1306
  %v1308 = vpop.f32.mrb[0].mxu0
  %v1309 = vadd.f32 0.0, %v1308
  %v1310 = vpop.f32.mrb[0].mxu0
  %v1311 = vadd.f32 0.0, %v1310
  %1312 = vmatprep.mubr.bf16.mxu0 0
  %1313 = vmatmul.mubr.bf16.gmra.mrb[0].mxu0 %v479
  %v1314 = vpop.f32.mrb[0].mxu0
  %v1315 = vadd.f32 0.0, %v1314
  %v1316 = vpop.f32.mrb[0].mxu0
  %v1317 = vadd.f32 0.0, %v1316
  %v1318 = vpop.f32.mrb[0].mxu0
  %v1319 = vadd.f32 0.0, %v1318
  %v1320 = vpop.f32.mrb[0].mxu0
  %v1321 = vadd.f32 0.0, %v1320
  %1322 = vmatprep.mubr.bf16.mxu0 0
  %1323 = vmatmul.mubr.bf16.gmra.mrb[0].mxu0 %v482
  %v1324 = vpop.f32.mrb[0].mxu0
  %v1325 = vadd.f32 0.0, %v1324
  %v1326 = vpop.f32.mrb[0].mxu0
  %v1327 = vadd.f32 0.0, %v1326
  %v1328 = vpop.f32.mrb[0].mxu0
  %v1329 = vadd.f32 0.0, %v1328
  %v1330 = vpop.f32.mrb[0].mxu0
  %v1331 = vadd.f32 0.0, %v1330
  %1332 = vmatprep.mubr.bf16.mxu0 0
  %1333 = vmatmul.mubr.bf16.gmra.mrb[0].mxu0 %v485
  %v1334 = vpop.f32.mrb[0].mxu0
  %v1335 = vadd.f32 0.0, %v1334
  %v1336 = vpop.f32.mrb[0].mxu0
  %v1337 = vadd.f32 0.0, %v1336
  %v1338 = vpop.f32.mrb[0].mxu0
  %v1339 = vadd.f32 0.0, %v1338
  %v1340 = vpop.f32.mrb[0].mxu0
  %v1341 = vadd.f32 0.0, %v1340
  %1342 = vmatprep.mubr.bf16.mxu0 0
  %1343 = vmatmul.mubr.bf16.gmra.mrb[0].mxu0 %v488
  %v1344 = vpop.f32.mrb[0].mxu0
  %v1345 = vadd.f32 0.0, %v1344
  %v1346 = vpop.f32.mrb[0].mxu0
  %v1347 = vadd.f32 0.0, %v1346
  %v1348 = vpop.f32.mrb[0].mxu0
  %v1349 = vadd.f32 0.0, %v1348
  %v1350 = vpop.f32.mrb[0].mxu0
  %v1351 = vadd.f32 0.0, %v1350
  %1352 = vmatprep.mubr.bf16.mxu0 0
  %1353 = vmatmul.mubr.bf16.gmra.mrb[0].mxu0 %v491
  %v1354 = vpop.f32.mrb[0].mxu0
  %v1355 = vadd.f32 0.0, %v1354
  %v1356 = vpop.f32.mrb[0].mxu0
  %v1357 = vadd.f32 0.0, %v1356
  %v1358 = vpop.f32.mrb[0].mxu0
  %v1359 = vadd.f32 0.0, %v1358
  %v1360 = vpop.f32.mrb[0].mxu0
  %v1361 = vadd.f32 0.0, %v1360
  %1362 = vmatprep.mubr.bf16.mxu0 0
  %1363 = vmatmul.mubr.bf16.gmra.mrb[0].mxu0 %v494
  %v1364 = vpop.f32.mrb[0].mxu0
  %v1365 = vadd.f32 0.0, %v1364
  %v1366 = vpop.f32.mrb[0].mxu0
  %v1367 = vadd.f32 0.0, %v1366
  %v1368 = vpop.f32.mrb[0].mxu0
  %v1369 = vadd.f32 0.0, %v1368
  %v1370 = vpop.f32.mrb[0].mxu0
  %v1371 = vadd.f32 0.0, %v1370
  %1372 = vmatprep.mubr.bf16.mxu0 0
  %1373 = vmatmul.mubr.bf16.gmra.mrb[0].mxu0 %v698
  %v1374 = vpop.f32.mrb[0].mxu0
  %v1375 = vadd.f32 0.0, %v1374
  %v1376 = vpop.f32.mrb[0].mxu0
  %v1377 = vadd.f32 0.0, %v1376
  %v1378 = vpop.f32.mrb[0].mxu0
  %v1379 = vadd.f32 0.0, %v1378
  %v1380 = vpop.f32.mrb[0].mxu0
  %v1381 = vadd.f32 0.0, %v1380
  %1382 = vmatprep.mubr.bf16.mxu0 0
  %1383 = vmatmul.mubr.bf16.gmra.mrb[0].mxu0 %v1218
  %v1384 = vpop.f32.mrb[0].mxu0
  %v1385 = vadd.f32 0.0, %v1384
  %v1386 = vpop.f32.mrb[0].mxu0
  %v1387 = vadd.f32 0.0, %v1386
  %v1388 = vpop.f32.mrb[0].mxu0
  %v1389 = vadd.f32 0.0, %v1388
  %v1390 = vpop.f32.mrb[0].mxu0
  %v1391 = vadd.f32 0.0, %v1390
  %1392 = vdwg.mxu0
  %v1393 = vadd.f32 %v1133, %v1255
  %v1394 = vadd.f32 %v1134, %v1257
  %v1395 = vadd.f32 %v1135, %v1259
  %v1396 = vadd.f32 %v1136, %v1261
  %v1397 = vadd.f32 %v1137, %v1265
  %v1398 = vadd.f32 %v1138, %v1267
  %v1399 = vadd.f32 %v1139, %v1269
  %v1400 = vadd.f32 %v1140, %v1271
  %v1401 = vadd.f32 %v1141, %v1275
  %v1402 = vadd.f32 %v1142, %v1277
  %v1403 = vadd.f32 %v1143, %v1279
  %v1404 = vadd.f32 %v1144, %v1281
  %v1405 = vadd.f32 %v1145, %v1285
  %v1406 = vadd.f32 %v1146, %v1287
  %v1407 = vadd.f32 %v1147, %v1289
  %v1408 = vadd.f32 %v1148, %v1291
  %v1409 = vadd.f32 %v1149, %v1295
  %v1410 = vadd.f32 %v1150, %v1297
  %v1411 = vadd.f32 %v1151, %v1299
  %v1412 = vadd.f32 %v1152, %v1301
  %v1413 = vadd.f32 %v1153, %v1305
  %v1414 = vadd.f32 %v1154, %v1307
  %v1415 = vadd.f32 %v1155, %v1309
  %v1416 = vadd.f32 %v1156, %v1311
  %v1417 = vadd.f32 %v1157, %v1315
  %v1418 = vadd.f32 %v1158, %v1317
  %v1419 = vadd.f32 %v1159, %v1319
  %v1420 = vadd.f32 %v1160, %v1321
  %v1421 = vadd.f32 %v1161, %v1325
  %v1422 = vadd.f32 %v1162, %v1327
  %v1423 = vadd.f32 %v1163, %v1329
  %v1424 = vadd.f32 %v1164, %v1331
  %v1425 = vadd.f32 %v1165, %v1335
  %v1426 = vadd.f32 %v1166, %v1337
  %v1427 = vadd.f32 %v1167, %v1339
  %v1428 = vadd.f32 %v1168, %v1341
  %v1429 = vadd.f32 %v1169, %v1345
  %v1430 = vadd.f32 %v1170, %v1347
  %v1431 = vadd.f32 %v1171, %v1349
  %v1432 = vadd.f32 %v1172, %v1351
  %v1433 = vadd.f32 %v1173, %v1355
  %v1434 = vadd.f32 %v1174, %v1357
  %v1435 = vadd.f32 %v1175, %v1359
  %v1436 = vadd.f32 %v1176, %v1361
  %v1437 = vadd.f32 %v1177, %v1365
  %v1438 = vadd.f32 %v1178, %v1367
  %v1439 = vadd.f32 %v1179, %v1369
  %v1440 = vadd.f32 %v1180, %v1371
  %v1441 = vadd.f32 %v1181, %v1375
  %v1442 = vadd.f32 %v1182, %v1377
  %v1443 = vadd.f32 %v1183, %v1379
  %v1444 = vadd.f32 %v1184, %v1381
  %v1445 = vadd.f32 %v1185, %v1385
  %v1446 = vadd.f32 %v1186, %v1387
  %v1447 = vadd.f32 %v1187, %v1389
  %v1448 = vadd.f32 %v1188, %v1391
  %v1449 = vld [vmem:[%s2] sm:$0x3]
  %v1451 = vlaneseq
  %v1452 = vshrl.u32 %v1451, 7
  %v1453 = vsub.s32 0, %v1452
  %v1454 = vrot.slane %v1449, %v1453
  %v1455 = vlaneseq
  %v1456 = vshrl.u32 %v1455, 7
  %v1457 = vsub.s32 1, %v1456
  %v1458 = vrot.slane %v1449, %v1457
  %v1461 = vadd.f32 %v1393, %v1454
  %v1462 = vadd.f32 %v1394, %v1458
  %v1463 = vadd.f32 %v1395, %v1454
  %v1464 = vadd.f32 %v1396, %v1458
  %v1465 = vadd.f32 %v1397, %v1454
  %v1466 = vadd.f32 %v1398, %v1458
  %v1467 = vadd.f32 %v1399, %v1454
  %v1468 = vadd.f32 %v1400, %v1458
  %v1469 = vadd.f32 %v1401, %v1454
  %v1470 = vadd.f32 %v1402, %v1458
  %v1471 = vadd.f32 %v1403, %v1454
  %v1472 = vadd.f32 %v1404, %v1458
  %v1473 = vadd.f32 %v1405, %v1454
  %v1474 = vadd.f32 %v1406, %v1458
  %v1475 = vadd.f32 %v1407, %v1454
  %v1476 = vadd.f32 %v1408, %v1458
  %v1477 = vadd.f32 %v1409, %v1454
  %v1478 = vadd.f32 %v1410, %v1458
  %v1479 = vadd.f32 %v1411, %v1454
  %v1480 = vadd.f32 %v1412, %v1458
  %v1481 = vadd.f32 %v1413, %v1454
  %v1482 = vadd.f32 %v1414, %v1458
  %v1483 = vadd.f32 %v1415, %v1454
  %v1484 = vadd.f32 %v1416, %v1458
  %v1485 = vadd.f32 %v1417, %v1454
  %v1486 = vadd.f32 %v1418, %v1458
  %v1487 = vadd.f32 %v1419, %v1454
  %v1488 = vadd.f32 %v1420, %v1458
  %v1489 = vadd.f32 %v1421, %v1454
  %v1490 = vadd.f32 %v1422, %v1458
  %v1491 = vadd.f32 %v1423, %v1454
  %v1492 = vadd.f32 %v1424, %v1458
  %v1493 = vadd.f32 %v1425, %v1454
  %v1494 = vadd.f32 %v1426, %v1458
  %v1495 = vadd.f32 %v1427, %v1454
  %v1496 = vadd.f32 %v1428, %v1458
  %v1497 = vadd.f32 %v1429, %v1454
  %v1498 = vadd.f32 %v1430, %v1458
  %v1499 = vadd.f32 %v1431, %v1454
  %v1500 = vadd.f32 %v1432, %v1458
  %v1501 = vadd.f32 %v1433, %v1454
  %v1502 = vadd.f32 %v1434, %v1458
  %v1503 = vadd.f32 %v1435, %v1454
  %v1504 = vadd.f32 %v1436, %v1458
  %v1505 = vadd.f32 %v1437, %v1454
  %v1506 = vadd.f32 %v1438, %v1458
  %v1507 = vadd.f32 %v1439, %v1454
  %v1508 = vadd.f32 %v1440, %v1458
  %v1509 = vadd.f32 %v1441, %v1454
  %v1510 = vadd.f32 %v1442, %v1458
  %v1511 = vadd.f32 %v1443, %v1454
  %v1512 = vadd.f32 %v1444, %v1458
  %v1513 = vadd.f32 %v1445, %v1454
  %v1514 = vadd.f32 %v1446, %v1458
  %v1515 = vadd.f32 %v1447, %v1454
  %v1516 = vadd.f32 %v1448, %v1458
  %v1517 = vmax.f32 %v1461, 0.0
  %v1518 = vmax.f32 %v1462, 0.0
  %v1519 = vmax.f32 %v1463, 0.0
  %v1520 = vmax.f32 %v1464, 0.0
  %v1521 = vmax.f32 %v1465, 0.0
  %v1522 = vmax.f32 %v1466, 0.0
  %v1523 = vmax.f32 %v1467, 0.0
  %v1524 = vmax.f32 %v1468, 0.0
  %v1525 = vmax.f32 %v1469, 0.0
  %v1526 = vmax.f32 %v1470, 0.0
  %v1527 = vmax.f32 %v1471, 0.0
  %v1528 = vmax.f32 %v1472, 0.0
  %v1529 = vmax.f32 %v1473, 0.0
  %v1530 = vmax.f32 %v1474, 0.0
  %v1531 = vmax.f32 %v1475, 0.0
  %v1532 = vmax.f32 %v1476, 0.0
  %v1533 = vmax.f32 %v1477, 0.0
  %v1534 = vmax.f32 %v1478, 0.0
  %v1535 = vmax.f32 %v1479, 0.0
  %v1536 = vmax.f32 %v1480, 0.0
  %v1537 = vmax.f32 %v1481, 0.0
  %v1538 = vmax.f32 %v1482, 0.0
  %v1539 = vmax.f32 %v1483, 0.0
  %v1540 = vmax.f32 %v1484, 0.0
  %v1541 = vmax.f32 %v1485, 0.0
  %v1542 = vmax.f32 %v1486, 0.0
  %v1543 = vmax.f32 %v1487, 0.0
  %v1544 = vmax.f32 %v1488, 0.0
  %v1545 = vmax.f32 %v1489, 0.0
  %v1546 = vmax.f32 %v1490, 0.0
  %v1547 = vmax.f32 %v1491, 0.0
  %v1548 = vmax.f32 %v1492, 0.0
  %v1549 = vmax.f32 %v1493, 0.0
  %v1550 = vmax.f32 %v1494, 0.0
  %v1551 = vmax.f32 %v1495, 0.0
  %v1552 = vmax.f32 %v1496, 0.0
  %v1553 = vmax.f32 %v1497, 0.0
  %v1554 = vmax.f32 %v1498, 0.0
  %v1555 = vmax.f32 %v1499, 0.0
  %v1556 = vmax.f32 %v1500, 0.0
  %v1557 = vmax.f32 %v1501, 0.0
  %v1558 = vmax.f32 %v1502, 0.0
  %v1559 = vmax.f32 %v1503, 0.0
  %v1560 = vmax.f32 %v1504, 0.0
  %v1561 = vmax.f32 %v1505, 0.0
  %v1562 = vmax.f32 %v1506, 0.0
  %v1563 = vmax.f32 %v1507, 0.0
  %v1564 = vmax.f32 %v1508, 0.0
  %v1565 = vmax.f32 %v1509, 0.0
  %v1566 = vmax.f32 %v1510, 0.0
  %v1567 = vmax.f32 %v1511, 0.0
  %v1568 = vmax.f32 %v1512, 0.0
  %v1569 = vmax.f32 %v1513, 0.0
  %v1570 = vmax.f32 %v1514, 0.0
  %v1571 = vmax.f32 %v1515, 0.0
  %v1572 = vmax.f32 %v1516, 0.0
  %v1573 = vmax.f32 %v1517, %v1519
  %v1574 = vmax.f32 %v1518, %v1520
  %v1575 = vmax.f32 %v1521, %v1523
  %v1576 = vmax.f32 %v1522, %v1524
  %v1577 = vmax.f32 %v1525, %v1527
  %v1578 = vmax.f32 %v1526, %v1528
  %v1579 = vmax.f32 %v1529, %v1531
  %v1580 = vmax.f32 %v1530, %v1532
  %v1581 = vmax.f32 %v1533, %v1535
  %v1582 = vmax.f32 %v1534, %v1536
  %v1583 = vmax.f32 %v1537, %v1539
  %v1584 = vmax.f32 %v1538, %v1540
  %v1585 = vmax.f32 %v1541, %v1543
  %v1586 = vmax.f32 %v1542, %v1544
  %v1587 = vmax.f32 %v1545, %v1547
  %v1588 = vmax.f32 %v1546, %v1548
  %v1589 = vmax.f32 %v1549, %v1551
  %v1590 = vmax.f32 %v1550, %v1552
  %v1591 = vmax.f32 %v1553, %v1555
  %v1592 = vmax.f32 %v1554, %v1556
  %v1593 = vmax.f32 %v1557, %v1559
  %v1594 = vmax.f32 %v1558, %v1560
  %v1595 = vmax.f32 %v1561, %v1563
  %v1596 = vmax.f32 %v1562, %v1564
  %v1597 = vmax.f32 %v1565, %v1567
  %v1598 = vmax.f32 %v1566, %v1568
  %v1599 = vmax.f32 %v1569, %v1571
  %v1600 = vmax.f32 %v1570, %v1572
  %1629 = vrot.lane.b32.xlu0 %v1573, 122
  %v1630 = vpop.permute.xlu0 %1629
  %1631 = vrot.lane.b32.xlu0 %v1574, 122
  %v1632 = vpop.permute.xlu0 %1631
  %1633 = vrot.lane.b32.xlu0 %v1575, 122
  %v1634 = vpop.permute.xlu0 %1633
  %1635 = vrot.lane.b32.xlu0 %v1576, 122
  %v1636 = vpop.permute.xlu0 %1635
  %1637 = vrot.lane.b32.xlu0 %v1577, 122
  %v1638 = vpop.permute.xlu0 %1637
  %1639 = vrot.lane.b32.xlu0 %v1578, 122
  %v1640 = vpop.permute.xlu0 %1639
  %1641 = vrot.lane.b32.xlu0 %v1579, 122
  %v1642 = vpop.permute.xlu0 %1641
  %1643 = vrot.lane.b32.xlu0 %v1580, 122
  %v1644 = vpop.permute.xlu0 %1643
  %1645 = vrot.lane.b32.xlu0 %v1581, 122
  %v1646 = vpop.permute.xlu0 %1645
  %1647 = vrot.lane.b32.xlu0 %v1582, 122
  %v1648 = vpop.permute.xlu0 %1647
  %1649 = vrot.lane.b32.xlu0 %v1583, 122
  %v1650 = vpop.permute.xlu0 %1649
  %1651 = vrot.lane.b32.xlu0 %v1584, 122
  %v1652 = vpop.permute.xlu0 %1651
  %1653 = vrot.lane.b32.xlu0 %v1585, 122
  %v1654 = vpop.permute.xlu0 %1653
  %1655 = vrot.lane.b32.xlu0 %v1586, 122
  %v1656 = vpop.permute.xlu0 %1655
  %1657 = vrot.lane.b32.xlu0 %v1587, 122
  %v1658 = vpop.permute.xlu0 %1657
  %1659 = vrot.lane.b32.xlu0 %v1588, 122
  %v1660 = vpop.permute.xlu0 %1659
  %1661 = vrot.lane.b32.xlu0 %v1589, 122
  %v1662 = vpop.permute.xlu0 %1661
  %1663 = vrot.lane.b32.xlu0 %v1590, 122
  %v1664 = vpop.permute.xlu0 %1663
  %1665 = vrot.lane.b32.xlu0 %v1591, 122
  %v1666 = vpop.permute.xlu0 %1665
  %1667 = vrot.lane.b32.xlu0 %v1592, 122
  %v1668 = vpop.permute.xlu0 %1667
  %1669 = vrot.lane.b32.xlu0 %v1593, 122
  %v1670 = vpop.permute.xlu0 %1669
  %1671 = vrot.lane.b32.xlu0 %v1594, 122
  %v1672 = vpop.permute.xlu0 %1671
  %1673 = vrot.lane.b32.xlu0 %v1595, 122
  %v1674 = vpop.permute.xlu0 %1673
  %1675 = vrot.lane.b32.xlu0 %v1596, 122
  %v1676 = vpop.permute.xlu0 %1675
  %1677 = vrot.lane.b32.xlu0 %v1597, 122
  %v1678 = vpop.permute.xlu0 %1677
  %1679 = vrot.lane.b32.xlu0 %v1598, 122
  %v1680 = vpop.permute.xlu0 %1679
  %1681 = vrot.lane.b32.xlu0 %v1599, 122
  %v1682 = vpop.permute.xlu0 %1681
  %1683 = vrot.lane.b32.xlu0 %v1600, 122
  %v1684 = vpop.permute.xlu0 %1683
  %vm1685 = vcmask 998400
  %v1686 = vsel %vm1685, %v1630, %v1632
  %v1687 = vsel %vm1685, %v1634, %v1636
  %v1688 = vsel %vm1685, %v1638, %v1640
  %v1689 = vsel %vm1685, %v1642, %v1644
  %v1690 = vsel %vm1685, %v1646, %v1648
  %v1691 = vsel %vm1685, %v1650, %v1652
  %v1692 = vsel %vm1685, %v1654, %v1656
  %v1693 = vsel %vm1685, %v1658, %v1660
  %v1694 = vsel %vm1685, %v1662, %v1664
  %v1695 = vsel %vm1685, %v1666, %v1668
  %v1696 = vsel %vm1685, %v1670, %v1672
  %v1697 = vsel %vm1685, %v1674, %v1676
  %v1698 = vsel %vm1685, %v1678, %v1680
  %v1699 = vsel %vm1685, %v1682, %v1684
  %v1728 = vmax.f32 %v1573, %v1686
  %v1729 = vmax.f32 %v1574, %v1632
  %v1730 = vmax.f32 %v1575, %v1687
  %v1731 = vmax.f32 %v1576, %v1636
  %v1732 = vmax.f32 %v1577, %v1688
  %v1733 = vmax.f32 %v1578, %v1640
  %v1734 = vmax.f32 %v1579, %v1689
  %v1735 = vmax.f32 %v1580, %v1644
  %v1736 = vmax.f32 %v1581, %v1690
  %v1737 = vmax.f32 %v1582, %v1648
  %v1738 = vmax.f32 %v1583, %v1691
  %v1739 = vmax.f32 %v1584, %v1652
  %v1740 = vmax.f32 %v1585, %v1692
  %v1741 = vmax.f32 %v1586, %v1656
  %v1742 = vmax.f32 %v1587, %v1693
  %v1743 = vmax.f32 %v1588, %v1660
  %v1744 = vmax.f32 %v1589, %v1694
  %v1745 = vmax.f32 %v1590, %v1664
  %v1746 = vmax.f32 %v1591, %v1695
  %v1747 = vmax.f32 %v1592, %v1668
  %v1748 = vmax.f32 %v1593, %v1696
  %v1749 = vmax.f32 %v1594, %v1672
  %v1750 = vmax.f32 %v1595, %v1697
  %v1751 = vmax.f32 %v1596, %v1676
  %v1752 = vmax.f32 %v1597, %v1698
  %v1753 = vmax.f32 %v1598, %v1680
  %v1754 = vmax.f32 %v1599, %v1699
  %v1755 = vmax.f32 %v1600, %v1684
  %v1756 = vpack.c.bf16 %v1728, %v1728
  %v1757 = vpack.c.bf16 %v1729, %v1729
  %v1758 = vpack.c.bf16 %v1730, %v1730
  %v1759 = vpack.c.bf16 %v1731, %v1731
  %v1760 = vpack.c.bf16 %v1732, %v1732
  %v1761 = vpack.c.bf16 %v1733, %v1733
  %v1762 = vpack.c.bf16 %v1734, %v1734
  %v1763 = vpack.c.bf16 %v1735, %v1735
  %v1764 = vpack.c.bf16 %v1736, %v1736
  %v1765 = vpack.c.bf16 %v1737, %v1737
  %v1766 = vpack.c.bf16 %v1738, %v1738
  %v1767 = vpack.c.bf16 %v1739, %v1739
  %v1768 = vpack.c.bf16 %v1740, %v1740
  %v1769 = vpack.c.bf16 %v1741, %v1741
  %v1770 = vpack.c.bf16 %v1742, %v1742
  %v1771 = vpack.c.bf16 %v1743, %v1743
  %v1772 = vpack.c.bf16 %v1744, %v1744
  %v1773 = vpack.c.bf16 %v1745, %v1745
  %v1774 = vpack.c.bf16 %v1746, %v1746
  %v1775 = vpack.c.bf16 %v1747, %v1747
  %v1776 = vpack.c.bf16 %v1748, %v1748
  %v1777 = vpack.c.bf16 %v1749, %v1749
  %v1778 = vpack.c.bf16 %v1750, %v1750
  %v1779 = vpack.c.bf16 %v1751, %v1751
  %v1780 = vpack.c.bf16 %v1752, %v1752
  %v1781 = vpack.c.bf16 %v1753, %v1753
  %v1782 = vpack.c.bf16 %v1754, %v1754
  %v1783 = vpack.c.bf16 %v1755, %v1755
  %v1804 = vunpack.c.l.b16 %v1756
  %v1805 = vunpack.c.l.b16 %v1757
  %v1806 = vunpack.c.l.b16 %v1758
  %v1807 = vunpack.c.l.b16 %v1759
  %v1808 = vunpack.c.l.b16 %v1760
  %v1809 = vunpack.c.l.b16 %v1761
  %v1810 = vunpack.c.l.b16 %v1762
  %v1811 = vunpack.c.l.b16 %v1763
  %v1812 = vunpack.c.l.b16 %v1764
  %v1813 = vunpack.c.l.b16 %v1765
  %v1814 = vunpack.c.l.b16 %v1766
  %v1815 = vunpack.c.l.b16 %v1767
  %v1816 = vunpack.c.l.b16 %v1768
  %v1817 = vunpack.c.l.b16 %v1769
  %v1818 = vunpack.c.l.b16 %v1770
  %v1819 = vunpack.c.l.b16 %v1771
  %v1820 = vunpack.c.l.b16 %v1772
  %v1821 = vunpack.c.l.b16 %v1773
  %v1822 = vunpack.c.l.b16 %v1774
  %v1823 = vunpack.c.l.b16 %v1775
  %v1824 = vld [vmem:[%s3] sm:$0xff]
  %v1825 = vld [vmem:[%s3 + $0x8] sm:$0xff]
  %v1826 = vld [vmem:[%s3 + $0x10] sm:$0xff]
  %v1827 = vld [vmem:[%s3 + $0x18] sm:$0xff]
  %v1828 = vld [vmem:[%s3 + $0x20] sm:$0xff]
  %v1829 = vld [vmem:[%s3 + $0x28] sm:$0xff]
  %v1830 = vld [vmem:[%s3 + $0x30] sm:$0xff]
  %v1831 = vld [vmem:[%s3 + $0x38] sm:$0xff]
  %v1832 = vld [vmem:[%s3 + $0x40] sm:$0xff]
  %v1833 = vld [vmem:[%s3 + $0x48] sm:$0xff]
  %v1834 = vld [vmem:[%s3 + $0x50] sm:$0xff]
  %v1835 = vld [vmem:[%s3 + $0x58] sm:$0xff]
  %v1836 = vld [vmem:[%s3 + $0x60] sm:$0xff]
  %v1837 = vld [vmem:[%s3 + $0x68] sm:$0xff]
  %v1838 = vld [vmem:[%s3 + $0x70] sm:$0xff]
  %v1839 = vld [vmem:[%s3 + $0x78] sm:$0xff]
  %v1840 = vld [vmem:[%s3 + $0x80] sm:$0xff]
  %v1841 = vld [vmem:[%s3 + $0x88] sm:$0xff]
  %v1842 = vld [vmem:[%s3 + $0x90] sm:$0xff]
  %v1843 = vld [vmem:[%s3 + $0x98] sm:$0xff]
  %v1844 = vld [vmem:[%s3 + $0xa0] sm:$0x11]
  %v1847 = vunpack.c.l.b16 %v1776
  %v1848 = vunpack.c.l.b16 %v1777
  %s1849 = scalar_lea.vmem %s3, 168
  %v1850 = vld [vmem:[%s1849] sm:$0xff]
  %v1851 = vld [vmem:[%s1849 + $0x8] sm:$0xff]
  %v1852 = vld [vmem:[%s1849 + $0x10] sm:$0xff]
  %v1853 = vld [vmem:[%s1849 + $0x18] sm:$0xff]
  %v1854 = vld [vmem:[%s1849 + $0x20] sm:$0xff]
  %v1855 = vld [vmem:[%s1849 + $0x28] sm:$0xff]
  %v1856 = vld [vmem:[%s1849 + $0x30] sm:$0xff]
  %v1857 = vld [vmem:[%s1849 + $0x38] sm:$0xff]
  %v1858 = vld [vmem:[%s1849 + $0x40] sm:$0xff]
  %v1859 = vld [vmem:[%s1849 + $0x48] sm:$0xff]
  %v1860 = vld [vmem:[%s1849 + $0x50] sm:$0xff]
  %v1861 = vld [vmem:[%s1849 + $0x58] sm:$0xff]
  %v1862 = vld [vmem:[%s1849 + $0x60] sm:$0xff]
  %v1863 = vld [vmem:[%s1849 + $0x68] sm:$0xff]
  %v1864 = vld [vmem:[%s1849 + $0x70] sm:$0xff]
  %v1865 = vld [vmem:[%s1849 + $0x78] sm:$0xff]
  %v1866 = vld [vmem:[%s1849 + $0x80] sm:$0xff]
  %v1867 = vld [vmem:[%s1849 + $0x88] sm:$0xff]
  %v1868 = vld [vmem:[%s1849 + $0x90] sm:$0xff]
  %v1869 = vld [vmem:[%s1849 + $0x98] sm:$0xff]
  %v1870 = vld [vmem:[%s1849 + $0xa0] sm:$0x11]
  %v1871 = vpack.c.b16 %v1808, %v1806
  %v1872 = vpack.c.b16 %v1809, %v1807
  %v1873 = vpack.c.b16 %v1812, %v1810
  %v1874 = vpack.c.b16 %v1813, %v1811
  %v1875 = vpack.c.b16 %v1816, %v1814
  %v1876 = vpack.c.b16 %v1817, %v1815
  %v1877 = vpack.c.b16 %v1820, %v1818
  %v1878 = vpack.c.b16 %v1821, %v1819
  %v1879 = vpack.c.b16 %v1847, %v1822
  %v1880 = vpack.c.b16 %v1848, %v1823
  %v1907 = vunpack.c.l.b16 %v1850
  %v1908 = vunpack.c.h.b16 %v1850
  %v1909 = vunpack.c.l.b16 %v1851
  %v1910 = vunpack.c.h.b16 %v1851
  %v1911 = vunpack.c.l.b16 %v1852
  %v1912 = vunpack.c.h.b16 %v1852
  %v1913 = vunpack.c.l.b16 %v1853
  %v1914 = vunpack.c.h.b16 %v1853
  %v1915 = vunpack.c.l.b16 %v1854
  %v1916 = vunpack.c.h.b16 %v1854
  %v1917 = vunpack.c.l.b16 %v1855
  %v1918 = vunpack.c.h.b16 %v1855
  %v1919 = vunpack.c.l.b16 %v1856
  %v1920 = vunpack.c.h.b16 %v1856
  %v1921 = vunpack.c.l.b16 %v1857
  %v1922 = vunpack.c.h.b16 %v1857
  %v1923 = vunpack.c.l.b16 %v1858
  %v1924 = vunpack.c.h.b16 %v1858
  %v1925 = vunpack.c.l.b16 %v1859
  %v1926 = vunpack.c.h.b16 %v1859
  %v1927 = vunpack.c.l.b16 %v1860
  %v1928 = vunpack.c.h.b16 %v1860
  %v1929 = vunpack.c.l.b16 %v1861
  %v1930 = vunpack.c.h.b16 %v1861
  %v1931 = vunpack.c.l.b16 %v1862
  %v1932 = vunpack.c.h.b16 %v1862
  %v1933 = vunpack.c.l.b16 %v1863
  %v1934 = vunpack.c.h.b16 %v1863
  %v1935 = vunpack.c.l.b16 %v1864
  %v1936 = vunpack.c.h.b16 %v1864
  %v1937 = vunpack.c.l.b16 %v1865
  %v1938 = vunpack.c.h.b16 %v1865
  %v1939 = vunpack.c.l.b16 %v1866
  %v1940 = vunpack.c.h.b16 %v1866
  %v1941 = vunpack.c.l.b16 %v1867
  %v1942 = vunpack.c.h.b16 %v1867
  %v1943 = vunpack.c.l.b16 %v1868
  %v1944 = vunpack.c.h.b16 %v1868
  %v1945 = vunpack.c.l.b16 %v1869
  %v1946 = vunpack.c.h.b16 %v1869
  %v1947 = vunpack.c.l.b16 %v1870
  %v1948 = vunpack.c.h.b16 %v1870
  %v1949 = vpack.c.b16 %v1909, %v1907
  %v1950 = vpack.c.b16 %v1910, %v1908
  %v1951 = vpack.c.b16 %v1913, %v1911
  %v1952 = vpack.c.b16 %v1914, %v1912
  %v1953 = vpack.c.b16 %v1917, %v1915
  %v1954 = vpack.c.b16 %v1918, %v1916
  %v1955 = vpack.c.b16 %v1921, %v1919
  %v1956 = vpack.c.b16 %v1922, %v1920
  %v1957 = vpack.c.b16 %v1925, %v1923
  %v1958 = vpack.c.b16 %v1926, %v1924
  %v1959 = vpack.c.b16 %v1929, %v1927
  %v1960 = vpack.c.b16 %v1930, %v1928
  %v1961 = vpack.c.b16 %v1933, %v1931
  %v1962 = vpack.c.b16 %v1934, %v1932
  %v1963 = vpack.c.b16 %v1937, %v1935
  %v1964 = vpack.c.b16 %v1938, %v1936
  %v1965 = vpack.c.b16 %v1941, %v1939
  %v1966 = vpack.c.b16 %v1942, %v1940
  %v1967 = vpack.c.b16 %v1945, %v1943
  %v1968 = vpack.c.b16 %v1946, %v1944
  %v1969 = vpack.c.b16 %v1947, %v1947
  %v1970 = vpack.c.b16 %v1948, %v1948
  %vm1991 = vcmask 277504
  %v1993 = vsel %vm1991, %v1872, 0
  %v1996 = vsel %vm1991, %v1874, 0
  %v1999 = vsel %vm1991, %v1876, 0
  %v2002 = vsel %vm1991, %v1878, 0
  %v2005 = vsel %vm1991, %v1880, 0
  %vm2007 = vcmask 1040384
  %v2009 = vsel %vm2007, %v1969, 0
  %v2012 = vsel %vm2007, %v1970, 0
  %2014 = vmatprep.subr.bf16.mxu0 %v1950
  %2015 = vmatpush1.bf16.msra.mxu0 %v1949
  %2016 = vmatprep.subr.bf16.mxu0 %v1952
  %2017 = vmatpush1.bf16.msra.mxu0 %v1951
  %2018 = vmatprep.subr.bf16.mxu0 %v1954
  %2019 = vmatpush1.bf16.msra.mxu0 %v1953
  %2020 = vmatprep.subr.bf16.mxu0 %v1956
  %2021 = vmatpush1.bf16.msra.mxu0 %v1955
  %2022 = vmatprep.subr.bf16.mxu0 %v1958
  %2023 = vmatpush1.bf16.msra.mxu0 %v1957
  %2024 = vmatprep.subr.bf16.mxu0 %v1960
  %2025 = vmatpush1.bf16.msra.mxu0 %v1959
  %2026 = vmatprep.subr.bf16.mxu0 %v1962
  %2027 = vmatpush1.bf16.msra.mxu0 %v1961
  %2028 = vmatprep.subr.bf16.mxu0 %v1964
  %2029 = vmatpush1.bf16.msra.mxu0 %v1963
  %2030 = vmatprep.subr.bf16.mxu0 %v1966
  %2031 = vmatpush1.bf16.msra.mxu0 %v1965
  %2032 = vmatprep.subr.bf16.mxu0 %v1968
  %2033 = vmatpush1.bf16.msra.mxu0 %v1967
  %2034 = vmatprep.subr.bf16.mxu0 %v2012
  %2035 = vmatpush1.bf16.msra.mxu0 %v2009
  %2036 = vmatprep.subr.bf16.mxu0 0
  %2037 = vmatpush1.bf16.msra.mxu0 0
  %2038 = vmatprep.subr.bf16.mxu0 0
  %2039 = vmatpush1.bf16.msra.mxu0 0
  %2040 = vmatprep.subr.bf16.mxu0 0
  %2041 = vmatpush1.bf16.msra.mxu0 0
  %2042 = vmatprep.subr.bf16.mxu0 0
  %2043 = vmatpush1.bf16.msra.mxu0 0
  %2044 = vmatprep.subr.bf16.mxu0 0
  %2045 = vmatpush1.bf16.msra.mxu0 0
  %2046 = vmatprep.mubr.bf16.mxu0 %v1993
  %2047 = vmatmul.mubr.bf16.gmra.mrb[0].mxu0 %v1871
  %v2048 = vpop.f32.mrb[0].mxu0
  %v2049 = vadd.f32 0.0, %v2048
  %v2050 = vpop.f32.mrb[0].mxu0
  %v2051 = vadd.f32 0.0, %v2050
  %v2052 = vpop.f32.mrb[0].mxu0
  %v2053 = vadd.f32 0.0, %v2052
  %v2054 = vpop.f32.mrb[0].mxu0
  %v2055 = vadd.f32 0.0, %v2054
  %2056 = vmatprep.mubr.bf16.mxu0 %v1996
  %2057 = vmatmul.mubr.bf16.gmra.mrb[0].mxu0 %v1873
  %v2058 = vpop.f32.mrb[0].mxu0
  %v2059 = vadd.f32 0.0, %v2058
  %v2060 = vpop.f32.mrb[0].mxu0
  %v2061 = vadd.f32 0.0, %v2060
  %v2062 = vpop.f32.mrb[0].mxu0
  %v2063 = vadd.f32 0.0, %v2062
  %v2064 = vpop.f32.mrb[0].mxu0
  %v2065 = vadd.f32 0.0, %v2064
  %2066 = vmatprep.mubr.bf16.mxu0 %v1999
  %2067 = vmatmul.mubr.bf16.gmra.mrb[0].mxu0 %v1875
  %v2068 = vpop.f32.mrb[0].mxu0
  %v2069 = vadd.f32 0.0, %v2068
  %v2070 = vpop.f32.mrb[0].mxu0
  %v2071 = vadd.f32 0.0, %v2070
  %v2072 = vpop.f32.mrb[0].mxu0
  %v2073 = vadd.f32 0.0, %v2072
  %v2074 = vpop.f32.mrb[0].mxu0
  %v2075 = vadd.f32 0.0, %v2074
  %2076 = vmatprep.mubr.bf16.mxu0 %v2002
  %2077 = vmatmul.mubr.bf16.gmra.mrb[0].mxu0 %v1877
  %v2078 = vpop.f32.mrb[0].mxu0
  %v2079 = vadd.f32 0.0, %v2078
  %v2080 = vpop.f32.mrb[0].mxu0
  %v2081 = vadd.f32 0.0, %v2080
  %v2082 = vpop.f32.mrb[0].mxu0
  %v2083 = vadd.f32 0.0, %v2082
  %v2084 = vpop.f32.mrb[0].mxu0
  %v2085 = vadd.f32 0.0, %v2084
  %2086 = vmatprep.mubr.bf16.mxu0 %v2005
  %2087 = vmatmul.mubr.bf16.gmra.mrb[0].mxu0 %v1879
  %v2088 = vpop.f32.mrb[0].mxu0
  %v2089 = vadd.f32 0.0, %v2088
  %v2090 = vpop.f32.mrb[0].mxu0
  %v2091 = vadd.f32 0.0, %v2090
  %v2092 = vpop.f32.mrb[0].mxu0
  %v2093 = vadd.f32 0.0, %v2092
  %v2094 = vpop.f32.mrb[0].mxu0
  %v2095 = vadd.f32 0.0, %v2094
  %2096 = vdwg.mxu0
  %v2097 = vpack.c.b16 %v1806, %v1804
  %v2098 = vpack.c.b16 %v1807, %v1805
  %v2099 = vpack.c.b16 %v1810, %v1808
  %v2100 = vpack.c.b16 %v1811, %v1809
  %v2101 = vpack.c.b16 %v1814, %v1812
  %v2102 = vpack.c.b16 %v1815, %v1813
  %v2103 = vpack.c.b16 %v1818, %v1816
  %v2104 = vpack.c.b16 %v1819, %v1817
  %v2105 = vpack.c.b16 %v1822, %v1820
  %v2106 = vpack.c.b16 %v1823, %v1821
  %v2133 = vunpack.c.l.b16 %v1824
  %v2134 = vunpack.c.h.b16 %v1824
  %v2135 = vunpack.c.l.b16 %v1825
  %v2136 = vunpack.c.h.b16 %v1825
  %v2137 = vunpack.c.l.b16 %v1826
  %v2138 = vunpack.c.h.b16 %v1826
  %v2139 = vunpack.c.l.b16 %v1827
  %v2140 = vunpack.c.h.b16 %v1827
  %v2141 = vunpack.c.l.b16 %v1828
  %v2142 = vunpack.c.h.b16 %v1828
  %v2143 = vunpack.c.l.b16 %v1829
  %v2144 = vunpack.c.h.b16 %v1829
  %v2145 = vunpack.c.l.b16 %v1830
  %v2146 = vunpack.c.h.b16 %v1830
  %v2147 = vunpack.c.l.b16 %v1831
  %v2148 = vunpack.c.h.b16 %v1831
  %v2149 = vunpack.c.l.b16 %v1832
  %v2150 = vunpack.c.h.b16 %v1832
  %v2151 = vunpack.c.l.b16 %v1833
  %v2152 = vunpack.c.h.b16 %v1833
  %v2153 = vunpack.c.l.b16 %v1834
  %v2154 = vunpack.c.h.b16 %v1834
  %v2155 = vunpack.c.l.b16 %v1835
  %v2156 = vunpack.c.h.b16 %v1835
  %v2157 = vunpack.c.l.b16 %v1836
  %v2158 = vunpack.c.h.b16 %v1836
  %v2159 = vunpack.c.l.b16 %v1837
  %v2160 = vunpack.c.h.b16 %v1837
  %v2161 = vunpack.c.l.b16 %v1838
  %v2162 = vunpack.c.h.b16 %v1838
  %v2163 = vunpack.c.l.b16 %v1839
  %v2164 = vunpack.c.h.b16 %v1839
  %v2165 = vunpack.c.l.b16 %v1840
  %v2166 = vunpack.c.h.b16 %v1840
  %v2167 = vunpack.c.l.b16 %v1841
  %v2168 = vunpack.c.h.b16 %v1841
  %v2169 = vunpack.c.l.b16 %v1842
  %v2170 = vunpack.c.h.b16 %v1842
  %v2171 = vunpack.c.l.b16 %v1843
  %v2172 = vunpack.c.h.b16 %v1843
  %v2173 = vunpack.c.l.b16 %v1844
  %v2174 = vunpack.c.h.b16 %v1844
  %v2175 = vpack.c.b16 %v2135, %v2133
  %v2176 = vpack.c.b16 %v2136, %v2134
  %v2177 = vpack.c.b16 %v2139, %v2137
  %v2178 = vpack.c.b16 %v2140, %v2138
  %v2179 = vpack.c.b16 %v2143, %v2141
  %v2180 = vpack.c.b16 %v2144, %v2142
  %v2181 = vpack.c.b16 %v2147, %v2145
  %v2182 = vpack.c.b16 %v2148, %v2146
  %v2183 = vpack.c.b16 %v2151, %v2149
  %v2184 = vpack.c.b16 %v2152, %v2150
  %v2185 = vpack.c.b16 %v2155, %v2153
  %v2186 = vpack.c.b16 %v2156, %v2154
  %v2187 = vpack.c.b16 %v2159, %v2157
  %v2188 = vpack.c.b16 %v2160, %v2158
  %v2189 = vpack.c.b16 %v2163, %v2161
  %v2190 = vpack.c.b16 %v2164, %v2162
  %v2191 = vpack.c.b16 %v2167, %v2165
  %v2192 = vpack.c.b16 %v2168, %v2166
  %v2193 = vpack.c.b16 %v2171, %v2169
  %v2194 = vpack.c.b16 %v2172, %v2170
  %v2195 = vpack.c.b16 %v2173, %v2173
  %v2196 = vpack.c.b16 %v2174, %v2174
  %v2218 = vsel %vm1991, %v2098, 0
  %v2221 = vsel %vm1991, %v2100, 0
  %v2224 = vsel %vm1991, %v2102, 0
  %v2227 = vsel %vm1991, %v2104, 0
  %v2230 = vsel %vm1991, %v2106, 0
  %v2233 = vsel %vm2007, %v2195, 0
  %v2236 = vsel %vm2007, %v2196, 0
  %2238 = vmatprep.subr.bf16.mxu0 %v2176
  %2239 = vmatpush1.bf16.msra.mxu0 %v2175
  %2240 = vmatprep.subr.bf16.mxu0 %v2178
  %2241 = vmatpush1.bf16.msra.mxu0 %v2177
  %2242 = vmatprep.subr.bf16.mxu0 %v2180
  %2243 = vmatpush1.bf16.msra.mxu0 %v2179
  %2244 = vmatprep.subr.bf16.mxu0 %v2182
  %2245 = vmatpush1.bf16.msra.mxu0 %v2181
  %2246 = vmatprep.subr.bf16.mxu0 %v2184
  %2247 = vmatpush1.bf16.msra.mxu0 %v2183
  %2248 = vmatprep.subr.bf16.mxu0 %v2186
  %2249 = vmatpush1.bf16.msra.mxu0 %v2185
  %2250 = vmatprep.subr.bf16.mxu0 %v2188
  %2251 = vmatpush1.bf16.msra.mxu0 %v2187
  %2252 = vmatprep.subr.bf16.mxu0 %v2190
  %2253 = vmatpush1.bf16.msra.mxu0 %v2189
  %2254 = vmatprep.subr.bf16.mxu0 %v2192
  %2255 = vmatpush1.bf16.msra.mxu0 %v2191
  %2256 = vmatprep.subr.bf16.mxu0 %v2194
  %2257 = vmatpush1.bf16.msra.mxu0 %v2193
  %2258 = vmatprep.subr.bf16.mxu0 %v2236
  %2259 = vmatpush1.bf16.msra.mxu0 %v2233
  %2260 = vmatprep.subr.bf16.mxu0 0
  %2261 = vmatpush1.bf16.msra.mxu0 0
  %2262 = vmatprep.subr.bf16.mxu0 0
  %2263 = vmatpush1.bf16.msra.mxu0 0
  %2264 = vmatprep.subr.bf16.mxu0 0
  %2265 = vmatpush1.bf16.msra.mxu0 0
  %2266 = vmatprep.subr.bf16.mxu0 0
  %2267 = vmatpush1.bf16.msra.mxu0 0
  %2268 = vmatprep.subr.bf16.mxu0 0
  %2269 = vmatpush1.bf16.msra.mxu0 0
  %2270 = vmatprep.mubr.bf16.mxu0 %v2218
  %2271 = vmatmul.mubr.bf16.gmra.mrb[0].mxu0 %v2097
  %v2272 = vpop.f32.mrb[0].mxu0
  %v2273 = vadd.f32 %v2049, %v2272
  %v2274 = vpop.f32.mrb[0].mxu0
  %v2275 = vadd.f32 %v2051, %v2274
  %v2276 = vpop.f32.mrb[0].mxu0
  %v2277 = vadd.f32 %v2053, %v2276
  %v2278 = vpop.f32.mrb[0].mxu0
  %v2279 = vadd.f32 %v2055, %v2278
  %2280 = vmatprep.mubr.bf16.mxu0 %v2221
  %2281 = vmatmul.mubr.bf16.gmra.mrb[0].mxu0 %v2099
  %v2282 = vpop.f32.mrb[0].mxu0
  %v2283 = vadd.f32 %v2059, %v2282
  %v2284 = vpop.f32.mrb[0].mxu0
  %v2285 = vadd.f32 %v2061, %v2284
  %v2286 = vpop.f32.mrb[0].mxu0
  %v2287 = vadd.f32 %v2063, %v2286
  %v2288 = vpop.f32.mrb[0].mxu0
  %v2289 = vadd.f32 %v2065, %v2288
  %2290 = vmatprep.mubr.bf16.mxu0 %v2224
  %2291 = vmatmul.mubr.bf16.gmra.mrb[0].mxu0 %v2101
  %v2292 = vpop.f32.mrb[0].mxu0
  %v2293 = vadd.f32 %v2069, %v2292
  %v2294 = vpop.f32.mrb[0].mxu0
  %v2295 = vadd.f32 %v2071, %v2294
  %v2296 = vpop.f32.mrb[0].mxu0
  %v2297 = vadd.f32 %v2073, %v2296
  %v2298 = vpop.f32.mrb[0].mxu0
  %v2299 = vadd.f32 %v2075, %v2298
  %2300 = vmatprep.mubr.bf16.mxu0 %v2227
  %2301 = vmatmul.mubr.bf16.gmra.mrb[0].mxu0 %v2103
  %v2302 = vpop.f32.mrb[0].mxu0
  %v2303 = vadd.f32 %v2079, %v2302
  %v2304 = vpop.f32.mrb[0].mxu0
  %v2305 = vadd.f32 %v2081, %v2304
  %v2306 = vpop.f32.mrb[0].mxu0
  %v2307 = vadd.f32 %v2083, %v2306
  %v2308 = vpop.f32.mrb[0].mxu0
  %v2309 = vadd.f32 %v2085, %v2308
  %2310 = vmatprep.mubr.bf16.mxu0 %v2230
  %2311 = vmatmul.mubr.bf16.gmra.mrb[0].mxu0 %v2105
  %v2312 = vpop.f32.mrb[0].mxu0
  %v2313 = vadd.f32 %v2089, %v2312
  %v2314 = vpop.f32.mrb[0].mxu0
  %v2315 = vadd.f32 %v2091, %v2314
  %v2316 = vpop.f32.mrb[0].mxu0
  %v2317 = vadd.f32 %v2093, %v2316
  %v2318 = vpop.f32.mrb[0].mxu0
  %v2319 = vadd.f32 %v2095, %v2318
  %2320 = vdwg.mxu0
  %v2323 = vunpack.c.l.b16 %v1778
  %v2324 = vunpack.c.l.b16 %v1779
  %s2325 = scalar_lea.vmem %s3, 336
  %v2326 = vld [vmem:[%s2325] sm:$0xff]
  %v2327 = vld [vmem:[%s2325 + $0x8] sm:$0xff]
  %v2328 = vld [vmem:[%s2325 + $0x10] sm:$0xff]
  %v2329 = vld [vmem:[%s2325 + $0x18] sm:$0xff]
  %v2330 = vld [vmem:[%s2325 + $0x20] sm:$0xff]
  %v2331 = vld [vmem:[%s2325 + $0x28] sm:$0xff]
  %v2332 = vld [vmem:[%s2325 + $0x30] sm:$0xff]
  %v2333 = vld [vmem:[%s2325 + $0x38] sm:$0xff]
  %v2334 = vld [vmem:[%s2325 + $0x40] sm:$0xff]
  %v2335 = vld [vmem:[%s2325 + $0x48] sm:$0xff]
  %v2336 = vld [vmem:[%s2325 + $0x50] sm:$0xff]
  %v2337 = vld [vmem:[%s2325 + $0x58] sm:$0xff]
  %v2338 = vld [vmem:[%s2325 + $0x60] sm:$0xff]
  %v2339 = vld [vmem:[%s2325 + $0x68] sm:$0xff]
  %v2340 = vld [vmem:[%s2325 + $0x70] sm:$0xff]
  %v2341 = vld [vmem:[%s2325 + $0x78] sm:$0xff]
  %v2342 = vld [vmem:[%s2325 + $0x80] sm:$0xff]
  %v2343 = vld [vmem:[%s2325 + $0x88] sm:$0xff]
  %v2344 = vld [vmem:[%s2325 + $0x90] sm:$0xff]
  %v2345 = vld [vmem:[%s2325 + $0x98] sm:$0xff]
  %v2346 = vld [vmem:[%s2325 + $0xa0] sm:$0x11]
  %v2347 = vpack.c.b16 %v2323, %v1847
  %v2348 = vpack.c.b16 %v2324, %v1848
  %v2371 = vunpack.c.l.b16 %v2326
  %v2372 = vunpack.c.h.b16 %v2326
  %v2373 = vunpack.c.l.b16 %v2327
  %v2374 = vunpack.c.h.b16 %v2327
  %v2375 = vunpack.c.l.b16 %v2328
  %v2376 = vunpack.c.h.b16 %v2328
  %v2377 = vunpack.c.l.b16 %v2329
  %v2378 = vunpack.c.h.b16 %v2329
  %v2379 = vunpack.c.l.b16 %v2330
  %v2380 = vunpack.c.h.b16 %v2330
  %v2381 = vunpack.c.l.b16 %v2331
  %v2382 = vunpack.c.h.b16 %v2331
  %v2383 = vunpack.c.l.b16 %v2332
  %v2384 = vunpack.c.h.b16 %v2332
  %v2385 = vunpack.c.l.b16 %v2333
  %v2386 = vunpack.c.h.b16 %v2333
  %v2387 = vunpack.c.l.b16 %v2334
  %v2388 = vunpack.c.h.b16 %v2334
  %v2389 = vunpack.c.l.b16 %v2335
  %v2390 = vunpack.c.h.b16 %v2335
  %v2391 = vunpack.c.l.b16 %v2336
  %v2392 = vunpack.c.h.b16 %v2336
  %v2393 = vunpack.c.l.b16 %v2337
  %v2394 = vunpack.c.h.b16 %v2337
  %v2395 = vunpack.c.l.b16 %v2338
  %v2396 = vunpack.c.h.b16 %v2338
  %v2397 = vunpack.c.l.b16 %v2339
  %v2398 = vunpack.c.h.b16 %v2339
  %v2399 = vunpack.c.l.b16 %v2340
  %v2400 = vunpack.c.h.b16 %v2340
  %v2401 = vunpack.c.l.b16 %v2341
  %v2402 = vunpack.c.h.b16 %v2341
  %v2403 = vunpack.c.l.b16 %v2342
  %v2404 = vunpack.c.h.b16 %v2342
  %v2405 = vunpack.c.l.b16 %v2343
  %v2406 = vunpack.c.h.b16 %v2343
  %v2407 = vunpack.c.l.b16 %v2344
  %v2408 = vunpack.c.h.b16 %v2344
  %v2409 = vunpack.c.l.b16 %v2345
  %v2410 = vunpack.c.h.b16 %v2345
  %v2411 = vunpack.c.l.b16 %v2346
  %v2412 = vunpack.c.h.b16 %v2346
  %v2413 = vpack.c.b16 %v2373, %v2371
  %v2414 = vpack.c.b16 %v2374, %v2372
  %v2415 = vpack.c.b16 %v2377, %v2375
  %v2416 = vpack.c.b16 %v2378, %v2376
  %v2417 = vpack.c.b16 %v2381, %v2379
  %v2418 = vpack.c.b16 %v2382, %v2380
  %v2419 = vpack.c.b16 %v2385, %v2383
  %v2420 = vpack.c.b16 %v2386, %v2384
  %v2421 = vpack.c.b16 %v2389, %v2387
  %v2422 = vpack.c.b16 %v2390, %v2388
  %v2423 = vpack.c.b16 %v2393, %v2391
  %v2424 = vpack.c.b16 %v2394, %v2392
  %v2425 = vpack.c.b16 %v2397, %v2395
  %v2426 = vpack.c.b16 %v2398, %v2396
  %v2427 = vpack.c.b16 %v2401, %v2399
  %v2428 = vpack.c.b16 %v2402, %v2400
  %v2429 = vpack.c.b16 %v2405, %v2403
  %v2430 = vpack.c.b16 %v2406, %v2404
  %v2431 = vpack.c.b16 %v2409, %v2407
  %v2432 = vpack.c.b16 %v2410, %v2408
  %v2433 = vpack.c.b16 %v2411, %v2411
  %v2434 = vpack.c.b16 %v2412, %v2412
  %v2456 = vsel %vm1991, %v2348, 0
  %v2459 = vsel %vm2007, %v2433, 0
  %v2462 = vsel %vm2007, %v2434, 0
  %2464 = vmatprep.subr.bf16.mxu0 %v2414
  %2465 = vmatpush1.bf16.msra.mxu0 %v2413
  %2466 = vmatprep.subr.bf16.mxu0 %v2416
  %2467 = vmatpush1.bf16.msra.mxu0 %v2415
  %2468 = vmatprep.subr.bf16.mxu0 %v2418
  %2469 = vmatpush1.bf16.msra.mxu0 %v2417
  %2470 = vmatprep.subr.bf16.mxu0 %v2420
  %2471 = vmatpush1.bf16.msra.mxu0 %v2419
  %2472 = vmatprep.subr.bf16.mxu0 %v2422
  %2473 = vmatpush1.bf16.msra.mxu0 %v2421
  %2474 = vmatprep.subr.bf16.mxu0 %v2424
  %2475 = vmatpush1.bf16.msra.mxu0 %v2423
  %2476 = vmatprep.subr.bf16.mxu0 %v2426
  %2477 = vmatpush1.bf16.msra.mxu0 %v2425
  %2478 = vmatprep.subr.bf16.mxu0 %v2428
  %2479 = vmatpush1.bf16.msra.mxu0 %v2427
  %2480 = vmatprep.subr.bf16.mxu0 %v2430
  %2481 = vmatpush1.bf16.msra.mxu0 %v2429
  %2482 = vmatprep.subr.bf16.mxu0 %v2432
  %2483 = vmatpush1.bf16.msra.mxu0 %v2431
  %2484 = vmatprep.subr.bf16.mxu0 %v2462
  %2485 = vmatpush1.bf16.msra.mxu0 %v2459
  %2486 = vmatprep.subr.bf16.mxu0 0
  %2487 = vmatpush1.bf16.msra.mxu0 0
  %2488 = vmatprep.subr.bf16.mxu0 0
  %2489 = vmatpush1.bf16.msra.mxu0 0
  %2490 = vmatprep.subr.bf16.mxu0 0
  %2491 = vmatpush1.bf16.msra.mxu0 0
  %2492 = vmatprep.subr.bf16.mxu0 0
  %2493 = vmatpush1.bf16.msra.mxu0 0
  %2494 = vmatprep.subr.bf16.mxu0 0
  %2495 = vmatpush1.bf16.msra.mxu0 0
  %2496 = vmatprep.mubr.bf16.mxu0 %v2221
  %2497 = vmatmul.mubr.bf16.gmra.mrb[0].mxu0 %v2099
  %v2498 = vpop.f32.mrb[0].mxu0
  %v2499 = vadd.f32 0.0, %v2498
  %v2500 = vpop.f32.mrb[0].mxu0
  %v2501 = vadd.f32 0.0, %v2500
  %v2502 = vpop.f32.mrb[0].mxu0
  %v2503 = vadd.f32 0.0, %v2502
  %v2504 = vpop.f32.mrb[0].mxu0
  %v2505 = vadd.f32 0.0, %v2504
  %2506 = vmatprep.mubr.bf16.mxu0 %v2224
  %2507 = vmatmul.mubr.bf16.gmra.mrb[0].mxu0 %v2101
  %v2508 = vpop.f32.mrb[0].mxu0
  %v2509 = vadd.f32 0.0, %v2508
  %v2510 = vpop.f32.mrb[0].mxu0
  %v2511 = vadd.f32 0.0, %v2510
  %v2512 = vpop.f32.mrb[0].mxu0
  %v2513 = vadd.f32 0.0, %v2512
  %v2514 = vpop.f32.mrb[0].mxu0
  %v2515 = vadd.f32 0.0, %v2514
  %2516 = vmatprep.mubr.bf16.mxu0 %v2227
  %2517 = vmatmul.mubr.bf16.gmra.mrb[0].mxu0 %v2103
  %v2518 = vpop.f32.mrb[0].mxu0
  %v2519 = vadd.f32 0.0, %v2518
  %v2520 = vpop.f32.mrb[0].mxu0
  %v2521 = vadd.f32 0.0, %v2520
  %v2522 = vpop.f32.mrb[0].mxu0
  %v2523 = vadd.f32 0.0, %v2522
  %v2524 = vpop.f32.mrb[0].mxu0
  %v2525 = vadd.f32 0.0, %v2524
  %2526 = vmatprep.mubr.bf16.mxu0 %v2230
  %2527 = vmatmul.mubr.bf16.gmra.mrb[0].mxu0 %v2105
  %v2528 = vpop.f32.mrb[0].mxu0
  %v2529 = vadd.f32 0.0, %v2528
  %v2530 = vpop.f32.mrb[0].mxu0
  %v2531 = vadd.f32 0.0, %v2530
  %v2532 = vpop.f32.mrb[0].mxu0
  %v2533 = vadd.f32 0.0, %v2532
  %v2534 = vpop.f32.mrb[0].mxu0
  %v2535 = vadd.f32 0.0, %v2534
  %2536 = vmatprep.mubr.bf16.mxu0 %v2456
  %2537 = vmatmul.mubr.bf16.gmra.mrb[0].mxu0 %v2347
  %v2538 = vpop.f32.mrb[0].mxu0
  %v2539 = vadd.f32 0.0, %v2538
  %v2540 = vpop.f32.mrb[0].mxu0
  %v2541 = vadd.f32 0.0, %v2540
  %v2542 = vpop.f32.mrb[0].mxu0
  %v2543 = vadd.f32 0.0, %v2542
  %v2544 = vpop.f32.mrb[0].mxu0
  %v2545 = vadd.f32 0.0, %v2544
  %2546 = vdwg.mxu0
  %v2547 = vadd.f32 %v2273, %v2499
  %v2548 = vadd.f32 %v2275, %v2501
  %v2549 = vadd.f32 %v2277, %v2503
  %v2550 = vadd.f32 %v2279, %v2505
  %v2551 = vadd.f32 %v2283, %v2509
  %v2552 = vadd.f32 %v2285, %v2511
  %v2553 = vadd.f32 %v2287, %v2513
  %v2554 = vadd.f32 %v2289, %v2515
  %v2555 = vadd.f32 %v2293, %v2519
  %v2556 = vadd.f32 %v2295, %v2521
  %v2557 = vadd.f32 %v2297, %v2523
  %v2558 = vadd.f32 %v2299, %v2525
  %v2559 = vadd.f32 %v2303, %v2529
  %v2560 = vadd.f32 %v2305, %v2531
  %v2561 = vadd.f32 %v2307, %v2533
  %v2562 = vadd.f32 %v2309, %v2535
  %v2563 = vadd.f32 %v2313, %v2539
  %v2564 = vadd.f32 %v2315, %v2541
  %v2565 = vadd.f32 %v2317, %v2543
  %v2566 = vadd.f32 %v2319, %v2545
  %v2569 = vunpack.c.l.b16 %v1780
  %v2570 = vunpack.c.l.b16 %v1781
  %s2571 = scalar_lea.vmem %s3, 504
  %v2572 = vld [vmem:[%s2571] sm:$0xff]
  %v2573 = vld [vmem:[%s2571 + $0x8] sm:$0xff]
  %v2574 = vld [vmem:[%s2571 + $0x10] sm:$0xff]
  %v2575 = vld [vmem:[%s2571 + $0x18] sm:$0xff]
  %v2576 = vld [vmem:[%s2571 + $0x20] sm:$0xff]
  %v2577 = vld [vmem:[%s2571 + $0x28] sm:$0xff]
  %v2578 = vld [vmem:[%s2571 + $0x30] sm:$0xff]
  %v2579 = vld [vmem:[%s2571 + $0x38] sm:$0xff]
  %v2580 = vld [vmem:[%s2571 + $0x40] sm:$0xff]
  %v2581 = vld [vmem:[%s2571 + $0x48] sm:$0xff]
  %v2582 = vld [vmem:[%s2571 + $0x50] sm:$0xff]
  %v2583 = vld [vmem:[%s2571 + $0x58] sm:$0xff]
  %v2584 = vld [vmem:[%s2571 + $0x60] sm:$0xff]
  %v2585 = vld [vmem:[%s2571 + $0x68] sm:$0xff]
  %v2586 = vld [vmem:[%s2571 + $0x70] sm:$0xff]
  %v2587 = vld [vmem:[%s2571 + $0x78] sm:$0xff]
  %v2588 = vld [vmem:[%s2571 + $0x80] sm:$0xff]
  %v2589 = vld [vmem:[%s2571 + $0x88] sm:$0xff]
  %v2590 = vld [vmem:[%s2571 + $0x90] sm:$0xff]
  %v2591 = vld [vmem:[%s2571 + $0x98] sm:$0xff]
  %v2592 = vld [vmem:[%s2571 + $0xa0] sm:$0x11]
  %v2593 = vpack.c.b16 %v2569, %v2323
  %v2594 = vpack.c.b16 %v2570, %v2324
  %v2617 = vunpack.c.l.b16 %v2572
  %v2618 = vunpack.c.h.b16 %v2572
  %v2619 = vunpack.c.l.b16 %v2573
  %v2620 = vunpack.c.h.b16 %v2573
  %v2621 = vunpack.c.l.b16 %v2574
  %v2622 = vunpack.c.h.b16 %v2574
  %v2623 = vunpack.c.l.b16 %v2575
  %v2624 = vunpack.c.h.b16 %v2575
  %v2625 = vunpack.c.l.b16 %v2576
  %v2626 = vunpack.c.h.b16 %v2576
  %v2627 = vunpack.c.l.b16 %v2577
  %v2628 = vunpack.c.h.b16 %v2577
  %v2629 = vunpack.c.l.b16 %v2578
  %v2630 = vunpack.c.h.b16 %v2578
  %v2631 = vunpack.c.l.b16 %v2579
  %v2632 = vunpack.c.h.b16 %v2579
  %v2633 = vunpack.c.l.b16 %v2580
  %v2634 = vunpack.c.h.b16 %v2580
  %v2635 = vunpack.c.l.b16 %v2581
  %v2636 = vunpack.c.h.b16 %v2581
  %v2637 = vunpack.c.l.b16 %v2582
  %v2638 = vunpack.c.h.b16 %v2582
  %v2639 = vunpack.c.l.b16 %v2583
  %v2640 = vunpack.c.h.b16 %v2583
  %v2641 = vunpack.c.l.b16 %v2584
  %v2642 = vunpack.c.h.b16 %v2584
  %v2643 = vunpack.c.l.b16 %v2585
  %v2644 = vunpack.c.h.b16 %v2585
  %v2645 = vunpack.c.l.b16 %v2586
  %v2646 = vunpack.c.h.b16 %v2586
  %v2647 = vunpack.c.l.b16 %v2587
  %v2648 = vunpack.c.h.b16 %v2587
  %v2649 = vunpack.c.l.b16 %v2588
  %v2650 = vunpack.c.h.b16 %v2588
  %v2651 = vunpack.c.l.b16 %v2589
  %v2652 = vunpack.c.h.b16 %v2589
  %v2653 = vunpack.c.l.b16 %v2590
  %v2654 = vunpack.c.h.b16 %v2590
  %v2655 = vunpack.c.l.b16 %v2591
  %v2656 = vunpack.c.h.b16 %v2591
  %v2657 = vunpack.c.l.b16 %v2592
  %v2658 = vunpack.c.h.b16 %v2592
  %v2659 = vpack.c.b16 %v2619, %v2617
  %v2660 = vpack.c.b16 %v2620, %v2618
  %v2661 = vpack.c.b16 %v2623, %v2621
  %v2662 = vpack.c.b16 %v2624, %v2622
  %v2663 = vpack.c.b16 %v2627, %v2625
  %v2664 = vpack.c.b16 %v2628, %v2626
  %v2665 = vpack.c.b16 %v2631, %v2629
  %v2666 = vpack.c.b16 %v2632, %v2630
  %v2667 = vpack.c.b16 %v2635, %v2633
  %v2668 = vpack.c.b16 %v2636, %v2634
  %v2669 = vpack.c.b16 %v2639, %v2637
  %v2670 = vpack.c.b16 %v2640, %v2638
  %v2671 = vpack.c.b16 %v2643, %v2641
  %v2672 = vpack.c.b16 %v2644, %v2642
  %v2673 = vpack.c.b16 %v2647, %v2645
  %v2674 = vpack.c.b16 %v2648, %v2646
  %v2675 = vpack.c.b16 %v2651, %v2649
  %v2676 = vpack.c.b16 %v2652, %v2650
  %v2677 = vpack.c.b16 %v2655, %v2653
  %v2678 = vpack.c.b16 %v2656, %v2654
  %v2679 = vpack.c.b16 %v2657, %v2657
  %v2680 = vpack.c.b16 %v2658, %v2658
  %v2702 = vsel %vm1991, %v2594, 0
  %v2705 = vsel %vm2007, %v2679, 0
  %v2708 = vsel %vm2007, %v2680, 0
  %2710 = vmatprep.subr.bf16.mxu0 %v2660
  %2711 = vmatpush1.bf16.msra.mxu0 %v2659
  %2712 = vmatprep.subr.bf16.mxu0 %v2662
  %2713 = vmatpush1.bf16.msra.mxu0 %v2661
  %2714 = vmatprep.subr.bf16.mxu0 %v2664
  %2715 = vmatpush1.bf16.msra.mxu0 %v2663
  %2716 = vmatprep.subr.bf16.mxu0 %v2666
  %2717 = vmatpush1.bf16.msra.mxu0 %v2665
  %2718 = vmatprep.subr.bf16.mxu0 %v2668
  %2719 = vmatpush1.bf16.msra.mxu0 %v2667
  %2720 = vmatprep.subr.bf16.mxu0 %v2670
  %2721 = vmatpush1.bf16.msra.mxu0 %v2669
  %2722 = vmatprep.subr.bf16.mxu0 %v2672
  %2723 = vmatpush1.bf16.msra.mxu0 %v2671
  %2724 = vmatprep.subr.bf16.mxu0 %v2674
  %2725 = vmatpush1.bf16.msra.mxu0 %v2673
  %2726 = vmatprep.subr.bf16.mxu0 %v2676
  %2727 = vmatpush1.bf16.msra.mxu0 %v2675
  %2728 = vmatprep.subr.bf16.mxu0 %v2678
  %2729 = vmatpush1.bf16.msra.mxu0 %v2677
  %2730 = vmatprep.subr.bf16.mxu0 %v2708
  %2731 = vmatpush1.bf16.msra.mxu0 %v2705
  %2732 = vmatprep.subr.bf16.mxu0 0
  %2733 = vmatpush1.bf16.msra.mxu0 0
  %2734 = vmatprep.subr.bf16.mxu0 0
  %2735 = vmatpush1.bf16.msra.mxu0 0
  %2736 = vmatprep.subr.bf16.mxu0 0
  %2737 = vmatpush1.bf16.msra.mxu0 0
  %2738 = vmatprep.subr.bf16.mxu0 0
  %2739 = vmatpush1.bf16.msra.mxu0 0
  %2740 = vmatprep.subr.bf16.mxu0 0
  %2741 = vmatpush1.bf16.msra.mxu0 0
  %2742 = vmatprep.mubr.bf16.mxu0 %v1996
  %2743 = vmatmul.mubr.bf16.gmra.mrb[0].mxu0 %v1873
  %v2744 = vpop.f32.mrb[0].mxu0
  %v2745 = vadd.f32 0.0, %v2744
  %v2746 = vpop.f32.mrb[0].mxu0
  %v2747 = vadd.f32 0.0, %v2746
  %v2748 = vpop.f32.mrb[0].mxu0
  %v2749 = vadd.f32 0.0, %v2748
  %v2750 = vpop.f32.mrb[0].mxu0
  %v2751 = vadd.f32 0.0, %v2750
  %2752 = vmatprep.mubr.bf16.mxu0 %v1999
  %2753 = vmatmul.mubr.bf16.gmra.mrb[0].mxu0 %v1875
  %v2754 = vpop.f32.mrb[0].mxu0
  %v2755 = vadd.f32 0.0, %v2754
  %v2756 = vpop.f32.mrb[0].mxu0
  %v2757 = vadd.f32 0.0, %v2756
  %v2758 = vpop.f32.mrb[0].mxu0
  %v2759 = vadd.f32 0.0, %v2758
  %v2760 = vpop.f32.mrb[0].mxu0
  %v2761 = vadd.f32 0.0, %v2760
  %2762 = vmatprep.mubr.bf16.mxu0 %v2002
  %2763 = vmatmul.mubr.bf16.gmra.mrb[0].mxu0 %v1877
  %v2764 = vpop.f32.mrb[0].mxu0
  %v2765 = vadd.f32 0.0, %v2764
  %v2766 = vpop.f32.mrb[0].mxu0
  %v2767 = vadd.f32 0.0, %v2766
  %v2768 = vpop.f32.mrb[0].mxu0
  %v2769 = vadd.f32 0.0, %v2768
  %v2770 = vpop.f32.mrb[0].mxu0
  %v2771 = vadd.f32 0.0, %v2770
  %2772 = vmatprep.mubr.bf16.mxu0 %v2005
  %2773 = vmatmul.mubr.bf16.gmra.mrb[0].mxu0 %v1879
  %v2774 = vpop.f32.mrb[0].mxu0
  %v2775 = vadd.f32 0.0, %v2774
  %v2776 = vpop.f32.mrb[0].mxu0
  %v2777 = vadd.f32 0.0, %v2776
  %v2778 = vpop.f32.mrb[0].mxu0
  %v2779 = vadd.f32 0.0, %v2778
  %v2780 = vpop.f32.mrb[0].mxu0
  %v2781 = vadd.f32 0.0, %v2780
  %2782 = vmatprep.mubr.bf16.mxu0 %v2702
  %2783 = vmatmul.mubr.bf16.gmra.mrb[0].mxu0 %v2593
  %v2784 = vpop.f32.mrb[0].mxu0
  %v2785 = vadd.f32 0.0, %v2784
  %v2786 = vpop.f32.mrb[0].mxu0
  %v2787 = vadd.f32 0.0, %v2786
  %v2788 = vpop.f32.mrb[0].mxu0
  %v2789 = vadd.f32 0.0, %v2788
  %v2790 = vpop.f32.mrb[0].mxu0
  %v2791 = vadd.f32 0.0, %v2790
  %2792 = vdwg.mxu0
  %v2793 = vadd.f32 %v2547, %v2745
  %v2794 = vadd.f32 %v2548, %v2747
  %v2795 = vadd.f32 %v2549, %v2749
  %v2796 = vadd.f32 %v2550, %v2751
  %v2797 = vadd.f32 %v2551, %v2755
  %v2798 = vadd.f32 %v2552, %v2757
  %v2799 = vadd.f32 %v2553, %v2759
  %v2800 = vadd.f32 %v2554, %v2761
  %v2801 = vadd.f32 %v2555, %v2765
  %v2802 = vadd.f32 %v2556, %v2767
  %v2803 = vadd.f32 %v2557, %v2769
  %v2804 = vadd.f32 %v2558, %v2771
  %v2805 = vadd.f32 %v2559, %v2775
  %v2806 = vadd.f32 %v2560, %v2777
  %v2807 = vadd.f32 %v2561, %v2779
  %v2808 = vadd.f32 %v2562, %v2781
  %v2809 = vadd.f32 %v2563, %v2785
  %v2810 = vadd.f32 %v2564, %v2787
  %v2811 = vadd.f32 %v2565, %v2789
  %v2812 = vadd.f32 %v2566, %v2791
  %v2815 = vunpack.c.l.b16 %v1782
  %v2816 = vunpack.c.l.b16 %v1783
  %s2817 = scalar_lea.vmem %s3, 672
  %v2818 = vld [vmem:[%s2817] sm:$0xff]
  %v2819 = vld [vmem:[%s2817 + $0x8] sm:$0xff]
  %v2820 = vld [vmem:[%s2817 + $0x10] sm:$0xff]
  %v2821 = vld [vmem:[%s2817 + $0x18] sm:$0xff]
  %v2822 = vld [vmem:[%s2817 + $0x20] sm:$0xff]
  %v2823 = vld [vmem:[%s2817 + $0x28] sm:$0xff]
  %v2824 = vld [vmem:[%s2817 + $0x30] sm:$0xff]
  %v2825 = vld [vmem:[%s2817 + $0x38] sm:$0xff]
  %v2826 = vld [vmem:[%s2817 + $0x40] sm:$0xff]
  %v2827 = vld [vmem:[%s2817 + $0x48] sm:$0xff]
  %v2828 = vld [vmem:[%s2817 + $0x50] sm:$0xff]
  %v2829 = vld [vmem:[%s2817 + $0x58] sm:$0xff]
  %v2830 = vld [vmem:[%s2817 + $0x60] sm:$0xff]
  %v2831 = vld [vmem:[%s2817 + $0x68] sm:$0xff]
  %v2832 = vld [vmem:[%s2817 + $0x70] sm:$0xff]
  %v2833 = vld [vmem:[%s2817 + $0x78] sm:$0xff]
  %v2834 = vld [vmem:[%s2817 + $0x80] sm:$0xff]
  %v2835 = vld [vmem:[%s2817 + $0x88] sm:$0xff]
  %v2836 = vld [vmem:[%s2817 + $0x90] sm:$0xff]
  %v2837 = vld [vmem:[%s2817 + $0x98] sm:$0xff]
  %v2838 = vld [vmem:[%s2817 + $0xa0] sm:$0x11]
  %v2839 = vpack.c.b16 %v2815, %v2569
  %v2840 = vpack.c.b16 %v2816, %v2570
  %v2863 = vunpack.c.l.b16 %v2818
  %v2864 = vunpack.c.h.b16 %v2818
  %v2865 = vunpack.c.l.b16 %v2819
  %v2866 = vunpack.c.h.b16 %v2819
  %v2867 = vunpack.c.l.b16 %v2820
  %v2868 = vunpack.c.h.b16 %v2820
  %v2869 = vunpack.c.l.b16 %v2821
  %v2870 = vunpack.c.h.b16 %v2821
  %v2871 = vunpack.c.l.b16 %v2822
  %v2872 = vunpack.c.h.b16 %v2822
  %v2873 = vunpack.c.l.b16 %v2823
  %v2874 = vunpack.c.h.b16 %v2823
  %v2875 = vunpack.c.l.b16 %v2824
  %v2876 = vunpack.c.h.b16 %v2824
  %v2877 = vunpack.c.l.b16 %v2825
  %v2878 = vunpack.c.h.b16 %v2825
  %v2879 = vunpack.c.l.b16 %v2826
  %v2880 = vunpack.c.h.b16 %v2826
  %v2881 = vunpack.c.l.b16 %v2827
  %v2882 = vunpack.c.h.b16 %v2827
  %v2883 = vunpack.c.l.b16 %v2828
  %v2884 = vunpack.c.h.b16 %v2828
  %v2885 = vunpack.c.l.b16 %v2829
  %v2886 = vunpack.c.h.b16 %v2829
  %v2887 = vunpack.c.l.b16 %v2830
  %v2888 = vunpack.c.h.b16 %v2830
  %v2889 = vunpack.c.l.b16 %v2831
  %v2890 = vunpack.c.h.b16 %v2831
  %v2891 = vunpack.c.l.b16 %v2832
  %v2892 = vunpack.c.h.b16 %v2832
  %v2893 = vunpack.c.l.b16 %v2833
  %v2894 = vunpack.c.h.b16 %v2833
  %v2895 = vunpack.c.l.b16 %v2834
  %v2896 = vunpack.c.h.b16 %v2834
  %v2897 = vunpack.c.l.b16 %v2835
  %v2898 = vunpack.c.h.b16 %v2835
  %v2899 = vunpack.c.l.b16 %v2836
  %v2900 = vunpack.c.h.b16 %v2836
  %v2901 = vunpack.c.l.b16 %v2837
  %v2902 = vunpack.c.h.b16 %v2837
  %v2903 = vunpack.c.l.b16 %v2838
  %v2904 = vunpack.c.h.b16 %v2838
  %v2905 = vpack.c.b16 %v2865, %v2863
  %v2906 = vpack.c.b16 %v2866, %v2864
  %v2907 = vpack.c.b16 %v2869, %v2867
  %v2908 = vpack.c.b16 %v2870, %v2868
  %v2909 = vpack.c.b16 %v2873, %v2871
  %v2910 = vpack.c.b16 %v2874, %v2872
  %v2911 = vpack.c.b16 %v2877, %v2875
  %v2912 = vpack.c.b16 %v2878, %v2876
  %v2913 = vpack.c.b16 %v2881, %v2879
  %v2914 = vpack.c.b16 %v2882, %v2880
  %v2915 = vpack.c.b16 %v2885, %v2883
  %v2916 = vpack.c.b16 %v2886, %v2884
  %v2917 = vpack.c.b16 %v2889, %v2887
  %v2918 = vpack.c.b16 %v2890, %v2888
  %v2919 = vpack.c.b16 %v2893, %v2891
  %v2920 = vpack.c.b16 %v2894, %v2892
  %v2921 = vpack.c.b16 %v2897, %v2895
  %v2922 = vpack.c.b16 %v2898, %v2896
  %v2923 = vpack.c.b16 %v2901, %v2899
  %v2924 = vpack.c.b16 %v2902, %v2900
  %v2925 = vpack.c.b16 %v2903, %v2903
  %v2926 = vpack.c.b16 %v2904, %v2904
  %v2948 = vsel %vm1991, %v2840, 0
  %v2951 = vsel %vm2007, %v2925, 0
  %v2954 = vsel %vm2007, %v2926, 0
  %2956 = vmatprep.subr.bf16.mxu0 %v2906
  %2957 = vmatpush1.bf16.msra.mxu0 %v2905
  %2958 = vmatprep.subr.bf16.mxu0 %v2908
  %2959 = vmatpush1.bf16.msra.mxu0 %v2907
  %2960 = vmatprep.subr.bf16.mxu0 %v2910
  %2961 = vmatpush1.bf16.msra.mxu0 %v2909
  %2962 = vmatprep.subr.bf16.mxu0 %v2912
  %2963 = vmatpush1.bf16.msra.mxu0 %v2911
  %2964 = vmatprep.subr.bf16.mxu0 %v2914
  %2965 = vmatpush1.bf16.msra.mxu0 %v2913
  %2966 = vmatprep.subr.bf16.mxu0 %v2916
  %2967 = vmatpush1.bf16.msra.mxu0 %v2915
  %2968 = vmatprep.subr.bf16.mxu0 %v2918
  %2969 = vmatpush1.bf16.msra.mxu0 %v2917
  %2970 = vmatprep.subr.bf16.mxu0 %v2920
  %2971 = vmatpush1.bf16.msra.mxu0 %v2919
  %2972 = vmatprep.subr.bf16.mxu0 %v2922
  %2973 = vmatpush1.bf16.msra.mxu0 %v2921
  %2974 = vmatprep.subr.bf16.mxu0 %v2924
  %2975 = vmatpush1.bf16.msra.mxu0 %v2923
  %2976 = vmatprep.subr.bf16.mxu0 %v2954
  %2977 = vmatpush1.bf16.msra.mxu0 %v2951
  %2978 = vmatprep.subr.bf16.mxu0 0
  %2979 = vmatpush1.bf16.msra.mxu0 0
  %2980 = vmatprep.subr.bf16.mxu0 0
  %2981 = vmatpush1.bf16.msra.mxu0 0
  %2982 = vmatprep.subr.bf16.mxu0 0
  %2983 = vmatpush1.bf16.msra.mxu0 0
  %2984 = vmatprep.subr.bf16.mxu0 0
  %2985 = vmatpush1.bf16.msra.mxu0 0
  %2986 = vmatprep.subr.bf16.mxu0 0
  %2987 = vmatpush1.bf16.msra.mxu0 0
  %2988 = vmatprep.mubr.bf16.mxu0 %v2224
  %2989 = vmatmul.mubr.bf16.gmra.mrb[0].mxu0 %v2101
  %v2990 = vpop.f32.mrb[0].mxu0
  %v2991 = vadd.f32 0.0, %v2990
  %v2992 = vpop.f32.mrb[0].mxu0
  %v2993 = vadd.f32 0.0, %v2992
  %v2994 = vpop.f32.mrb[0].mxu0
  %v2995 = vadd.f32 0.0, %v2994
  %v2996 = vpop.f32.mrb[0].mxu0
  %v2997 = vadd.f32 0.0, %v2996
  %2998 = vmatprep.mubr.bf16.mxu0 %v2227
  %2999 = vmatmul.mubr.bf16.gmra.mrb[0].mxu0 %v2103
  %v3000 = vpop.f32.mrb[0].mxu0
  %v3001 = vadd.f32 0.0, %v3000
  %v3002 = vpop.f32.mrb[0].mxu0
  %v3003 = vadd.f32 0.0, %v3002
  %v3004 = vpop.f32.mrb[0].mxu0
  %v3005 = vadd.f32 0.0, %v3004
  %v3006 = vpop.f32.mrb[0].mxu0
  %v3007 = vadd.f32 0.0, %v3006
  %3008 = vmatprep.mubr.bf16.mxu0 %v2230
  %3009 = vmatmul.mubr.bf16.gmra.mrb[0].mxu0 %v2105
  %v3010 = vpop.f32.mrb[0].mxu0
  %v3011 = vadd.f32 0.0, %v3010
  %v3012 = vpop.f32.mrb[0].mxu0
  %v3013 = vadd.f32 0.0, %v3012
  %v3014 = vpop.f32.mrb[0].mxu0
  %v3015 = vadd.f32 0.0, %v3014
  %v3016 = vpop.f32.mrb[0].mxu0
  %v3017 = vadd.f32 0.0, %v3016
  %3018 = vmatprep.mubr.bf16.mxu0 %v2456
  %3019 = vmatmul.mubr.bf16.gmra.mrb[0].mxu0 %v2347
  %v3020 = vpop.f32.mrb[0].mxu0
  %v3021 = vadd.f32 0.0, %v3020
  %v3022 = vpop.f32.mrb[0].mxu0
  %v3023 = vadd.f32 0.0, %v3022
  %v3024 = vpop.f32.mrb[0].mxu0
  %v3025 = vadd.f32 0.0, %v3024
  %v3026 = vpop.f32.mrb[0].mxu0
  %v3027 = vadd.f32 0.0, %v3026
  %3028 = vmatprep.mubr.bf16.mxu0 %v2948
  %3029 = vmatmul.mubr.bf16.gmra.mrb[0].mxu0 %v2839
  %v3030 = vpop.f32.mrb[0].mxu0
  %v3031 = vadd.f32 0.0, %v3030
  %v3032 = vpop.f32.mrb[0].mxu0
  %v3033 = vadd.f32 0.0, %v3032
  %v3034 = vpop.f32.mrb[0].mxu0
  %v3035 = vadd.f32 0.0, %v3034
  %v3036 = vpop.f32.mrb[0].mxu0
  %v3037 = vadd.f32 0.0, %v3036
  %3038 = vdwg.mxu0
  %v3039 = vadd.f32 %v2793, %v2991
  %v3040 = vadd.f32 %v2794, %v2993
  %v3041 = vadd.f32 %v2795, %v2995
  %v3042 = vadd.f32 %v2796, %v2997
  %v3043 = vadd.f32 %v2797, %v3001
  %v3044 = vadd.f32 %v2798, %v3003
  %v3045 = vadd.f32 %v2799, %v3005
  %v3046 = vadd.f32 %v2800, %v3007
  %v3047 = vadd.f32 %v2801, %v3011
  %v3048 = vadd.f32 %v2802, %v3013
  %v3049 = vadd.f32 %v2803, %v3015
  %v3050 = vadd.f32 %v2804, %v3017
  %v3051 = vadd.f32 %v2805, %v3021
  %v3052 = vadd.f32 %v2806, %v3023
  %v3053 = vadd.f32 %v2807, %v3025
  %v3054 = vadd.f32 %v2808, %v3027
  %v3055 = vadd.f32 %v2809, %v3031
  %v3056 = vadd.f32 %v2810, %v3033
  %v3057 = vadd.f32 %v2811, %v3035
  %v3058 = vadd.f32 %v2812, %v3037
  %v3059 = vld [vmem:[%s4] sm:$0x3]
  %v3061 = vlaneseq
  %v3062 = vshrl.u32 %v3061, 7
  %v3063 = vsub.s32 0, %v3062
  %v3064 = vrot.slane %v3059, %v3063
  %v3065 = vlaneseq
  %v3066 = vshrl.u32 %v3065, 7
  %v3067 = vsub.s32 1, %v3066
  %v3068 = vrot.slane %v3059, %v3067
  %v3071 = vadd.f32 %v3039, %v3064
  %v3072 = vadd.f32 %v3040, %v3068
  %v3073 = vadd.f32 %v3041, %v3064
  %v3074 = vadd.f32 %v3042, %v3068
  %v3075 = vadd.f32 %v3043, %v3064
  %v3076 = vadd.f32 %v3044, %v3068
  %v3077 = vadd.f32 %v3045, %v3064
  %v3078 = vadd.f32 %v3046, %v3068
  %v3079 = vadd.f32 %v3047, %v3064
  %v3080 = vadd.f32 %v3048, %v3068
  %v3081 = vadd.f32 %v3049, %v3064
  %v3082 = vadd.f32 %v3050, %v3068
  %v3083 = vadd.f32 %v3051, %v3064
  %v3084 = vadd.f32 %v3052, %v3068
  %v3085 = vadd.f32 %v3053, %v3064
  %v3086 = vadd.f32 %v3054, %v3068
  %v3087 = vadd.f32 %v3055, %v3064
  %v3088 = vadd.f32 %v3056, %v3068
  %v3089 = vadd.f32 %v3057, %v3064
  %v3090 = vadd.f32 %v3058, %v3068
  %v3091 = vmax.f32 %v3071, 0.0
  %v3092 = vmax.f32 %v3072, 0.0
  %v3093 = vmax.f32 %v3073, 0.0
  %v3094 = vmax.f32 %v3074, 0.0
  %v3095 = vmax.f32 %v3075, 0.0
  %v3096 = vmax.f32 %v3076, 0.0
  %v3097 = vmax.f32 %v3077, 0.0
  %v3098 = vmax.f32 %v3078, 0.0
  %v3099 = vmax.f32 %v3079, 0.0
  %v3100 = vmax.f32 %v3080, 0.0
  %v3101 = vmax.f32 %v3081, 0.0
  %v3102 = vmax.f32 %v3082, 0.0
  %v3103 = vmax.f32 %v3083, 0.0
  %v3104 = vmax.f32 %v3084, 0.0
  %v3105 = vmax.f32 %v3085, 0.0
  %v3106 = vmax.f32 %v3086, 0.0
  %v3107 = vmax.f32 %v3087, 0.0
  %v3108 = vmax.f32 %v3088, 0.0
  %v3109 = vmax.f32 %v3089, 0.0
  %v3110 = vmax.f32 %v3090, 0.0
  %v3111 = vmax.f32 %v3091, %v3093
  %v3112 = vmax.f32 %v3092, %v3094
  %v3113 = vmax.f32 %v3095, %v3097
  %v3114 = vmax.f32 %v3096, %v3098
  %v3115 = vmax.f32 %v3099, %v3101
  %v3116 = vmax.f32 %v3100, %v3102
  %v3117 = vmax.f32 %v3103, %v3105
  %v3118 = vmax.f32 %v3104, %v3106
  %v3119 = vmax.f32 %v3107, %v3109
  %v3120 = vmax.f32 %v3108, %v3110
  %3131 = vrot.lane.b32.xlu0 %v3111, 112
  %v3132 = vpop.permute.xlu0 %3131
  %3133 = vrot.lane.b32.xlu0 %v3112, 112
  %v3134 = vpop.permute.xlu0 %3133
  %3135 = vrot.lane.b32.xlu0 %v3113, 112
  %v3136 = vpop.permute.xlu0 %3135
  %3137 = vrot.lane.b32.xlu0 %v3114, 112
  %v3138 = vpop.permute.xlu0 %3137
  %3139 = vrot.lane.b32.xlu0 %v3115, 112
  %v3140 = vpop.permute.xlu0 %3139
  %3141 = vrot.lane.b32.xlu0 %v3116, 112
  %v3142 = vpop.permute.xlu0 %3141
  %3143 = vrot.lane.b32.xlu0 %v3117, 112
  %v3144 = vpop.permute.xlu0 %3143
  %3145 = vrot.lane.b32.xlu0 %v3118, 112
  %v3146 = vpop.permute.xlu0 %3145
  %3147 = vrot.lane.b32.xlu0 %v3119, 112
  %v3148 = vpop.permute.xlu0 %3147
  %3149 = vrot.lane.b32.xlu0 %v3120, 112
  %v3150 = vpop.permute.xlu0 %3149
  %vm3151 = vcmask 916480
  %v3152 = vsel %vm3151, %v3132, %v3134
  %v3153 = vsel %vm3151, %v3136, %v3138
  %v3154 = vsel %vm3151, %v3140, %v3142
  %v3155 = vsel %vm3151, %v3144, %v3146
  %v3156 = vsel %vm3151, %v3148, %v3150
  %v3167 = vmax.f32 %v3111, %v3152
  %v3168 = vmax.f32 %v3112, %v3134
  %v3169 = vmax.f32 %v3113, %v3153
  %v3170 = vmax.f32 %v3114, %v3138
  %v3171 = vmax.f32 %v3115, %v3154
  %v3172 = vmax.f32 %v3116, %v3142
  %v3173 = vmax.f32 %v3117, %v3155
  %v3174 = vmax.f32 %v3118, %v3146
  %v3175 = vmax.f32 %v3119, %v3156
  %v3176 = vmax.f32 %v3120, %v3150
  %v3177 = vpack.c.bf16 %v3167, %v3167
  %v3178 = vpack.c.bf16 %v3168, %v3168
  %v3179 = vpack.c.bf16 %v3169, %v3169
  %v3180 = vpack.c.bf16 %v3170, %v3170
  %v3181 = vpack.c.bf16 %v3171, %v3171
  %v3182 = vpack.c.bf16 %v3172, %v3172
  %v3183 = vpack.c.bf16 %v3173, %v3173
  %v3184 = vpack.c.bf16 %v3174, %v3174
  %v3185 = vpack.c.bf16 %v3175, %v3175
  %v3186 = vpack.c.bf16 %v3176, %v3176
  %v3187 = vld [vmem:[%s5] sm:$0xf]
  %v3188 = vld [vmem:[%s5 + $0x4] sm:$0xf]
  %v3189 = vld [vmem:[%s5 + $0x8] sm:$0xf]
  %v3190 = vld [vmem:[%s5 + $0xc] sm:$0xf]
  %v3191 = vld [vmem:[%s5 + $0x10] sm:$0xf]
  %v3192 = vld [vmem:[%s5 + $0x14] sm:$0xf]
  %v3193 = vld [vmem:[%s5 + $0x18] sm:$0xf]
  %v3194 = vld [vmem:[%s5 + $0x1c] sm:$0xf]
  %v3195 = vld [vmem:[%s5 + $0x20] sm:$0xf]
  %v3196 = vld [vmem:[%s5 + $0x24] sm:$0xf]
  %v3197 = vld [vmem:[%s5 + $0x28] sm:$0xf]
  %v3198 = vld [vmem:[%s5 + $0x2c] sm:$0xf]
  %v3199 = vld [vmem:[%s5 + $0x30] sm:$0xf]
  %v3200 = vld [vmem:[%s5 + $0x34] sm:$0xf]
  %v3201 = vld [vmem:[%s5 + $0x38] sm:$0xf]
  %v3202 = vld [vmem:[%s5 + $0x3c] sm:$0xf]
  %v3203 = vld [vmem:[%s5 + $0x40] sm:$0xf]
  %v3204 = vld [vmem:[%s5 + $0x44] sm:$0xf]
  %s3205 = scalar_lea.vmem %s5, 72
  %v3206 = vld [vmem:[%s3205] sm:$0xf]
  %v3207 = vld [vmem:[%s3205 + $0x4] sm:$0xf]
  %v3208 = vld [vmem:[%s3205 + $0x8] sm:$0xf]
  %v3209 = vld [vmem:[%s3205 + $0xc] sm:$0xf]
  %v3210 = vld [vmem:[%s3205 + $0x10] sm:$0xf]
  %v3211 = vld [vmem:[%s3205 + $0x14] sm:$0xf]
  %v3212 = vld [vmem:[%s3205 + $0x18] sm:$0xf]
  %v3213 = vld [vmem:[%s3205 + $0x1c] sm:$0xf]
  %v3214 = vld [vmem:[%s3205 + $0x20] sm:$0xf]
  %v3215 = vld [vmem:[%s3205 + $0x24] sm:$0xf]
  %v3216 = vld [vmem:[%s3205 + $0x28] sm:$0xf]
  %v3217 = vld [vmem:[%s3205 + $0x2c] sm:$0xf]
  %v3218 = vld [vmem:[%s3205 + $0x30] sm:$0xf]
  %v3219 = vld [vmem:[%s3205 + $0x34] sm:$0xf]
  %v3220 = vld [vmem:[%s3205 + $0x38] sm:$0xf]
  %v3221 = vld [vmem:[%s3205 + $0x3c] sm:$0xf]
  %v3222 = vld [vmem:[%s3205 + $0x40] sm:$0xf]
  %v3223 = vld [vmem:[%s3205 + $0x44] sm:$0xf]
  %v3242 = vunpack.c.l.b16 %v3206
  %v3243 = vunpack.c.l.b16 %v3207
  %v3244 = vunpack.c.l.b16 %v3208
  %v3245 = vunpack.c.l.b16 %v3209
  %v3246 = vunpack.c.l.b16 %v3210
  %v3247 = vunpack.c.l.b16 %v3211
  %v3248 = vunpack.c.l.b16 %v3212
  %v3249 = vunpack.c.l.b16 %v3213
  %v3250 = vunpack.c.l.b16 %v3214
  %v3251 = vunpack.c.l.b16 %v3215
  %v3252 = vunpack.c.l.b16 %v3216
  %v3253 = vunpack.c.l.b16 %v3217
  %v3254 = vunpack.c.l.b16 %v3218
  %v3255 = vunpack.c.l.b16 %v3219
  %v3256 = vunpack.c.l.b16 %v3220
  %v3257 = vunpack.c.l.b16 %v3221
  %v3258 = vunpack.c.l.b16 %v3222
  %v3259 = vunpack.c.l.b16 %v3223
  %v3260 = vpack.c.b16 %v3243, %v3242
  %v3261 = vpack.c.b16 %v3245, %v3244
  %v3262 = vpack.c.b16 %v3247, %v3246
  %v3263 = vpack.c.b16 %v3249, %v3248
  %v3264 = vpack.c.b16 %v3251, %v3250
  %v3265 = vpack.c.b16 %v3253, %v3252
  %v3266 = vpack.c.b16 %v3255, %v3254
  %v3267 = vpack.c.b16 %v3257, %v3256
  %v3268 = vpack.c.b16 %v3259, %v3258
  %vm3278 = vcmask 130048
  %v3280 = vsel %vm3278, %v3180, 0
  %3282 = vmatprep.subr.bf16.mxu0 0
  %3283 = vmatpush1.bf16.msra.mxu0 %v3260
  %3284 = vmatprep.subr.bf16.mxu0 0
  %3285 = vmatpush1.bf16.msra.mxu0 %v3261
  %3286 = vmatprep.subr.bf16.mxu0 0
  %3287 = vmatpush1.bf16.msra.mxu0 %v3262
  %3288 = vmatprep.subr.bf16.mxu0 0
  %3289 = vmatpush1.bf16.msra.mxu0 %v3263
  %3290 = vmatprep.subr.bf16.mxu0 0
  %3291 = vmatpush1.bf16.msra.mxu0 %v3264
  %3292 = vmatprep.subr.bf16.mxu0 0
  %3293 = vmatpush1.bf16.msra.mxu0 %v3265
  %3294 = vmatprep.subr.bf16.mxu0 0
  %3295 = vmatpush1.bf16.msra.mxu0 %v3266
  %3296 = vmatprep.subr.bf16.mxu0 0
  %3297 = vmatpush1.bf16.msra.mxu0 %v3267
  %3298 = vmatprep.subr.bf16.mxu0 0
  %3299 = vmatpush1.bf16.msra.mxu0 %v3268
  %3300 = vmatprep.subr.bf16.mxu0 0
  %3301 = vmatpush1.bf16.msra.mxu0 0
  %3302 = vmatprep.subr.bf16.mxu0 0
  %3303 = vmatpush1.bf16.msra.mxu0 0
  %3304 = vmatprep.subr.bf16.mxu0 0
  %3305 = vmatpush1.bf16.msra.mxu0 0
  %3306 = vmatprep.subr.bf16.mxu0 0
  %3307 = vmatpush1.bf16.msra.mxu0 0
  %3308 = vmatprep.subr.bf16.mxu0 0
  %3309 = vmatpush1.bf16.msra.mxu0 0
  %3310 = vmatprep.subr.bf16.mxu0 0
  %3311 = vmatpush1.bf16.msra.mxu0 0
  %3312 = vmatprep.subr.bf16.mxu0 0
  %3313 = vmatpush1.bf16.msra.mxu0 0
  %3314 = vmatprep.mubr.bf16.mxu0 %v3280
  %3315 = vmatmul.mubr.bf16.gmra.mrb[0].mxu0 %v3179
  %v3316 = vpop.f32.mrb[0].mxu0
  %v3317 = vadd.f32 0.0, %v3316
  %v3318 = vpop.f32.mrb[0].mxu0
  %v3319 = vpop.f32.mrb[0].mxu0
  %v3320 = vpop.f32.mrb[0].mxu0
  %3321 = vdwg.mxu0
  %v3340 = vunpack.c.l.b16 %v3187
  %v3341 = vunpack.c.l.b16 %v3188
  %v3342 = vunpack.c.l.b16 %v3189
  %v3343 = vunpack.c.l.b16 %v3190
  %v3344 = vunpack.c.l.b16 %v3191
  %v3345 = vunpack.c.l.b16 %v3192
  %v3346 = vunpack.c.l.b16 %v3193
  %v3347 = vunpack.c.l.b16 %v3194
  %v3348 = vunpack.c.l.b16 %v3195
  %v3349 = vunpack.c.l.b16 %v3196
  %v3350 = vunpack.c.l.b16 %v3197
  %v3351 = vunpack.c.l.b16 %v3198
  %v3352 = vunpack.c.l.b16 %v3199
  %v3353 = vunpack.c.l.b16 %v3200
  %v3354 = vunpack.c.l.b16 %v3201
  %v3355 = vunpack.c.l.b16 %v3202
  %v3356 = vunpack.c.l.b16 %v3203
  %v3357 = vunpack.c.l.b16 %v3204
  %v3358 = vpack.c.b16 %v3341, %v3340
  %v3359 = vpack.c.b16 %v3343, %v3342
  %v3360 = vpack.c.b16 %v3345, %v3344
  %v3361 = vpack.c.b16 %v3347, %v3346
  %v3362 = vpack.c.b16 %v3349, %v3348
  %v3363 = vpack.c.b16 %v3351, %v3350
  %v3364 = vpack.c.b16 %v3353, %v3352
  %v3365 = vpack.c.b16 %v3355, %v3354
  %v3366 = vpack.c.b16 %v3357, %v3356
  %v3377 = vsel %vm3278, %v3178, 0
  %3379 = vmatprep.subr.bf16.mxu0 0
  %3380 = vmatpush1.bf16.msra.mxu0 %v3358
  %3381 = vmatprep.subr.bf16.mxu0 0
  %3382 = vmatpush1.bf16.msra.mxu0 %v3359
  %3383 = vmatprep.subr.bf16.mxu0 0
  %3384 = vmatpush1.bf16.msra.mxu0 %v3360
  %3385 = vmatprep.subr.bf16.mxu0 0
  %3386 = vmatpush1.bf16.msra.mxu0 %v3361
  %3387 = vmatprep.subr.bf16.mxu0 0
  %3388 = vmatpush1.bf16.msra.mxu0 %v3362
  %3389 = vmatprep.subr.bf16.mxu0 0
  %3390 = vmatpush1.bf16.msra.mxu0 %v3363
  %3391 = vmatprep.subr.bf16.mxu0 0
  %3392 = vmatpush1.bf16.msra.mxu0 %v3364
  %3393 = vmatprep.subr.bf16.mxu0 0
  %3394 = vmatpush1.bf16.msra.mxu0 %v3365
  %3395 = vmatprep.subr.bf16.mxu0 0
  %3396 = vmatpush1.bf16.msra.mxu0 %v3366
  %3397 = vmatprep.subr.bf16.mxu0 0
  %3398 = vmatpush1.bf16.msra.mxu0 0
  %3399 = vmatprep.subr.bf16.mxu0 0
  %3400 = vmatpush1.bf16.msra.mxu0 0
  %3401 = vmatprep.subr.bf16.mxu0 0
  %3402 = vmatpush1.bf16.msra.mxu0 0
  %3403 = vmatprep.subr.bf16.mxu0 0
  %3404 = vmatpush1.bf16.msra.mxu0 0
  %3405 = vmatprep.subr.bf16.mxu0 0
  %3406 = vmatpush1.bf16.msra.mxu0 0
  %3407 = vmatprep.subr.bf16.mxu0 0
  %3408 = vmatpush1.bf16.msra.mxu0 0
  %3409 = vmatprep.subr.bf16.mxu0 0
  %3410 = vmatpush1.bf16.msra.mxu0 0
  %3411 = vmatprep.mubr.bf16.mxu0 %v3377
  %3412 = vmatmul.mubr.bf16.gmra.mrb[0].mxu0 %v3177
  %v3413 = vpop.f32.mrb[0].mxu0
  %v3414 = vadd.f32 %v3317, %v3413
  %v3415 = vpop.f32.mrb[0].mxu0
  %v3416 = vpop.f32.mrb[0].mxu0
  %v3417 = vpop.f32.mrb[0].mxu0
  %3418 = vdwg.mxu0
  %s3419 = scalar_lea.vmem %s5, 144
  %v3420 = vld [vmem:[%s3419] sm:$0xf]
  %v3421 = vld [vmem:[%s3419 + $0x4] sm:$0xf]
  %v3422 = vld [vmem:[%s3419 + $0x8] sm:$0xf]
  %v3423 = vld [vmem:[%s3419 + $0xc] sm:$0xf]
  %v3424 = vld [vmem:[%s3419 + $0x10] sm:$0xf]
  %v3425 = vld [vmem:[%s3419 + $0x14] sm:$0xf]
  %v3426 = vld [vmem:[%s3419 + $0x18] sm:$0xf]
  %v3427 = vld [vmem:[%s3419 + $0x1c] sm:$0xf]
  %v3428 = vld [vmem:[%s3419 + $0x20] sm:$0xf]
  %v3429 = vld [vmem:[%s3419 + $0x24] sm:$0xf]
  %v3430 = vld [vmem:[%s3419 + $0x28] sm:$0xf]
  %v3431 = vld [vmem:[%s3419 + $0x2c] sm:$0xf]
  %v3432 = vld [vmem:[%s3419 + $0x30] sm:$0xf]
  %v3433 = vld [vmem:[%s3419 + $0x34] sm:$0xf]
  %v3434 = vld [vmem:[%s3419 + $0x38] sm:$0xf]
  %v3435 = vld [vmem:[%s3419 + $0x3c] sm:$0xf]
  %v3436 = vld [vmem:[%s3419 + $0x40] sm:$0xf]
  %v3437 = vld [vmem:[%s3419 + $0x44] sm:$0xf]
  %v3456 = vunpack.c.l.b16 %v3420
  %v3457 = vunpack.c.l.b16 %v3421
  %v3458 = vunpack.c.l.b16 %v3422
  %v3459 = vunpack.c.l.b16 %v3423
  %v3460 = vunpack.c.l.b16 %v3424
  %v3461 = vunpack.c.l.b16 %v3425
  %v3462 = vunpack.c.l.b16 %v3426
  %v3463 = vunpack.c.l.b16 %v3427
  %v3464 = vunpack.c.l.b16 %v3428
  %v3465 = vunpack.c.l.b16 %v3429
  %v3466 = vunpack.c.l.b16 %v3430
  %v3467 = vunpack.c.l.b16 %v3431
  %v3468 = vunpack.c.l.b16 %v3432
  %v3469 = vunpack.c.l.b16 %v3433
  %v3470 = vunpack.c.l.b16 %v3434
  %v3471 = vunpack.c.l.b16 %v3435
  %v3472 = vunpack.c.l.b16 %v3436
  %v3473 = vunpack.c.l.b16 %v3437
  %v3474 = vpack.c.b16 %v3457, %v3456
  %v3475 = vpack.c.b16 %v3459, %v3458
  %v3476 = vpack.c.b16 %v3461, %v3460
  %v3477 = vpack.c.b16 %v3463, %v3462
  %v3478 = vpack.c.b16 %v3465, %v3464
  %v3479 = vpack.c.b16 %v3467, %v3466
  %v3480 = vpack.c.b16 %v3469, %v3468
  %v3481 = vpack.c.b16 %v3471, %v3470
  %v3482 = vpack.c.b16 %v3473, %v3472
  %v3493 = vsel %vm3278, %v3182, 0
  %3495 = vmatprep.subr.bf16.mxu0 0
  %3496 = vmatpush1.bf16.msra.mxu0 %v3474
  %3497 = vmatprep.subr.bf16.mxu0 0
  %3498 = vmatpush1.bf16.msra.mxu0 %v3475
  %3499 = vmatprep.subr.bf16.mxu0 0
  %3500 = vmatpush1.bf16.msra.mxu0 %v3476
  %3501 = vmatprep.subr.bf16.mxu0 0
  %3502 = vmatpush1.bf16.msra.mxu0 %v3477
  %3503 = vmatprep.subr.bf16.mxu0 0
  %3504 = vmatpush1.bf16.msra.mxu0 %v3478
  %3505 = vmatprep.subr.bf16.mxu0 0
  %3506 = vmatpush1.bf16.msra.mxu0 %v3479
  %3507 = vmatprep.subr.bf16.mxu0 0
  %3508 = vmatpush1.bf16.msra.mxu0 %v3480
  %3509 = vmatprep.subr.bf16.mxu0 0
  %3510 = vmatpush1.bf16.msra.mxu0 %v3481
  %3511 = vmatprep.subr.bf16.mxu0 0
  %3512 = vmatpush1.bf16.msra.mxu0 %v3482
  %3513 = vmatprep.subr.bf16.mxu0 0
  %3514 = vmatpush1.bf16.msra.mxu0 0
  %3515 = vmatprep.subr.bf16.mxu0 0
  %3516 = vmatpush1.bf16.msra.mxu0 0
  %3517 = vmatprep.subr.bf16.mxu0 0
  %3518 = vmatpush1.bf16.msra.mxu0 0
  %3519 = vmatprep.subr.bf16.mxu0 0
  %3520 = vmatpush1.bf16.msra.mxu0 0
  %3521 = vmatprep.subr.bf16.mxu0 0
  %3522 = vmatpush1.bf16.msra.mxu0 0
  %3523 = vmatprep.subr.bf16.mxu0 0
  %3524 = vmatpush1.bf16.msra.mxu0 0
  %3525 = vmatprep.subr.bf16.mxu0 0
  %3526 = vmatpush1.bf16.msra.mxu0 0
  %3527 = vmatprep.mubr.bf16.mxu0 %v3493
  %3528 = vmatmul.mubr.bf16.gmra.mrb[0].mxu0 %v3181
  %v3529 = vpop.f32.mrb[0].mxu0
  %v3530 = vadd.f32 0.0, %v3529
  %v3531 = vpop.f32.mrb[0].mxu0
  %v3532 = vpop.f32.mrb[0].mxu0
  %v3533 = vpop.f32.mrb[0].mxu0
  %3534 = vdwg.mxu0
  %v3535 = vadd.f32 %v3414, %v3530
  %s3536 = scalar_lea.vmem %s5, 216
  %v3537 = vld [vmem:[%s3536] sm:$0xf]
  %v3538 = vld [vmem:[%s3536 + $0x4] sm:$0xf]
  %v3539 = vld [vmem:[%s3536 + $0x8] sm:$0xf]
  %v3540 = vld [vmem:[%s3536 + $0xc] sm:$0xf]
  %v3541 = vld [vmem:[%s3536 + $0x10] sm:$0xf]
  %v3542 = vld [vmem:[%s3536 + $0x14] sm:$0xf]
  %v3543 = vld [vmem:[%s3536 + $0x18] sm:$0xf]
  %v3544 = vld [vmem:[%s3536 + $0x1c] sm:$0xf]
  %v3545 = vld [vmem:[%s3536 + $0x20] sm:$0xf]
  %v3546 = vld [vmem:[%s3536 + $0x24] sm:$0xf]
  %v3547 = vld [vmem:[%s3536 + $0x28] sm:$0xf]
  %v3548 = vld [vmem:[%s3536 + $0x2c] sm:$0xf]
  %v3549 = vld [vmem:[%s3536 + $0x30] sm:$0xf]
  %v3550 = vld [vmem:[%s3536 + $0x34] sm:$0xf]
  %v3551 = vld [vmem:[%s3536 + $0x38] sm:$0xf]
  %v3552 = vld [vmem:[%s3536 + $0x3c] sm:$0xf]
  %v3553 = vld [vmem:[%s3536 + $0x40] sm:$0xf]
  %v3554 = vld [vmem:[%s3536 + $0x44] sm:$0xf]
  %v3573 = vunpack.c.l.b16 %v3537
  %v3574 = vunpack.c.l.b16 %v3538
  %v3575 = vunpack.c.l.b16 %v3539
  %v3576 = vunpack.c.l.b16 %v3540
  %v3577 = vunpack.c.l.b16 %v3541
  %v3578 = vunpack.c.l.b16 %v3542
  %v3579 = vunpack.c.l.b16 %v3543
  %v3580 = vunpack.c.l.b16 %v3544
  %v3581 = vunpack.c.l.b16 %v3545
  %v3582 = vunpack.c.l.b16 %v3546
  %v3583 = vunpack.c.l.b16 %v3547
  %v3584 = vunpack.c.l.b16 %v3548
  %v3585 = vunpack.c.l.b16 %v3549
  %v3586 = vunpack.c.l.b16 %v3550
  %v3587 = vunpack.c.l.b16 %v3551
  %v3588 = vunpack.c.l.b16 %v3552
  %v3589 = vunpack.c.l.b16 %v3553
  %v3590 = vunpack.c.l.b16 %v3554
  %v3591 = vpack.c.b16 %v3574, %v3573
  %v3592 = vpack.c.b16 %v3576, %v3575
  %v3593 = vpack.c.b16 %v3578, %v3577
  %v3594 = vpack.c.b16 %v3580, %v3579
  %v3595 = vpack.c.b16 %v3582, %v3581
  %v3596 = vpack.c.b16 %v3584, %v3583
  %v3597 = vpack.c.b16 %v3586, %v3585
  %v3598 = vpack.c.b16 %v3588, %v3587
  %v3599 = vpack.c.b16 %v3590, %v3589
  %v3610 = vsel %vm3278, %v3184, 0
  %3612 = vmatprep.subr.bf16.mxu0 0
  %3613 = vmatpush1.bf16.msra.mxu0 %v3591
  %3614 = vmatprep.subr.bf16.mxu0 0
  %3615 = vmatpush1.bf16.msra.mxu0 %v3592
  %3616 = vmatprep.subr.bf16.mxu0 0
  %3617 = vmatpush1.bf16.msra.mxu0 %v3593
  %3618 = vmatprep.subr.bf16.mxu0 0
  %3619 = vmatpush1.bf16.msra.mxu0 %v3594
  %3620 = vmatprep.subr.bf16.mxu0 0
  %3621 = vmatpush1.bf16.msra.mxu0 %v3595
  %3622 = vmatprep.subr.bf16.mxu0 0
  %3623 = vmatpush1.bf16.msra.mxu0 %v3596
  %3624 = vmatprep.subr.bf16.mxu0 0
  %3625 = vmatpush1.bf16.msra.mxu0 %v3597
  %3626 = vmatprep.subr.bf16.mxu0 0
  %3627 = vmatpush1.bf16.msra.mxu0 %v3598
  %3628 = vmatprep.subr.bf16.mxu0 0
  %3629 = vmatpush1.bf16.msra.mxu0 %v3599
  %3630 = vmatprep.subr.bf16.mxu0 0
  %3631 = vmatpush1.bf16.msra.mxu0 0
  %3632 = vmatprep.subr.bf16.mxu0 0
  %3633 = vmatpush1.bf16.msra.mxu0 0
  %3634 = vmatprep.subr.bf16.mxu0 0
  %3635 = vmatpush1.bf16.msra.mxu0 0
  %3636 = vmatprep.subr.bf16.mxu0 0
  %3637 = vmatpush1.bf16.msra.mxu0 0
  %3638 = vmatprep.subr.bf16.mxu0 0
  %3639 = vmatpush1.bf16.msra.mxu0 0
  %3640 = vmatprep.subr.bf16.mxu0 0
  %3641 = vmatpush1.bf16.msra.mxu0 0
  %3642 = vmatprep.subr.bf16.mxu0 0
  %3643 = vmatpush1.bf16.msra.mxu0 0
  %3644 = vmatprep.mubr.bf16.mxu0 %v3610
  %3645 = vmatmul.mubr.bf16.gmra.mrb[0].mxu0 %v3183
  %v3646 = vpop.f32.mrb[0].mxu0
  %v3647 = vadd.f32 0.0, %v3646
  %v3648 = vpop.f32.mrb[0].mxu0
  %v3649 = vpop.f32.mrb[0].mxu0
  %v3650 = vpop.f32.mrb[0].mxu0
  %3651 = vdwg.mxu0
  %v3652 = vadd.f32 %v3535, %v3647
  %s3653 = scalar_lea.vmem %s5, 288
  %v3654 = vld [vmem:[%s3653] sm:$0xf]
  %v3655 = vld [vmem:[%s3653 + $0x4] sm:$0xf]
  %v3656 = vld [vmem:[%s3653 + $0x8] sm:$0xf]
  %v3657 = vld [vmem:[%s3653 + $0xc] sm:$0xf]
  %v3658 = vld [vmem:[%s3653 + $0x10] sm:$0xf]
  %v3659 = vld [vmem:[%s3653 + $0x14] sm:$0xf]
  %v3660 = vld [vmem:[%s3653 + $0x18] sm:$0xf]
  %v3661 = vld [vmem:[%s3653 + $0x1c] sm:$0xf]
  %v3662 = vld [vmem:[%s3653 + $0x20] sm:$0xf]
  %v3663 = vld [vmem:[%s3653 + $0x24] sm:$0xf]
  %v3664 = vld [vmem:[%s3653 + $0x28] sm:$0xf]
  %v3665 = vld [vmem:[%s3653 + $0x2c] sm:$0xf]
  %v3666 = vld [vmem:[%s3653 + $0x30] sm:$0xf]
  %v3667 = vld [vmem:[%s3653 + $0x34] sm:$0xf]
  %v3668 = vld [vmem:[%s3653 + $0x38] sm:$0xf]
  %v3669 = vld [vmem:[%s3653 + $0x3c] sm:$0xf]
  %v3670 = vld [vmem:[%s3653 + $0x40] sm:$0xf]
  %v3671 = vld [vmem:[%s3653 + $0x44] sm:$0xf]
  %v3690 = vunpack.c.l.b16 %v3654
  %v3691 = vunpack.c.l.b16 %v3655
  %v3692 = vunpack.c.l.b16 %v3656
  %v3693 = vunpack.c.l.b16 %v3657
  %v3694 = vunpack.c.l.b16 %v3658
  %v3695 = vunpack.c.l.b16 %v3659
  %v3696 = vunpack.c.l.b16 %v3660
  %v3697 = vunpack.c.l.b16 %v3661
  %v3698 = vunpack.c.l.b16 %v3662
  %v3699 = vunpack.c.l.b16 %v3663
  %v3700 = vunpack.c.l.b16 %v3664
  %v3701 = vunpack.c.l.b16 %v3665
  %v3702 = vunpack.c.l.b16 %v3666
  %v3703 = vunpack.c.l.b16 %v3667
  %v3704 = vunpack.c.l.b16 %v3668
  %v3705 = vunpack.c.l.b16 %v3669
  %v3706 = vunpack.c.l.b16 %v3670
  %v3707 = vunpack.c.l.b16 %v3671
  %v3708 = vpack.c.b16 %v3691, %v3690
  %v3709 = vpack.c.b16 %v3693, %v3692
  %v3710 = vpack.c.b16 %v3695, %v3694
  %v3711 = vpack.c.b16 %v3697, %v3696
  %v3712 = vpack.c.b16 %v3699, %v3698
  %v3713 = vpack.c.b16 %v3701, %v3700
  %v3714 = vpack.c.b16 %v3703, %v3702
  %v3715 = vpack.c.b16 %v3705, %v3704
  %v3716 = vpack.c.b16 %v3707, %v3706
  %v3727 = vsel %vm3278, %v3186, 0
  %3729 = vmatprep.subr.bf16.mxu0 0
  %3730 = vmatpush1.bf16.msra.mxu0 %v3708
  %3731 = vmatprep.subr.bf16.mxu0 0
  %3732 = vmatpush1.bf16.msra.mxu0 %v3709
  %3733 = vmatprep.subr.bf16.mxu0 0
  %3734 = vmatpush1.bf16.msra.mxu0 %v3710
  %3735 = vmatprep.subr.bf16.mxu0 0
  %3736 = vmatpush1.bf16.msra.mxu0 %v3711
  %3737 = vmatprep.subr.bf16.mxu0 0
  %3738 = vmatpush1.bf16.msra.mxu0 %v3712
  %3739 = vmatprep.subr.bf16.mxu0 0
  %3740 = vmatpush1.bf16.msra.mxu0 %v3713
  %3741 = vmatprep.subr.bf16.mxu0 0
  %3742 = vmatpush1.bf16.msra.mxu0 %v3714
  %3743 = vmatprep.subr.bf16.mxu0 0
  %3744 = vmatpush1.bf16.msra.mxu0 %v3715
  %3745 = vmatprep.subr.bf16.mxu0 0
  %3746 = vmatpush1.bf16.msra.mxu0 %v3716
  %3747 = vmatprep.subr.bf16.mxu0 0
  %3748 = vmatpush1.bf16.msra.mxu0 0
  %3749 = vmatprep.subr.bf16.mxu0 0
  %3750 = vmatpush1.bf16.msra.mxu0 0
  %3751 = vmatprep.subr.bf16.mxu0 0
  %3752 = vmatpush1.bf16.msra.mxu0 0
  %3753 = vmatprep.subr.bf16.mxu0 0
  %3754 = vmatpush1.bf16.msra.mxu0 0
  %3755 = vmatprep.subr.bf16.mxu0 0
  %3756 = vmatpush1.bf16.msra.mxu0 0
  %3757 = vmatprep.subr.bf16.mxu0 0
  %3758 = vmatpush1.bf16.msra.mxu0 0
  %3759 = vmatprep.subr.bf16.mxu0 0
  %3760 = vmatpush1.bf16.msra.mxu0 0
  %3761 = vmatprep.mubr.bf16.mxu0 %v3727
  %3762 = vmatmul.mubr.bf16.gmra.mrb[0].mxu0 %v3185
  %v3763 = vpop.f32.mrb[0].mxu0
  %v3764 = vadd.f32 0.0, %v3763
  %v3765 = vpop.f32.mrb[0].mxu0
  %v3766 = vpop.f32.mrb[0].mxu0
  %v3767 = vpop.f32.mrb[0].mxu0
  %3768 = vdwg.mxu0
  %v3769 = vadd.f32 %v3652, %v3764
  %v3770 = vld [vmem:[%s6] sm:$0x1]
  %v3772 = vlaneseq
  %v3773 = vshrl.u32 %v3772, 7
  %v3774 = vsub.s32 0, %v3773
  %v3775 = vrot.slane %v3770, %v3774
  %v3777 = vadd.f32 %v3769, %v3775
  %v3778 = vmax.f32 %v3777, 0.0
  %v3779 = vpack.c.bf16 %v3778, %v3778
  %v3780 = vld [vmem:[%s7] sm:$0xf]
  %v3781 = vld [vmem:[%s7 + $0x4] sm:$0xf]
  %v3782 = vld [vmem:[%s7 + $0x8] sm:$0xf]
  %v3783 = vld [vmem:[%s7 + $0xc] sm:$0xf]
  %v3784 = vld [vmem:[%s7 + $0x10] sm:$0xf]
  %v3785 = vld [vmem:[%s7 + $0x14] sm:$0xf]
  %v3786 = vld [vmem:[%s7 + $0x18] sm:$0xf]
  %v3787 = vld [vmem:[%s7 + $0x1c] sm:$0xf]
  %v3788 = vld [vmem:[%s7 + $0x20] sm:$0xf]
  %v3789 = vld [vmem:[%s7 + $0x24] sm:$0xf]
  %v3790 = vld [vmem:[%s7 + $0x28] sm:$0xf]
  %v3791 = vld [vmem:[%s7 + $0x2c] sm:$0xf]
  %v3792 = vld [vmem:[%s7 + $0x30] sm:$0xf]
  %v3793 = vld [vmem:[%s7 + $0x34] sm:$0xf]
  %v3794 = vld [vmem:[%s7 + $0x38] sm:$0xf]
  %v3795 = vld [vmem:[%s7 + $0x3c] sm:$0xf]
  %v3796 = vld [vmem:[%s8] sm:$0x1]
  %v3798 = vlaneseq
  %v3799 = vshrl.u32 %v3798, 7
  %v3800 = vsub.s32 0, %v3799
  %v3801 = vrot.slane %v3796, %v3800
  %v3819 = vunpack.c.l.b16 %v3780
  %v3820 = vunpack.c.l.b16 %v3781
  %v3821 = vunpack.c.l.b16 %v3782
  %v3822 = vunpack.c.l.b16 %v3783
  %v3823 = vunpack.c.l.b16 %v3784
  %v3824 = vunpack.c.l.b16 %v3785
  %v3825 = vunpack.c.l.b16 %v3786
  %v3826 = vunpack.c.l.b16 %v3787
  %v3827 = vunpack.c.l.b16 %v3788
  %v3828 = vunpack.c.l.b16 %v3789
  %v3829 = vunpack.c.l.b16 %v3790
  %v3830 = vunpack.c.l.b16 %v3791
  %v3831 = vunpack.c.l.b16 %v3792
  %v3832 = vunpack.c.l.b16 %v3793
  %v3833 = vunpack.c.l.b16 %v3794
  %v3834 = vunpack.c.l.b16 %v3795
  %v3835 = vpack.c.b16 %v3820, %v3819
  %v3836 = vpack.c.b16 %v3822, %v3821
  %v3837 = vpack.c.b16 %v3824, %v3823
  %v3838 = vpack.c.b16 %v3826, %v3825
  %v3839 = vpack.c.b16 %v3828, %v3827
  %v3840 = vpack.c.b16 %v3830, %v3829
  %v3841 = vpack.c.b16 %v3832, %v3831
  %v3842 = vpack.c.b16 %v3834, %v3833
  %3851 = vmatprep.subr.bf16.mxu0 0
  %3852 = vmatpush1.bf16.msra.mxu0 %v3835
  %3853 = vmatprep.subr.bf16.mxu0 0
  %3854 = vmatpush1.bf16.msra.mxu0 %v3836
  %3855 = vmatprep.subr.bf16.mxu0 0
  %3856 = vmatpush1.bf16.msra.mxu0 %v3837
  %3857 = vmatprep.subr.bf16.mxu0 0
  %3858 = vmatpush1.bf16.msra.mxu0 %v3838
  %3859 = vmatprep.subr.bf16.mxu0 0
  %3860 = vmatpush1.bf16.msra.mxu0 %v3839
  %3861 = vmatprep.subr.bf16.mxu0 0
  %3862 = vmatpush1.bf16.msra.mxu0 %v3840
  %3863 = vmatprep.subr.bf16.mxu0 0
  %3864 = vmatpush1.bf16.msra.mxu0 %v3841
  %3865 = vmatprep.subr.bf16.mxu0 0
  %3866 = vmatpush1.bf16.msra.mxu0 %v3842
  %3867 = vmatprep.subr.bf16.mxu0 0
  %3868 = vmatpush1.bf16.msra.mxu0 0
  %3869 = vmatprep.subr.bf16.mxu0 0
  %3870 = vmatpush1.bf16.msra.mxu0 0
  %3871 = vmatprep.subr.bf16.mxu0 0
  %3872 = vmatpush1.bf16.msra.mxu0 0
  %3873 = vmatprep.subr.bf16.mxu0 0
  %3874 = vmatpush1.bf16.msra.mxu0 0
  %3875 = vmatprep.subr.bf16.mxu0 0
  %3876 = vmatpush1.bf16.msra.mxu0 0
  %3877 = vmatprep.subr.bf16.mxu0 0
  %3878 = vmatpush1.bf16.msra.mxu0 0
  %3879 = vmatprep.subr.bf16.mxu0 0
  %3880 = vmatpush1.bf16.msra.mxu0 0
  %3881 = vmatprep.subr.bf16.mxu0 0
  %3882 = vmatpush1.bf16.msra.mxu0 0
  %3883 = vmatprep.mubr.bf16.mxu0 0
  %3884 = vmatmul.mubr.bf16.gmra.mrb[0].mxu0 %v3779
  %v3885 = vpop.f32.mrb[0].mxu0
  %v3886 = vadd.f32 %v3801, %v3885
  %v3887 = vpop.f32.mrb[0].mxu0
  %v3888 = vpop.f32.mrb[0].mxu0
  %v3889 = vpop.f32.mrb[0].mxu0
  %3890 = vdwg.mxu0
  %v3891 = vmax.f32 %v3886, 0.0
  %v3892 = vpack.c.bf16 %v3891, %v3891
  %v3893 = vld [vmem:[%s9] sm:$0xf]
  %v3894 = vld [vmem:[%s9 + $0x4] sm:$0xf]
  %v3895 = vld [vmem:[%s9 + $0x8] sm:$0xf]
  %v3896 = vld [vmem:[%s9 + $0xc] sm:$0xf]
  %v3897 = vld [vmem:[%s9 + $0x10] sm:$0xf]
  %v3898 = vld [vmem:[%s9 + $0x14] sm:$0xf]
  %v3899 = vld [vmem:[%s9 + $0x18] sm:$0xf]
  %v3900 = vld [vmem:[%s9 + $0x1c] sm:$0xf]
  %v3901 = vld [vmem:[%s9 + $0x20] sm:$0xf]
  %v3902 = vld [vmem:[%s9 + $0x24] sm:$0xf]
  %v3903 = vld [vmem:[%s9 + $0x28] sm:$0xf]
  %v3904 = vld [vmem:[%s9 + $0x2c] sm:$0xf]
  %v3905 = vld [vmem:[%s9 + $0x30] sm:$0xf]
  %v3906 = vld [vmem:[%s9 + $0x34] sm:$0xf]
  %v3907 = vld [vmem:[%s9 + $0x38] sm:$0xf]
  %v3908 = vld [vmem:[%s9 + $0x3c] sm:$0xf]
  %v3909 = vld [vmem:[%s10] sm:$0x1]
  %v3911 = vlaneseq
  %v3912 = vshrl.u32 %v3911, 7
  %v3913 = vsub.s32 0, %v3912
  %v3914 = vrot.slane %v3909, %v3913
  %v3932 = vunpack.c.l.b16 %v3893
  %v3933 = vunpack.c.l.b16 %v3894
  %v3934 = vunpack.c.l.b16 %v3895
  %v3935 = vunpack.c.l.b16 %v3896
  %v3936 = vunpack.c.l.b16 %v3897
  %v3937 = vunpack.c.l.b16 %v3898
  %v3938 = vunpack.c.l.b16 %v3899
  %v3939 = vunpack.c.l.b16 %v3900
  %v3940 = vunpack.c.l.b16 %v3901
  %v3941 = vunpack.c.l.b16 %v3902
  %v3942 = vunpack.c.l.b16 %v3903
  %v3943 = vunpack.c.l.b16 %v3904
  %v3944 = vunpack.c.l.b16 %v3905
  %v3945 = vunpack.c.l.b16 %v3906
  %v3946 = vunpack.c.l.b16 %v3907
  %v3947 = vunpack.c.l.b16 %v3908
  %v3948 = vpack.c.b16 %v3933, %v3932
  %v3949 = vpack.c.b16 %v3935, %v3934
  %v3950 = vpack.c.b16 %v3937, %v3936
  %v3951 = vpack.c.b16 %v3939, %v3938
  %v3952 = vpack.c.b16 %v3941, %v3940
  %v3953 = vpack.c.b16 %v3943, %v3942
  %v3954 = vpack.c.b16 %v3945, %v3944
  %v3955 = vpack.c.b16 %v3947, %v3946
  %3964 = vmatprep.subr.bf16.mxu0 0
  %3965 = vmatpush1.bf16.msra.mxu0 %v3948
  %3966 = vmatprep.subr.bf16.mxu0 0
  %3967 = vmatpush1.bf16.msra.mxu0 %v3949
  %3968 = vmatprep.subr.bf16.mxu0 0
  %3969 = vmatpush1.bf16.msra.mxu0 %v3950
  %3970 = vmatprep.subr.bf16.mxu0 0
  %3971 = vmatpush1.bf16.msra.mxu0 %v3951
  %3972 = vmatprep.subr.bf16.mxu0 0
  %3973 = vmatpush1.bf16.msra.mxu0 %v3952
  %3974 = vmatprep.subr.bf16.mxu0 0
  %3975 = vmatpush1.bf16.msra.mxu0 %v3953
  %3976 = vmatprep.subr.bf16.mxu0 0
  %3977 = vmatpush1.bf16.msra.mxu0 %v3954
  %3978 = vmatprep.subr.bf16.mxu0 0
  %3979 = vmatpush1.bf16.msra.mxu0 %v3955
  %3980 = vmatprep.subr.bf16.mxu0 0
  %3981 = vmatpush1.bf16.msra.mxu0 0
  %3982 = vmatprep.subr.bf16.mxu0 0
  %3983 = vmatpush1.bf16.msra.mxu0 0
  %3984 = vmatprep.subr.bf16.mxu0 0
  %3985 = vmatpush1.bf16.msra.mxu0 0
  %3986 = vmatprep.subr.bf16.mxu0 0
  %3987 = vmatpush1.bf16.msra.mxu0 0
  %3988 = vmatprep.subr.bf16.mxu0 0
  %3989 = vmatpush1.bf16.msra.mxu0 0
  %3990 = vmatprep.subr.bf16.mxu0 0
  %3991 = vmatpush1.bf16.msra.mxu0 0
  %3992 = vmatprep.subr.bf16.mxu0 0
  %3993 = vmatpush1.bf16.msra.mxu0 0
  %3994 = vmatprep.subr.bf16.mxu0 0
  %3995 = vmatpush1.bf16.msra.mxu0 0
  %3996 = vmatprep.mubr.bf16.mxu0 0
  %3997 = vmatmul.mubr.bf16.gmra.mrb[0].mxu0 %v3892
  %v3998 = vpop.f32.mrb[0].mxu0
  %v3999 = vadd.f32 %v3914, %v3998
  %v4000 = vpop.f32.mrb[0].mxu0
  %v4001 = vpop.f32.mrb[0].mxu0
  %v4002 = vpop.f32.mrb[0].mxu0
  %4003 = vdwg.mxu0
  %4004 = vst [vmem:[%s11] sm:$0xff] %v3999
  // Predicated region
  $region46: #{lenet_forward.1} parent=0 // pred_check
    _
  $region47: #{lenet_forward.1} parent=0 // pred_check_branch
    %4006 = sbr.rel (0) target = $region49
  $region48: #{lenet_forward.1} parent=0 // pred_region
    _
  $region49: #{lenet_forward.1} parent=0 // pred_fallthru
    _
  // Predicated region
  $region50: #{lenet_forward.1} parent=0 // pred_check
    _
  $region51: #{lenet_forward.1} parent=0 // pred_check_branch
    %4008 = sbr.rel (0) target = $region53
  $region52: #{lenet_forward.1} parent=0 // pred_region
    _
  $region53: #{lenet_forward.1} parent=0 // pred_fallthru
    _

</llo_original>
